<compile_context>
chip_gen: v5e
topology: v5e:2x2
jax: 0.10.0
libtpu: 0.0.40
codegen_flags: <defaults>
</compile_context>

<pallas_src>
import math

import jax
import jax.numpy as jnp
from jax.experimental import pallas as pl
from jax.experimental.pallas import tpu as pltpu

# Model hyperparameters (match the PyTorch defaults).
INPUT_DIM = 2
OUTPUT_DIM = 1          # fused final contraction assumes scalar output
HIDDEN = 50
NUM_SCALES = 3
NUM_HIDDEN_LAYERS = 4   # hidden_dims = [50, 50, 50, 50]
FUSED = NUM_SCALES * HIDDEN   # 150

# Candidate batch tiles (lanes). Larger tiles amortize the ~0.35us/step
# pipeline overhead; h scratch at TM=2048 is only ~1.2 MiB so VMEM is a
# non-issue on every generation (incl. v7x's 64 MiB).
_TM_CANDIDATES = (2048, 1024, 512, 256, 128)


def _two_tensorcores_per_device() -> bool:
    """v7x exposes 2 TensorCores per chip; keep the grid even only there."""
    try:
        kind = jax.devices()[0].device_kind.lower()
    except Exception:
        return False
    return ("v7" in kind) or ("7x" in kind)


def _batch_tiling(n: int):
    """Pick (TM, padded_N): biggest tile still giving >=2 grid steps, padding
    to a multiple of TM (single-TC chips) or an even step count (v7x)."""
    tm = _TM_CANDIDATES[-1]
    for cand in _TM_CANDIDATES:
        if pl.cdiv(n, cand) >= 2:
            tm = cand
            break
    steps = pl.cdiv(n, tm)
    if _two_tensorcores_per_device() and steps % 2 != 0:
        steps += 1          # feed both v7x TensorCores under ("parallel",)
    return tm, steps * tm


def _mspinn_kernel(x_ref,                     # (INPUT_DIM, TM)          VMEM
                   w1_ref, b1_ref,            # (FUSED, INPUT_DIM), (FUSED, 1)
                   wh_ref, bh_ref,            # (L-1, FUSED, FUSED), (L-1, FUSED, 1)
                   w5_ref,                    # (1, FUSED)               VMEM
                   b5_ref,                    # (1, 1)                   SMEM
                   o_ref):                    # (1, TM)                  VMEM
    # Layer 1: K=2 contraction done as broadcast FMAs on the VPU.
    h = b1_ref[...]                                        # (FUSED, 1)
    for d in range(INPUT_DIM):
        h = h + w1_ref[:, d:d + 1] * x_ref[d:d + 1, :]     # -> (FUSED, TM)
    h = jnp.tanh(h)

    # Layers 2..4: fused block-diagonal 150x150 matmuls on the MXU.
    # h is cast to the stored weight dtype (no-op in f32, single-pass in bf16);
    # accumulation and bias+tanh stay in f32.
    for l in range(NUM_HIDDEN_LAYERS - 1):
        h = jnp.tanh(
            jnp.dot(wh_ref[l], h.astype(wh_ref.dtype),
                    preferred_element_type=jnp.float32)
            + bh_ref[l])

    # Final layer: softmax scale weights are pre-folded into w5/b5, so the
    # weighted sum over scales is this single (1,150)x(150,TM) contraction.
    # b5 is a true scalar, read from SMEM.
    o_ref[...] = (jnp.dot(w5_ref[...], h.astype(w5_ref.dtype),
                          preferred_element_type=jnp.float32)
                  + b5_ref[0, 0]).astype(o_ref.dtype)


def _full_spec(shape):
    # Whole (small) parameter array resident in VMEM every grid step.
    return pl.BlockSpec(shape, lambda i: (0,) * len(shape))


def _pack_fused_params(params, sw, *, matmul_dtype=jnp.float32):
    """Repack per-scale stacked weights into the fused, transposed layout."""
    S, H, F = NUM_SCALES, HIDDEN, FUSED
    # Layer 1: (S, in, H) -> (F, in), rows ordered [scale, hidden-unit]. VPU path -> f32.
    w1f = jnp.transpose(params["w1"], (0, 2, 1)).reshape(F, INPUT_DIM).astype(jnp.float32)
    b1f = jnp.transpose(params["b1"], (0, 2, 1)).reshape(F, 1).astype(jnp.float32)
    # Hidden layers 2..4: block-diagonal (F, F), transposed for h' = W @ h.
    whs, bhs = [], []
    for layer in range(2, NUM_HIDDEN_LAYERS + 1):
        w = params[f"w{layer}"]                          # (S, H, H), used as x @ W
        blk = jnp.zeros((F, F), jnp.float32)
        for s in range(S):
            blk = blk.at[s * H:(s + 1) * H, s * H:(s + 1) * H].set(w[s].T)
        whs.append(blk)
        bhs.append(jnp.transpose(params[f"b{layer}"], (0, 2, 1)).reshape(F, 1))
    wh = jnp.stack(whs).astype(matmul_dtype)             # (L-1, F, F)
    bh = jnp.stack(bhs).astype(jnp.float32)              # (L-1, F, 1)
    # Final layer with the softmax scale weights folded in.
    w5 = params[f"w{NUM_HIDDEN_LAYERS + 1}"]             # (S, H, 1)
    b5 = params[f"b{NUM_HIDDEN_LAYERS + 1}"]             # (S, 1, 1)
    w5f = (sw[:, None, None] * jnp.transpose(w5, (0, 2, 1))).reshape(1, F).astype(matmul_dtype)
    b5f = jnp.sum(sw[:, None, None] * b5, axis=0).reshape(1, 1).astype(jnp.float32)
    return w1f, b1f, wh, bh, w5f, b5f


def multiscale_pinn_forward(params, x, *, use_bf16_matmul=False):
    """params: dict of stacked per-scale weights; x: (N, INPUT_DIM) f32."""
    N = x.shape[0]
    tm, NP = _batch_tiling(N)

    # Single fused pad+transpose (no zeros + dynamic-update-slice pass).
    x_t = jnp.pad(x.astype(jnp.float32).T, ((0, 0), (0, NP - N)))

    # softmax over scale weights (dim=0 in the PyTorch module) -- cheap glue,
    # folded into the final-layer weights below.
    sw = jax.nn.softmax(params["scale_weights"].astype(jnp.float32), axis=0)
    mm_dtype = jnp.bfloat16 if use_bf16_matmul else jnp.float32
    w1f, b1f, wh, bh, w5f, b5f = _pack_fused_params(params, sw, matmul_dtype=mm_dtype)

    param_bytes = sum(int(a.size) * a.dtype.itemsize
                      for a in (w1f, b1f, wh, bh, w5f, b5f))
    cost = pl.CostEstimate(
        flops=2 * NP * ((NUM_HIDDEN_LAYERS - 1) * FUSED * FUSED
                        + FUSED * INPUT_DIM + FUSED * OUTPUT_DIM),
        transcendentals=NUM_HIDDEN_LAYERS * FUSED * NP,
        bytes_accessed=param_bytes + (INPUT_DIM + OUTPUT_DIM) * 4 * NP,
    )

    out = pl.pallas_call(
        _mspinn_kernel,
        out_shape=jax.ShapeDtypeStruct((1, NP), jnp.float32),
        grid_spec=pl.GridSpec(
            grid=(NP // tm,),
            in_specs=[
                pl.BlockSpec((INPUT_DIM, tm), lambda i: (0, i)),   # x tile
                _full_spec(w1f.shape), _full_spec(b1f.shape),
                _full_spec(wh.shape), _full_spec(bh.shape),
                _full_spec(w5f.shape),
                pl.BlockSpec(memory_space=pltpu.MemorySpace.SMEM),  # b5 scalar
            ],
            out_specs=pl.BlockSpec((1, tm), lambda i: (0, i)),     # lane-dense row
        ),
        compiler_params=pltpu.CompilerParams(
            dimension_semantics=("parallel",)),
        cost_estimate=cost,
    )(x_t, w1f, b1f, wh, bh, w5f, b5f)
    return out[0, :N].reshape(N, OUTPUT_DIM)


def init_params(key):
    """Deterministic Xavier-normal weights, zero biases, ones scale_weights."""
    dims = [INPUT_DIM] + [HIDDEN] * NUM_HIDDEN_LAYERS + [OUTPUT_DIM]
    params = {}
    keys = jax.random.split(key, NUM_SCALES * (NUM_HIDDEN_LAYERS + 1))
    k_idx = 0
    for layer in range(NUM_HIDDEN_LAYERS + 1):
        fan_in, fan_out = dims[layer], dims[layer + 1]
        std = math.sqrt(2.0 / (fan_in + fan_out))          # xavier_normal_
        ws, bs = [], []
        for _ in range(NUM_SCALES):
            w = std * jax.random.normal(keys[k_idx], (fan_in, fan_out), jnp.float32)
            k_idx += 1
            ws.append(w)
            bs.append(jnp.zeros((1, fan_out), jnp.float32))
        params[f"w{layer + 1}"] = jnp.stack(ws)             # (S, fan_in, fan_out)
        params[f"b{layer + 1}"] = jnp.stack(bs)             # (S, 1, fan_out)
    params["scale_weights"] = jnp.ones((NUM_SCALES,), jnp.float32)
    return params


def reference_forward(params, x):
    """Pure-JAX reference replicating the PyTorch forward semantics.

    Uses HIGHEST matmul precision so the reference is ~full f32 like the
    kernel (whose f32 MXU dots are multi-pass bf16 emulation)."""
    hi = jax.lax.Precision.HIGHEST
    sw = jax.nn.softmax(params["scale_weights"], axis=0)
    acc = jnp.zeros((x.shape[0], OUTPUT_DIM), jnp.float32)
    for s in range(NUM_SCALES):
        h = x
        for layer in range(1, NUM_HIDDEN_LAYERS + 1):
            h = jnp.tanh(jnp.dot(h, params[f"w{layer}"][s], precision=hi)
                         + params[f"b{layer}"][s])
        y = (jnp.dot(h, params[f"w{NUM_HIDDEN_LAYERS + 1}"][s], precision=hi)
             + params[f"b{NUM_HIDDEN_LAYERS + 1}"][s])
        acc = acc + sw[s] * y
    return acc


if __name__ == "__main__":
    key = jax.random.PRNGKey(0)
    pkey, xkey = jax.random.split(key)
    params = init_params(pkey)

    # Deliberately not tile-aligned: exercises the pad path; with N=2000 the
    # adaptive tiling picks TM=1024 and a 2-step grid.
    N = 2000
    x = jax.random.normal(xkey, (N, INPUT_DIM), jnp.float32)

    out = jax.block_until_ready(multiscale_pinn_forward(params, x))
    ref = reference_forward(params, x)

    assert out.shape == (N, OUTPUT_DIM)
    max_err = float(jnp.max(jnp.abs(out - ref)))
    assert jnp.allclose(out, ref, atol=1e-4, rtol=1e-4), (
        f"mismatch vs reference, max abs err = {max_err}")
    print("KERNEL_OK")
</pallas_src>

<mosaic_0001>
module attributes {stable_mosaic.version = 11 : i64} {
  func.func @_mspinn_kernel(%arg0: i32, %arg1: memref<2x1024xf32, #tpu.memory_space<vmem>>, %arg2: memref<150x2xf32, #tpu.memory_space<vmem>>, %arg3: memref<150x1xf32, #tpu.memory_space<vmem>>, %arg4: memref<3x150x150xf32, #tpu.memory_space<vmem>>, %arg5: memref<3x150x1xf32, #tpu.memory_space<vmem>>, %arg6: memref<1x150xf32, #tpu.memory_space<vmem>>, %arg7: memref<1x1xf32, #tpu.memory_space<smem>>, %arg8: memref<1x1024xf32, #tpu.memory_space<vmem>>) attributes {dimension_semantics = [#tpu.dimension_semantics<parallel>], iteration_bounds = array<i64: 2>, scalar_prefetch = 0 : i64, scratch_operands = 0 : i64, tpu.core_type = #tpu.core_type<tc>, window_params = [{transform_indices = @transform_0, window_bounds = array<i64: 2, 1024>}, {pipeline_mode = #tpu.pipeline_mode<synchronous>, transform_indices = @transform_1, window_bounds = array<i64: 150, 2>}, {pipeline_mode = #tpu.pipeline_mode<synchronous>, transform_indices = @transform_2, window_bounds = array<i64: 150, 1>}, {pipeline_mode = #tpu.pipeline_mode<synchronous>, transform_indices = @transform_3, window_bounds = array<i64: 3, 150, 150>}, {pipeline_mode = #tpu.pipeline_mode<synchronous>, transform_indices = @transform_4, window_bounds = array<i64: 3, 150, 1>}, {pipeline_mode = #tpu.pipeline_mode<synchronous>, transform_indices = @transform_5, window_bounds = array<i64: 1, 150>}, {transform_indices = @transform_6, window_bounds = array<i64: 1, 1>}, {transform_indices = @transform_7, window_bounds = array<i64: 1, 1024>}]} {
    %c0 = arith.constant 0 : index
    %c0_0 = arith.constant 0 : index
    %0 = vector.load %arg3[%c0, %c0_0] : memref<150x1xf32, #tpu.memory_space<vmem>>, vector<150x1xf32>
    %c0_1 = arith.constant 0 : index
    %c0_2 = arith.constant 0 : index
    %1 = vector.load %arg2[%c0_1, %c0_2] : memref<150x2xf32, #tpu.memory_space<vmem>>, vector<150x1xf32>
    %c0_3 = arith.constant 0 : index
    %c0_4 = arith.constant 0 : index
    %2 = vector.load %arg1[%c0_3, %c0_4] : memref<2x1024xf32, #tpu.memory_space<vmem>>, vector<1x1024xf32>
    %3 = vector.broadcast %1 : vector<150x1xf32> to vector<150x1024xf32>
    %4 = vector.broadcast %2 : vector<1x1024xf32> to vector<150x1024xf32>
    %5 = arith.mulf %3, %4 : vector<150x1024xf32>
    %6 = vector.broadcast %0 : vector<150x1xf32> to vector<150x1024xf32>
    %7 = arith.addf %6, %5 : vector<150x1024xf32>
    %c0_5 = arith.constant 0 : index
    %c1 = arith.constant 1 : index
    %8 = vector.load %arg2[%c0_5, %c1] : memref<150x2xf32, #tpu.memory_space<vmem>>, vector<150x1xf32>
    %c1_6 = arith.constant 1 : index
    %c0_7 = arith.constant 0 : index
    %9 = vector.load %arg1[%c1_6, %c0_7] : memref<2x1024xf32, #tpu.memory_space<vmem>>, vector<1x1024xf32>
    %10 = vector.broadcast %8 : vector<150x1xf32> to vector<150x1024xf32>
    %11 = vector.broadcast %9 : vector<1x1024xf32> to vector<150x1024xf32>
    %12 = arith.mulf %10, %11 : vector<150x1024xf32>
    %13 = arith.addf %7, %12 : vector<150x1024xf32>
    %14 = math.tanh %13 : vector<150x1024xf32>
    %c0_8 = arith.constant 0 : index
    %c0_9 = arith.constant 0 : index
    %c0_10 = arith.constant 0 : index
    %15 = vector.load %arg4[%c0_8, %c0_9, %c0_10] : memref<3x150x150xf32, #tpu.memory_space<vmem>>, vector<1x150x150xf32>
    %16 = vector.shape_cast %15 : vector<1x150x150xf32> to vector<150x150xf32>
    %cst = arith.constant dense<0.000000e+00> : vector<150x1024xf32>
    %17 = tpu.matmul %16, %14, %cst {dimension_numbers = #tpu.dot_dimension_numbers<[1], [0], [0], [1], [0, 0, 1, 1], [], []>} : vector<150x150xf32>, vector<150x1024xf32>, vector<150x1024xf32> -> vector<150x1024xf32>
    %c0_11 = arith.constant 0 : index
    %c0_12 = arith.constant 0 : index
    %c0_13 = arith.constant 0 : index
    %18 = vector.load %arg5[%c0_11, %c0_12, %c0_13] : memref<3x150x1xf32, #tpu.memory_space<vmem>>, vector<1x150x1xf32>
    %19 = vector.shape_cast %18 : vector<1x150x1xf32> to vector<150x1xf32>
    %20 = vector.broadcast %19 : vector<150x1xf32> to vector<150x1024xf32>
    %21 = arith.addf %17, %20 : vector<150x1024xf32>
    %22 = math.tanh %21 : vector<150x1024xf32>
    %c1_14 = arith.constant 1 : index
    %c0_15 = arith.constant 0 : index
    %c0_16 = arith.constant 0 : index
    %23 = vector.load %arg4[%c1_14, %c0_15, %c0_16] : memref<3x150x150xf32, #tpu.memory_space<vmem>>, vector<1x150x150xf32>
    %24 = vector.shape_cast %23 : vector<1x150x150xf32> to vector<150x150xf32>
    %cst_17 = arith.constant dense<0.000000e+00> : vector<150x1024xf32>
    %25 = tpu.matmul %24, %22, %cst_17 {dimension_numbers = #tpu.dot_dimension_numbers<[1], [0], [0], [1], [0, 0, 1, 1], [], []>} : vector<150x150xf32>, vector<150x1024xf32>, vector<150x1024xf32> -> vector<150x1024xf32>
    %c1_18 = arith.constant 1 : index
    %c0_19 = arith.constant 0 : index
    %c0_20 = arith.constant 0 : index
    %26 = vector.load %arg5[%c1_18, %c0_19, %c0_20] : memref<3x150x1xf32, #tpu.memory_space<vmem>>, vector<1x150x1xf32>
    %27 = vector.shape_cast %26 : vector<1x150x1xf32> to vector<150x1xf32>
    %28 = vector.broadcast %27 : vector<150x1xf32> to vector<150x1024xf32>
    %29 = arith.addf %25, %28 : vector<150x1024xf32>
    %30 = math.tanh %29 : vector<150x1024xf32>
    %c2 = arith.constant 2 : index
    %c0_21 = arith.constant 0 : index
    %c0_22 = arith.constant 0 : index
    %31 = vector.load %arg4[%c2, %c0_21, %c0_22] : memref<3x150x150xf32, #tpu.memory_space<vmem>>, vector<1x150x150xf32>
    %32 = vector.shape_cast %31 : vector<1x150x150xf32> to vector<150x150xf32>
    %cst_23 = arith.constant dense<0.000000e+00> : vector<150x1024xf32>
    %33 = tpu.matmul %32, %30, %cst_23 {dimension_numbers = #tpu.dot_dimension_numbers<[1], [0], [0], [1], [0, 0, 1, 1], [], []>} : vector<150x150xf32>, vector<150x1024xf32>, vector<150x1024xf32> -> vector<150x1024xf32>
    %c2_24 = arith.constant 2 : index
    %c0_25 = arith.constant 0 : index
    %c0_26 = arith.constant 0 : index
    %34 = vector.load %arg5[%c2_24, %c0_25, %c0_26] : memref<3x150x1xf32, #tpu.memory_space<vmem>>, vector<1x150x1xf32>
    %35 = vector.shape_cast %34 : vector<1x150x1xf32> to vector<150x1xf32>
    %36 = vector.broadcast %35 : vector<150x1xf32> to vector<150x1024xf32>
    %37 = arith.addf %33, %36 : vector<150x1024xf32>
    %38 = math.tanh %37 : vector<150x1024xf32>
    %c0_27 = arith.constant 0 : index
    %c0_28 = arith.constant 0 : index
    %39 = vector.load %arg6[%c0_27, %c0_28] : memref<1x150xf32, #tpu.memory_space<vmem>>, vector<1x150xf32>
    %cst_29 = arith.constant dense<0.000000e+00> : vector<1x1024xf32>
    %40 = tpu.matmul %39, %38, %cst_29 {dimension_numbers = #tpu.dot_dimension_numbers<[1], [0], [0], [1], [0, 0, 1, 1], [], []>} : vector<1x150xf32>, vector<150x1024xf32>, vector<1x1024xf32> -> vector<1x1024xf32>
    %c0_30 = arith.constant 0 : index
    %c0_31 = arith.constant 0 : index
    %41 = memref.load %arg7[%c0_30, %c0_31] : memref<1x1xf32, #tpu.memory_space<smem>>
    %42 = vector.broadcast %41 : f32 to vector<1x1024xf32>
    %43 = arith.addf %40, %42 : vector<1x1024xf32>
    %c0_32 = arith.constant 0 : index
    %c0_33 = arith.constant 0 : index
    %44 = vector.load %arg8[%c0_32, %c0_33] : memref<1x1024xf32, #tpu.memory_space<vmem>>, vector<1x1024xf32>
    tpu.vector_store %arg8[%c0_32, %c0_33], %43 {strides = array<i32>} : memref<1x1024xf32, #tpu.memory_space<vmem>>, vector<1x1024xf32>,
    return
  }
  func.func @transform_0(%arg0: i32) -> (i32, i32) {
    %c0_i32 = arith.constant 0 : i32
    %c0_i32_0 = arith.constant 0 : i32
    return %c0_i32, %arg0 : i32, i32
  }
  func.func @transform_1(%arg0: i32) -> (i32, i32) {
    %c0_i32 = arith.constant 0 : i32
    %c0_i32_0 = arith.constant 0 : i32
    %c0_i32_1 = arith.constant 0 : i32
    return %c0_i32, %c0_i32_0 : i32, i32
  }
  func.func @transform_2(%arg0: i32) -> (i32, i32) {
    %c0_i32 = arith.constant 0 : i32
    %c0_i32_0 = arith.constant 0 : i32
    %c0_i32_1 = arith.constant 0 : i32
    return %c0_i32, %c0_i32_0 : i32, i32
  }
  func.func @transform_3(%arg0: i32) -> (i32, i32, i32) {
    %c0_i32 = arith.constant 0 : i32
    %c0_i32_0 = arith.constant 0 : i32
    %c0_i32_1 = arith.constant 0 : i32
    %c0_i32_2 = arith.constant 0 : i32
    return %c0_i32, %c0_i32_0, %c0_i32_1 : i32, i32, i32
  }
  func.func @transform_4(%arg0: i32) -> (i32, i32, i32) {
    %c0_i32 = arith.constant 0 : i32
    %c0_i32_0 = arith.constant 0 : i32
    %c0_i32_1 = arith.constant 0 : i32
    %c0_i32_2 = arith.constant 0 : i32
    return %c0_i32, %c0_i32_0, %c0_i32_1 : i32, i32, i32
  }
  func.func @transform_5(%arg0: i32) -> (i32, i32) {
    %c0_i32 = arith.constant 0 : i32
    %c0_i32_0 = arith.constant 0 : i32
    %c0_i32_1 = arith.constant 0 : i32
    return %c0_i32, %c0_i32_0 : i32, i32
  }
  func.func @transform_6(%arg0: i32) -> (i32, i32) {
    %c0_i32 = arith.constant 0 : i32
    %c0_i32_0 = arith.constant 0 : i32
    %c0_i32_1 = arith.constant 0 : i32
    return %c0_i32, %c0_i32_0 : i32, i32
  }
  func.func @transform_7(%arg0: i32) -> (i32, i32) {
    %c0_i32 = arith.constant 0 : i32
    %c0_i32_0 = arith.constant 0 : i32
    return %c0_i32, %arg0 : i32, i32
  }
}

</mosaic_0001>

<llo_original>
// kernel: tpu_custom_call.1
$region0: #{tpu_custom_call.1}
  #allocation0 [shape = 'u32[]', space=smem, size = 0x4, offset = 0x4, fixed_abs, tag = 'smem constant byte address 0x4 - core index']
  #allocation1 [shape = 'u32[72,128]{1,0:T(1,128)}', space=vmem, size = 0x9000, scoped, tag = 'internal scratch']
  #allocation2 [shape = 'f32[1,1]{1,0:T(1,128)S(6)}', space=smem, size = 0x200, scoped, tag = 'scoped memory for tpu_custom_call.1']
  %s0 = inlined_call_operand.vmem [shape: f32[2,2048], index: 0, kind: input, shape index: {}]
  %s1 = inlined_call_operand.vmem [shape: f32[150,2], index: 1, kind: input, shape index: {}]
  %s2 = inlined_call_operand.vmem [shape: f32[150,1], index: 2, kind: input, shape index: {}]
  %s3 = inlined_call_operand.hbm [shape: f32[3,150,150], index: 3, kind: input, shape index: {}]
  %s4 = inlined_call_operand.vmem [shape: f32[3,150,1], index: 4, kind: input, shape index: {}]
  %s5 = inlined_call_operand.vmem [shape: f32[1,150], index: 5, kind: input, shape index: {}]
  %s6 = inlined_call_operand.<no memory space> [shape: f32[1,1], index: 6, kind: input, shape index: {}]
  %s7 = inlined_call_operand.hbm [shape: f32[1,2048], index: 7, kind: output, shape index: {}]
  %s8 = sld [smem:[#allocation0]]
  $region65: #{tpu_custom_call.1} parent=0
    _
  %s10 = ssub.s32 1, %s8
  %s11 = scalar_select 0, %s10, %s8
  %12 = sst [smem:[#allocation2]] %s6
  $region1: #{tpu_custom_call.1} parent=0
    #allocation3 [shape = 'u8[466944]{0}', space=vmem, size = 0x72000, scoped, tag = 'input window, operand 3, single buffered']
    #allocation4 [shape = 's32[2]{0}', space=sflag, size = 0x8, scoped, tag = 'scoped memory for tpu_custom_call.1']
    #allocation5 [shape = 's32[2]{0}', space=sflag, size = 0x8, scoped, tag = 'scoped memory for tpu_custom_call.1']
    #allocation6 [shape = 'u8[8192]{0}', space=vmem, size = 0x2000, scoped, tag = 'output window, operand 0']
    %13 = vsyncpa [#allocation4], 0
    %14 = vsyncpa [#allocation5], 0
    %s15 = scalar_lea.sflag [#allocation5], 1
    %16 = vsyncpa %s15, 0
    loop: start=0, step=1, limit=4
    $region2: #{tpu_custom_call.1} parent=1 // loop_pre_header
      _
    $region3: #{tpu_custom_call.1} parent=1 // loop_header
      %s18 = sphi 0, %s22
      %p19 = scmp.ge.s32.totalorder %s18, 4
      %s28 = sphi 0, %s30
      %s31 = sphi 0, %s28
      %s32 = sphi 0, %s31
      %s48 = sphi 0, %s32
      %s52 = sphi 0, %s52
      %s54 = sphi 0, %s52
      %s55 = sphi 0, %s54
      %s69 = sphi 0, %s55
      %s73 = sphi 0, %s73
      %s75 = sphi 0, %s73
      %s76 = sphi 0, %s75
      %s90 = sphi 0, %s76
      %s94 = sphi 0, %s94
      %s96 = sphi 0, %s94
      %s97 = sphi 0, %s96
      %s111 = sphi 0, %s97
      %s115 = sphi 0, %s115
      %s117 = sphi 0, %s115
      %s118 = sphi 0, %s117
      %s132 = sphi 0, %s118
      %s136 = sphi 0, %s136
      %s138 = sphi 0, %s136
      %s139 = sphi 0, %s138
      %s153 = sphi 0, %s139
      %s157 = sphi 0, %s157
      %s159 = sphi 0, %s157
      %s160 = sphi 0, %s159
      %s174 = sphi 0, %s160
      %s180 = sphi 0, %s182
      %s183 = sphi 0, %s180
      %s184 = sphi 0, %s183
      %s200 = sphi 0, %s184
    $region4: #{tpu_custom_call.1} parent=1 // loop_header_branch
      %21 = sbr.rel (%p19) target = $region8
    $region5: #{tpu_custom_call.1} parent=1 // loop_body
      %s23 = ssub.s32 %s18, 1
      %s24 = ssub.s32 %s18, 2
      %s25 = sadd.s32 %s18, 1
      %s26 = ssub.s32 %s18, %s25
      %p27 = scmp.eq.s32.totalorder %s26, 0
      %s29 = sadd.s32 %s28, 1
      %s30 = scalar_select %p27, %s28, %s29
      %p33 = pneg %p27
      %p34 = scmp.eq.s32.totalorder %s18, 1
      %p35 = por %p33, %p34
      %p36 = scmp.ne.s32.totalorder %s28, %s31
      %p37 = scmp.eq.s32.totalorder %s18, 0
      %p38 = por %p36, %p37
      %p39 = scmp.ne.s32.totalorder %s28, %s31
      %p40 = scmp.eq.s32.totalorder %s23, 1
      %p41 = por %p39, %p40
      %p42 = scmp.ne.s32.totalorder %s31, %s32
      %p43 = scmp.eq.s32.totalorder %s23, 0
      %p44 = por %p42, %p43
      %p45 = scmp.ne.s32.totalorder %s31, %s32
      %p46 = scmp.eq.s32.totalorder %s24, 1
      %p47 = por %p45, %p46
      %p49 = scmp.ne.s32.totalorder %s32, %s48
      %p50 = scmp.eq.s32.totalorder %s24, 0
      %p51 = por %p49, %p50
      %s53 = sadd.s32 %s52, 1
      %p56 = scmp.eq.s32.totalorder %s18, 1
      %p57 = scmp.ne.s32.totalorder %s52, %s54
      %p58 = scmp.eq.s32.totalorder %s18, 0
      %p59 = por %p57, %p58
      %p60 = scmp.ne.s32.totalorder %s52, %s54
      %p61 = scmp.eq.s32.totalorder %s23, 1
      %p62 = por %p60, %p61
      %p63 = scmp.ne.s32.totalorder %s54, %s55
      %p64 = scmp.eq.s32.totalorder %s23, 0
      %p65 = por %p63, %p64
      %p66 = scmp.ne.s32.totalorder %s54, %s55
      %p67 = scmp.eq.s32.totalorder %s24, 1
      %p68 = por %p66, %p67
      %p70 = scmp.ne.s32.totalorder %s55, %s69
      %p71 = scmp.eq.s32.totalorder %s24, 0
      %p72 = por %p70, %p71
      %s74 = sadd.s32 %s73, 1
      %p77 = scmp.eq.s32.totalorder %s18, 1
      %p78 = scmp.ne.s32.totalorder %s73, %s75
      %p79 = scmp.eq.s32.totalorder %s18, 0
      %p80 = por %p78, %p79
      %p81 = scmp.ne.s32.totalorder %s73, %s75
      %p82 = scmp.eq.s32.totalorder %s23, 1
      %p83 = por %p81, %p82
      %p84 = scmp.ne.s32.totalorder %s75, %s76
      %p85 = scmp.eq.s32.totalorder %s23, 0
      %p86 = por %p84, %p85
      %p87 = scmp.ne.s32.totalorder %s75, %s76
      %p88 = scmp.eq.s32.totalorder %s24, 1
      %p89 = por %p87, %p88
      %p91 = scmp.ne.s32.totalorder %s76, %s90
      %p92 = scmp.eq.s32.totalorder %s24, 0
      %p93 = por %p91, %p92
      %s95 = sadd.s32 %s94, 1
      %p98 = scmp.eq.s32.totalorder %s18, 1
      %p99 = scmp.ne.s32.totalorder %s94, %s96
      %p100 = scmp.eq.s32.totalorder %s18, 0
      %p101 = por %p99, %p100
      %p102 = scmp.ne.s32.totalorder %s94, %s96
      %p103 = scmp.eq.s32.totalorder %s23, 1
      %p104 = por %p102, %p103
      %p105 = scmp.ne.s32.totalorder %s96, %s97
      %p106 = scmp.eq.s32.totalorder %s23, 0
      %p107 = por %p105, %p106
      %p108 = scmp.ne.s32.totalorder %s96, %s97
      %p109 = scmp.eq.s32.totalorder %s24, 1
      %p110 = por %p108, %p109
      %p112 = scmp.ne.s32.totalorder %s97, %s111
      %p113 = scmp.eq.s32.totalorder %s24, 0
      %p114 = por %p112, %p113
      %s116 = sadd.s32 %s115, 1
      %p119 = scmp.eq.s32.totalorder %s18, 1
      %p120 = scmp.ne.s32.totalorder %s115, %s117
      %p121 = scmp.eq.s32.totalorder %s18, 0
      %p122 = por %p120, %p121
      %p123 = scmp.ne.s32.totalorder %s115, %s117
      %p124 = scmp.eq.s32.totalorder %s23, 1
      %p125 = por %p123, %p124
      %p126 = scmp.ne.s32.totalorder %s117, %s118
      %p127 = scmp.eq.s32.totalorder %s23, 0
      %p128 = por %p126, %p127
      %p129 = scmp.ne.s32.totalorder %s117, %s118
      %p130 = scmp.eq.s32.totalorder %s24, 1
      %p131 = por %p129, %p130
      %p133 = scmp.ne.s32.totalorder %s118, %s132
      %p134 = scmp.eq.s32.totalorder %s24, 0
      %p135 = por %p133, %p134
      %s137 = sadd.s32 %s136, 1
      %p140 = scmp.eq.s32.totalorder %s18, 1
      %p141 = scmp.ne.s32.totalorder %s136, %s138
      %p142 = scmp.eq.s32.totalorder %s18, 0
      %p143 = por %p141, %p142
      %p144 = scmp.ne.s32.totalorder %s136, %s138
      %p145 = scmp.eq.s32.totalorder %s23, 1
      %p146 = por %p144, %p145
      %p147 = scmp.ne.s32.totalorder %s138, %s139
      %p148 = scmp.eq.s32.totalorder %s23, 0
      %p149 = por %p147, %p148
      %p150 = scmp.ne.s32.totalorder %s138, %s139
      %p151 = scmp.eq.s32.totalorder %s24, 1
      %p152 = por %p150, %p151
      %p154 = scmp.ne.s32.totalorder %s139, %s153
      %p155 = scmp.eq.s32.totalorder %s24, 0
      %p156 = por %p154, %p155
      %s158 = sadd.s32 %s157, 1
      %p161 = scmp.eq.s32.totalorder %s18, 1
      %p162 = scmp.ne.s32.totalorder %s157, %s159
      %p163 = scmp.eq.s32.totalorder %s18, 0
      %p164 = por %p162, %p163
      %p165 = scmp.ne.s32.totalorder %s157, %s159
      %p166 = scmp.eq.s32.totalorder %s23, 1
      %p167 = por %p165, %p166
      %p168 = scmp.ne.s32.totalorder %s159, %s160
      %p169 = scmp.eq.s32.totalorder %s23, 0
      %p170 = por %p168, %p169
      %p171 = scmp.ne.s32.totalorder %s159, %s160
      %p172 = scmp.eq.s32.totalorder %s24, 1
      %p173 = por %p171, %p172
      %p175 = scmp.ne.s32.totalorder %s160, %s174
      %p176 = scmp.eq.s32.totalorder %s24, 0
      %p177 = por %p175, %p176
      %s178 = ssub.s32 %s18, %s25
      %p179 = scmp.eq.s32.totalorder %s178, 0
      %s181 = sadd.s32 %s180, 1
      %s182 = scalar_select %p179, %s180, %s181
      %p185 = pneg %p179
      %p186 = scmp.eq.s32.totalorder %s18, 1
      %p187 = por %p185, %p186
      %p188 = scmp.ne.s32.totalorder %s180, %s183
      %p189 = scmp.eq.s32.totalorder %s18, 0
      %p190 = por %p188, %p189
      %p191 = scmp.ne.s32.totalorder %s180, %s183
      %p192 = scmp.eq.s32.totalorder %s23, 1
      %p193 = por %p191, %p192
      %p194 = scmp.ne.s32.totalorder %s183, %s184
      %p195 = scmp.eq.s32.totalorder %s23, 0
      %p196 = por %p194, %p195
      %p197 = scmp.ne.s32.totalorder %s183, %s184
      %p198 = scmp.eq.s32.totalorder %s24, 1
      %p199 = por %p197, %p198
      %p201 = scmp.ne.s32.totalorder %s184, %s200
      %p202 = scmp.eq.s32.totalorder %s24, 0
      %p203 = por %p201, %p202
      %p204 = scmp.le.s32.totalorder 1, %s18
      %p205 = scmp.lt.s32.totalorder %s18, 3
      %p206 = pnand %p204, %p205
      %p207 = pneg %p206
      // Predicated region
      $region9: #{tpu_custom_call.1} parent=5 // pred_check
        _
      $region10: #{tpu_custom_call.1} parent=5 // pred_check_branch
        %209 = sbr.rel (%p206) target = $region12
      $region11: #{tpu_custom_call.1} parent=5 // pred_region
        %s210 = ssub.s32 %s18, 1
        // Predicated region
        $region13: #{tpu_custom_call.1} parent=11 // pred_check
          %p211 = pneg %p65
        $region14: #{tpu_custom_call.1} parent=11 // pred_check_branch
          %213 = sbr.rel (%p211) target = $region16
        $region15: #{tpu_custom_call.1} parent=11 // pred_region
          _
        $region16: #{tpu_custom_call.1} parent=11 // pred_fallthru
          _
        // Predicated region
        $region17: #{tpu_custom_call.1} parent=11 // pred_check
          %p214 = pneg %p86
        $region18: #{tpu_custom_call.1} parent=11 // pred_check_branch
          %216 = sbr.rel (%p214) target = $region20
        $region19: #{tpu_custom_call.1} parent=11 // pred_region
          _
        $region20: #{tpu_custom_call.1} parent=11 // pred_fallthru
          _
        // Predicated region
        $region21: #{tpu_custom_call.1} parent=11 // pred_check
          %p217 = pneg %p107
        $region22: #{tpu_custom_call.1} parent=11 // pred_check_branch
          %219 = sbr.rel (%p217) target = $region24
        $region23: #{tpu_custom_call.1} parent=11 // pred_region
          %221 = vsyncadd [#allocation4], 0
          %s222 = sshll.u32 %s3, 4
          %s223 = int_to_ptr.hbm [resolvable:$true] %s222
          %s224 = sshll.u32 [#allocation3], 4
          %s225 = int_to_ptr.vmem [resolvable:$true] %s224
          %230 = dma.hbm_to_vmem [thread:$0]  %s223, 14592, %s225, [#allocation4], 256, 256, 16
        $region24: #{tpu_custom_call.1} parent=11 // pred_fallthru
          _
        // Predicated region
        $region25: #{tpu_custom_call.1} parent=11 // pred_check
          %p231 = pneg %p128
        $region26: #{tpu_custom_call.1} parent=11 // pred_check_branch
          %233 = sbr.rel (%p231) target = $region28
        $region27: #{tpu_custom_call.1} parent=11 // pred_region
          _
        $region28: #{tpu_custom_call.1} parent=11 // pred_fallthru
          _
        // Predicated region
        $region29: #{tpu_custom_call.1} parent=11 // pred_check
          %p234 = pneg %p149
        $region30: #{tpu_custom_call.1} parent=11 // pred_check_branch
          %236 = sbr.rel (%p234) target = $region32
        $region31: #{tpu_custom_call.1} parent=11 // pred_region
          _
        $region32: #{tpu_custom_call.1} parent=11 // pred_fallthru
          _
        // Predicated region
        $region33: #{tpu_custom_call.1} parent=11 // pred_check
          %p237 = pneg %p170
        $region34: #{tpu_custom_call.1} parent=11 // pred_check_branch
          %239 = sbr.rel (%p237) target = $region36
        $region35: #{tpu_custom_call.1} parent=11 // pred_region
          _
        $region36: #{tpu_custom_call.1} parent=11 // pred_fallthru
          _
      $region12: #{tpu_custom_call.1} parent=5 // pred_fallthru
        _
      %p240 = scmp.lt.s32.totalorder %s18, 2
      // Predicated region
      $region37: #{tpu_custom_call.1} parent=5 // pred_check
        %p241 = pneg %p240
      $region38: #{tpu_custom_call.1} parent=5 // pred_check_branch
        %243 = sbr.rel (%p241) target = $region40
      $region39: #{tpu_custom_call.1} parent=5 // pred_region
        // Predicated region
        $region41: #{tpu_custom_call.1} parent=39 // pred_check
          %p244 = pneg %p38
        $region42: #{tpu_custom_call.1} parent=39 // pred_check_branch
          %246 = sbr.rel (%p244) target = $region44
        $region43: #{tpu_custom_call.1} parent=39 // pred_region
          %s247 = smul.u32 8, %s18
          %p248 = scmp.lt.s32.totalorder %s247, 15
          %s249 = scalar_select %p248, %s247, 15
          %s250 = smul.addr %s249, 2
          %s251 = scalar_lea.vmem %s0, %s250
          %s252 = smul.u32 8, %s18
        $region44: #{tpu_custom_call.1} parent=39 // pred_fallthru
          _
      $region40: #{tpu_custom_call.1} parent=5 // pred_fallthru
        _
      %p253 = scmp.le.s32.totalorder 1, %s18
      %p254 = scmp.lt.s32.totalorder %s18, 3
      %p255 = pnand %p253, %p254
      %p256 = pneg %p255
      // Predicated region
      $region45: #{tpu_custom_call.1} parent=5 // pred_check
        _
      $region46: #{tpu_custom_call.1} parent=5 // pred_check_branch
        %258 = sbr.rel (%p255) target = $region48
      $region47: #{tpu_custom_call.1} parent=5 // pred_region
        %s259 = ssub.s32 %s18, 1
        // Predicated region
        $region49: #{tpu_custom_call.1} parent=47 // pred_check
          %p260 = pneg %p107
        $region50: #{tpu_custom_call.1} parent=47 // pred_check_branch
          %262 = sbr.rel (%p260) target = $region52
        $region51: #{tpu_custom_call.1} parent=47 // pred_region
          %264 = dma.done [#allocation4], 14592
        $region52: #{tpu_custom_call.1} parent=47 // pred_fallthru
          _
        %s265 = smul.u32 8, %s23
        %p266 = scmp.lt.s32.totalorder %s265, 15
        %s267 = scalar_select %p266, %s265, 15
        %s268 = smul.addr %s267, 2
        %s269 = scalar_lea.vmem %s0, %s268
        %p270 = pneg %p44
        %p271 = pneg %p41
        %p272 = pneg %p65
        %p273 = pneg %p62
        %p274 = pneg %p86
        %p275 = pneg %p83
        %p276 = pneg %p107
        %p277 = pneg %p104
        %p278 = pneg %p128
        %p279 = pneg %p125
        %p280 = pneg %p149
        %p281 = pneg %p146
        %p282 = pneg %p170
        %p283 = pneg %p167
        %p284 = pneg %p196
        %p285 = pneg %p193
        %s286 = sand.u32 %s183, 1
        %s287 = scalar_lea.sflag [#allocation5], %s286
        %s288 = sand.u32 %s183, 1
        %s289 = smul.addr %s288, 8
        %s290 = scalar_lea.vmem [#allocation6], %s289
        %s291 = smul.u32 8, %s23
        %p292 = scmp.lt.s32.totalorder %s291, 15
        %s293 = scalar_select %p292, %s291, 15
        %s294 = smul.addr %s293, 2
        %s295 = scalar_lea.vmem %s0, %s294
        %s296 = smul.u32 8, %s23
        %s297 = smul.u32 8, %s23
        %v298 = vld [vmem:[%s2] sm:$0xff]
        %v299 = vld [vmem:[%s2 + $0x8] sm:$0xff]
        %v300 = vld [vmem:[%s2 + $0x10] sm:$0xff]
        %v301 = vld [vmem:[%s2 + $0x18] sm:$0xff]
        %v302 = vld [vmem:[%s2 + $0x20] sm:$0xff]
        %v303 = vld [vmem:[%s2 + $0x28] sm:$0xff]
        %v304 = vld [vmem:[%s2 + $0x30] sm:$0xff]
        %v305 = vld [vmem:[%s2 + $0x38] sm:$0xff]
        %v306 = vld [vmem:[%s2 + $0x40] sm:$0xff]
        %v307 = vld [vmem:[%s2 + $0x48] sm:$0xff]
        %v308 = vld [vmem:[%s2 + $0x50] sm:$0xff]
        %v309 = vld [vmem:[%s2 + $0x58] sm:$0xff]
        %v310 = vld [vmem:[%s2 + $0x60] sm:$0xff]
        %v311 = vld [vmem:[%s2 + $0x68] sm:$0xff]
        %v312 = vld [vmem:[%s2 + $0x70] sm:$0xff]
        %v313 = vld [vmem:[%s2 + $0x78] sm:$0xff]
        %v314 = vld [vmem:[%s2 + $0x80] sm:$0xff]
        %v315 = vld [vmem:[%s2 + $0x88] sm:$0xff]
        %v316 = vld [vmem:[%s2 + $0x90] sm:$0x3f]
        %v317 = vld [vmem:[%s1] sm:$0xff]
        %v318 = vld [vmem:[%s1 + $0x8] sm:$0xff]
        %v319 = vld [vmem:[%s1 + $0x10] sm:$0xff]
        %v320 = vld [vmem:[%s1 + $0x18] sm:$0xff]
        %v321 = vld [vmem:[%s1 + $0x20] sm:$0xff]
        %v322 = vld [vmem:[%s1 + $0x28] sm:$0xff]
        %v323 = vld [vmem:[%s1 + $0x30] sm:$0xff]
        %v324 = vld [vmem:[%s1 + $0x38] sm:$0xff]
        %v325 = vld [vmem:[%s1 + $0x40] sm:$0xff]
        %v326 = vld [vmem:[%s1 + $0x48] sm:$0xff]
        %v327 = vld [vmem:[%s1 + $0x50] sm:$0xff]
        %v328 = vld [vmem:[%s1 + $0x58] sm:$0xff]
        %v329 = vld [vmem:[%s1 + $0x60] sm:$0xff]
        %v330 = vld [vmem:[%s1 + $0x68] sm:$0xff]
        %v331 = vld [vmem:[%s1 + $0x70] sm:$0xff]
        %v332 = vld [vmem:[%s1 + $0x78] sm:$0xff]
        %v333 = vld [vmem:[%s1 + $0x80] sm:$0xff]
        %v334 = vld [vmem:[%s1 + $0x88] sm:$0xff]
        %v335 = vld [vmem:[%s1 + $0x90] sm:$0x3f]
        %v336 = vld [vmem:[%s295] ss:$2 sm:$0xff]
        %338 = vset.pattern.permute.xlu0 0
        %339 = vperm.xlu0 %338, %v317
        %v340 = vpop.permute.xlu0 %339
        %343 = vset.pattern.permute.xlu0 0
        %344 = vperm.xlu0 %343, %v318
        %v345 = vpop.permute.xlu0 %344
        %348 = vset.pattern.permute.xlu0 0
        %349 = vperm.xlu0 %348, %v319
        %v350 = vpop.permute.xlu0 %349
        %353 = vset.pattern.permute.xlu0 0
        %354 = vperm.xlu0 %353, %v320
        %v355 = vpop.permute.xlu0 %354
        %358 = vset.pattern.permute.xlu0 0
        %359 = vperm.xlu0 %358, %v321
        %v360 = vpop.permute.xlu0 %359
        %363 = vset.pattern.permute.xlu0 0
        %364 = vperm.xlu0 %363, %v322
        %v365 = vpop.permute.xlu0 %364
        %368 = vset.pattern.permute.xlu0 0
        %369 = vperm.xlu0 %368, %v323
        %v370 = vpop.permute.xlu0 %369
        %373 = vset.pattern.permute.xlu0 0
        %374 = vperm.xlu0 %373, %v324
        %v375 = vpop.permute.xlu0 %374
        %378 = vset.pattern.permute.xlu0 0
        %379 = vperm.xlu0 %378, %v325
        %v380 = vpop.permute.xlu0 %379
        %383 = vset.pattern.permute.xlu0 0
        %384 = vperm.xlu0 %383, %v326
        %v385 = vpop.permute.xlu0 %384
        %388 = vset.pattern.permute.xlu0 0
        %389 = vperm.xlu0 %388, %v327
        %v390 = vpop.permute.xlu0 %389
        %393 = vset.pattern.permute.xlu0 0
        %394 = vperm.xlu0 %393, %v328
        %v395 = vpop.permute.xlu0 %394
        %398 = vset.pattern.permute.xlu0 0
        %399 = vperm.xlu0 %398, %v329
        %v400 = vpop.permute.xlu0 %399
        %403 = vset.pattern.permute.xlu0 0
        %404 = vperm.xlu0 %403, %v330
        %v405 = vpop.permute.xlu0 %404
        %408 = vset.pattern.permute.xlu0 0
        %409 = vperm.xlu0 %408, %v331
        %v410 = vpop.permute.xlu0 %409
        %413 = vset.pattern.permute.xlu0 0
        %414 = vperm.xlu0 %413, %v332
        %v415 = vpop.permute.xlu0 %414
        %418 = vset.pattern.permute.xlu0 0
        %419 = vperm.xlu0 %418, %v333
        %v420 = vpop.permute.xlu0 %419
        %423 = vset.pattern.permute.xlu0 0
        %424 = vperm.xlu0 %423, %v334
        %v425 = vpop.permute.xlu0 %424
        %428 = vset.pattern.permute.xlu0 0
        %429 = vperm.xlu0 %428, %v335
        %v430 = vpop.permute.xlu0 %429
        %v433 = vperm.slane %v336, 0
        %v434 = vperm.slane %v336, 1
        %v435 = vperm.slane %v336, 2
        %v436 = vperm.slane %v336, 3
        %v437 = vperm.slane %v336, 4
        %v438 = vperm.slane %v336, 5
        %v439 = vperm.slane %v336, 6
        %v440 = vperm.slane %v336, 7
        %v449 = vmul.f32 %v340, %v433
        %v450 = vmul.f32 %v340, %v434
        %v451 = vmul.f32 %v340, %v435
        %v452 = vmul.f32 %v340, %v436
        %v453 = vmul.f32 %v340, %v437
        %v454 = vmul.f32 %v340, %v438
        %v455 = vmul.f32 %v340, %v439
        %v456 = vmul.f32 %v340, %v440
        %v457 = vmul.f32 %v345, %v433
        %v458 = vmul.f32 %v345, %v434
        %v459 = vmul.f32 %v345, %v435
        %v460 = vmul.f32 %v345, %v436
        %v461 = vmul.f32 %v345, %v437
        %v462 = vmul.f32 %v345, %v438
        %v463 = vmul.f32 %v345, %v439
        %v464 = vmul.f32 %v345, %v440
        %v465 = vmul.f32 %v350, %v433
        %v466 = vmul.f32 %v350, %v434
        %v467 = vmul.f32 %v350, %v435
        %v468 = vmul.f32 %v350, %v436
        %v469 = vmul.f32 %v350, %v437
        %v470 = vmul.f32 %v350, %v438
        %v471 = vmul.f32 %v350, %v439
        %v472 = vmul.f32 %v350, %v440
        %v473 = vmul.f32 %v355, %v433
        %v474 = vmul.f32 %v355, %v434
        %v475 = vmul.f32 %v355, %v435
        %v476 = vmul.f32 %v355, %v436
        %v477 = vmul.f32 %v355, %v437
        %v478 = vmul.f32 %v355, %v438
        %v479 = vmul.f32 %v355, %v439
        %v480 = vmul.f32 %v355, %v440
        %v481 = vmul.f32 %v360, %v433
        %v482 = vmul.f32 %v360, %v434
        %v483 = vmul.f32 %v360, %v435
        %v484 = vmul.f32 %v360, %v436
        %v485 = vmul.f32 %v360, %v437
        %v486 = vmul.f32 %v360, %v438
        %v487 = vmul.f32 %v360, %v439
        %v488 = vmul.f32 %v360, %v440
        %v489 = vmul.f32 %v365, %v433
        %v490 = vmul.f32 %v365, %v434
        %v491 = vmul.f32 %v365, %v435
        %v492 = vmul.f32 %v365, %v436
        %v493 = vmul.f32 %v365, %v437
        %v494 = vmul.f32 %v365, %v438
        %v495 = vmul.f32 %v365, %v439
        %v496 = vmul.f32 %v365, %v440
        %v497 = vmul.f32 %v370, %v433
        %v498 = vmul.f32 %v370, %v434
        %v499 = vmul.f32 %v370, %v435
        %v500 = vmul.f32 %v370, %v436
        %v501 = vmul.f32 %v370, %v437
        %v502 = vmul.f32 %v370, %v438
        %v503 = vmul.f32 %v370, %v439
        %v504 = vmul.f32 %v370, %v440
        %v505 = vmul.f32 %v375, %v433
        %v506 = vmul.f32 %v375, %v434
        %v507 = vmul.f32 %v375, %v435
        %v508 = vmul.f32 %v375, %v436
        %v509 = vmul.f32 %v375, %v437
        %v510 = vmul.f32 %v375, %v438
        %v511 = vmul.f32 %v375, %v439
        %v512 = vmul.f32 %v375, %v440
        %v513 = vmul.f32 %v380, %v433
        %v514 = vmul.f32 %v380, %v434
        %v515 = vmul.f32 %v380, %v435
        %v516 = vmul.f32 %v380, %v436
        %v517 = vmul.f32 %v380, %v437
        %v518 = vmul.f32 %v380, %v438
        %v519 = vmul.f32 %v380, %v439
        %v520 = vmul.f32 %v380, %v440
        %v521 = vmul.f32 %v385, %v433
        %v522 = vmul.f32 %v385, %v434
        %v523 = vmul.f32 %v385, %v435
        %v524 = vmul.f32 %v385, %v436
        %v525 = vmul.f32 %v385, %v437
        %v526 = vmul.f32 %v385, %v438
        %v527 = vmul.f32 %v385, %v439
        %v528 = vmul.f32 %v385, %v440
        %v529 = vmul.f32 %v390, %v433
        %v530 = vmul.f32 %v390, %v434
        %v531 = vmul.f32 %v390, %v435
        %v532 = vmul.f32 %v390, %v436
        %v533 = vmul.f32 %v390, %v437
        %v534 = vmul.f32 %v390, %v438
        %v535 = vmul.f32 %v390, %v439
        %v536 = vmul.f32 %v390, %v440
        %v537 = vmul.f32 %v395, %v433
        %v538 = vmul.f32 %v395, %v434
        %v539 = vmul.f32 %v395, %v435
        %v540 = vmul.f32 %v395, %v436
        %v541 = vmul.f32 %v395, %v437
        %v542 = vmul.f32 %v395, %v438
        %v543 = vmul.f32 %v395, %v439
        %v544 = vmul.f32 %v395, %v440
        %v545 = vmul.f32 %v400, %v433
        %v546 = vmul.f32 %v400, %v434
        %v547 = vmul.f32 %v400, %v435
        %v548 = vmul.f32 %v400, %v436
        %v549 = vmul.f32 %v400, %v437
        %v550 = vmul.f32 %v400, %v438
        %v551 = vmul.f32 %v400, %v439
        %v552 = vmul.f32 %v400, %v440
        %v553 = vmul.f32 %v405, %v433
        %v554 = vmul.f32 %v405, %v434
        %v555 = vmul.f32 %v405, %v435
        %v556 = vmul.f32 %v405, %v436
        %v557 = vmul.f32 %v405, %v437
        %v558 = vmul.f32 %v405, %v438
        %v559 = vmul.f32 %v405, %v439
        %v560 = vmul.f32 %v405, %v440
        %v561 = vmul.f32 %v410, %v433
        %v562 = vmul.f32 %v410, %v434
        %v563 = vmul.f32 %v410, %v435
        %v564 = vmul.f32 %v410, %v436
        %v565 = vmul.f32 %v410, %v437
        %v566 = vmul.f32 %v410, %v438
        %v567 = vmul.f32 %v410, %v439
        %v568 = vmul.f32 %v410, %v440
        %v569 = vmul.f32 %v415, %v433
        %v570 = vmul.f32 %v415, %v434
        %v571 = vmul.f32 %v415, %v435
        %v572 = vmul.f32 %v415, %v436
        %v573 = vmul.f32 %v415, %v437
        %v574 = vmul.f32 %v415, %v438
        %v575 = vmul.f32 %v415, %v439
        %v576 = vmul.f32 %v415, %v440
        %v577 = vmul.f32 %v420, %v433
        %v578 = vmul.f32 %v420, %v434
        %v579 = vmul.f32 %v420, %v435
        %v580 = vmul.f32 %v420, %v436
        %v581 = vmul.f32 %v420, %v437
        %v582 = vmul.f32 %v420, %v438
        %v583 = vmul.f32 %v420, %v439
        %v584 = vmul.f32 %v420, %v440
        %v585 = vmul.f32 %v425, %v433
        %v586 = vmul.f32 %v425, %v434
        %v587 = vmul.f32 %v425, %v435
        %v588 = vmul.f32 %v425, %v436
        %v589 = vmul.f32 %v425, %v437
        %v590 = vmul.f32 %v425, %v438
        %v591 = vmul.f32 %v425, %v439
        %v592 = vmul.f32 %v425, %v440
        %v593 = vmul.f32 %v430, %v433
        %v594 = vmul.f32 %v430, %v434
        %v595 = vmul.f32 %v430, %v435
        %v596 = vmul.f32 %v430, %v436
        %v597 = vmul.f32 %v430, %v437
        %v598 = vmul.f32 %v430, %v438
        %v599 = vmul.f32 %v430, %v439
        %v600 = vmul.f32 %v430, %v440
        %602 = vset.pattern.permute.xlu0 0
        %603 = vperm.xlu0 %602, %v298
        %v604 = vpop.permute.xlu0 %603
        %607 = vset.pattern.permute.xlu0 0
        %608 = vperm.xlu0 %607, %v299
        %v609 = vpop.permute.xlu0 %608
        %612 = vset.pattern.permute.xlu0 0
        %613 = vperm.xlu0 %612, %v300
        %v614 = vpop.permute.xlu0 %613
        %617 = vset.pattern.permute.xlu0 0
        %618 = vperm.xlu0 %617, %v301
        %v619 = vpop.permute.xlu0 %618
        %622 = vset.pattern.permute.xlu0 0
        %623 = vperm.xlu0 %622, %v302
        %v624 = vpop.permute.xlu0 %623
        %627 = vset.pattern.permute.xlu0 0
        %628 = vperm.xlu0 %627, %v303
        %v629 = vpop.permute.xlu0 %628
        %632 = vset.pattern.permute.xlu0 0
        %633 = vperm.xlu0 %632, %v304
        %v634 = vpop.permute.xlu0 %633
        %637 = vset.pattern.permute.xlu0 0
        %638 = vperm.xlu0 %637, %v305
        %v639 = vpop.permute.xlu0 %638
        %642 = vset.pattern.permute.xlu0 0
        %643 = vperm.xlu0 %642, %v306
        %v644 = vpop.permute.xlu0 %643
        %647 = vset.pattern.permute.xlu0 0
        %648 = vperm.xlu0 %647, %v307
        %v649 = vpop.permute.xlu0 %648
        %652 = vset.pattern.permute.xlu0 0
        %653 = vperm.xlu0 %652, %v308
        %v654 = vpop.permute.xlu0 %653
        %657 = vset.pattern.permute.xlu0 0
        %658 = vperm.xlu0 %657, %v309
        %v659 = vpop.permute.xlu0 %658
        %662 = vset.pattern.permute.xlu0 0
        %663 = vperm.xlu0 %662, %v310
        %v664 = vpop.permute.xlu0 %663
        %667 = vset.pattern.permute.xlu0 0
        %668 = vperm.xlu0 %667, %v311
        %v669 = vpop.permute.xlu0 %668
        %672 = vset.pattern.permute.xlu0 0
        %673 = vperm.xlu0 %672, %v312
        %v674 = vpop.permute.xlu0 %673
        %677 = vset.pattern.permute.xlu0 0
        %678 = vperm.xlu0 %677, %v313
        %v679 = vpop.permute.xlu0 %678
        %682 = vset.pattern.permute.xlu0 0
        %683 = vperm.xlu0 %682, %v314
        %v684 = vpop.permute.xlu0 %683
        %687 = vset.pattern.permute.xlu0 0
        %688 = vperm.xlu0 %687, %v315
        %v689 = vpop.permute.xlu0 %688
        %692 = vset.pattern.permute.xlu0 0
        %693 = vperm.xlu0 %692, %v316
        %v694 = vpop.permute.xlu0 %693
        %v696 = vadd.f32 %v604, %v449
        %v697 = vadd.f32 %v604, %v450
        %v698 = vadd.f32 %v604, %v451
        %v699 = vadd.f32 %v604, %v452
        %v700 = vadd.f32 %v604, %v453
        %v701 = vadd.f32 %v604, %v454
        %v702 = vadd.f32 %v604, %v455
        %v703 = vadd.f32 %v604, %v456
        %v704 = vadd.f32 %v609, %v457
        %v705 = vadd.f32 %v609, %v458
        %v706 = vadd.f32 %v609, %v459
        %v707 = vadd.f32 %v609, %v460
        %v708 = vadd.f32 %v609, %v461
        %v709 = vadd.f32 %v609, %v462
        %v710 = vadd.f32 %v609, %v463
        %v711 = vadd.f32 %v609, %v464
        %v712 = vadd.f32 %v614, %v465
        %v713 = vadd.f32 %v614, %v466
        %v714 = vadd.f32 %v614, %v467
        %v715 = vadd.f32 %v614, %v468
        %v716 = vadd.f32 %v614, %v469
        %v717 = vadd.f32 %v614, %v470
        %v718 = vadd.f32 %v614, %v471
        %v719 = vadd.f32 %v614, %v472
        %v720 = vadd.f32 %v619, %v473
        %v721 = vadd.f32 %v619, %v474
        %v722 = vadd.f32 %v619, %v475
        %v723 = vadd.f32 %v619, %v476
        %v724 = vadd.f32 %v619, %v477
        %v725 = vadd.f32 %v619, %v478
        %v726 = vadd.f32 %v619, %v479
        %v727 = vadd.f32 %v619, %v480
        %v728 = vadd.f32 %v624, %v481
        %v729 = vadd.f32 %v624, %v482
        %v730 = vadd.f32 %v624, %v483
        %v731 = vadd.f32 %v624, %v484
        %v732 = vadd.f32 %v624, %v485
        %v733 = vadd.f32 %v624, %v486
        %v734 = vadd.f32 %v624, %v487
        %v735 = vadd.f32 %v624, %v488
        %v736 = vadd.f32 %v629, %v489
        %v737 = vadd.f32 %v629, %v490
        %v738 = vadd.f32 %v629, %v491
        %v739 = vadd.f32 %v629, %v492
        %v740 = vadd.f32 %v629, %v493
        %v741 = vadd.f32 %v629, %v494
        %v742 = vadd.f32 %v629, %v495
        %v743 = vadd.f32 %v629, %v496
        %v744 = vadd.f32 %v634, %v497
        %v745 = vadd.f32 %v634, %v498
        %v746 = vadd.f32 %v634, %v499
        %v747 = vadd.f32 %v634, %v500
        %v748 = vadd.f32 %v634, %v501
        %v749 = vadd.f32 %v634, %v502
        %v750 = vadd.f32 %v634, %v503
        %v751 = vadd.f32 %v634, %v504
        %v752 = vadd.f32 %v639, %v505
        %v753 = vadd.f32 %v639, %v506
        %v754 = vadd.f32 %v639, %v507
        %v755 = vadd.f32 %v639, %v508
        %v756 = vadd.f32 %v639, %v509
        %v757 = vadd.f32 %v639, %v510
        %v758 = vadd.f32 %v639, %v511
        %v759 = vadd.f32 %v639, %v512
        %v760 = vadd.f32 %v644, %v513
        %v761 = vadd.f32 %v644, %v514
        %v762 = vadd.f32 %v644, %v515
        %v763 = vadd.f32 %v644, %v516
        %v764 = vadd.f32 %v644, %v517
        %v765 = vadd.f32 %v644, %v518
        %v766 = vadd.f32 %v644, %v519
        %v767 = vadd.f32 %v644, %v520
        %v768 = vadd.f32 %v649, %v521
        %v769 = vadd.f32 %v649, %v522
        %v770 = vadd.f32 %v649, %v523
        %v771 = vadd.f32 %v649, %v524
        %v772 = vadd.f32 %v649, %v525
        %v773 = vadd.f32 %v649, %v526
        %v774 = vadd.f32 %v649, %v527
        %v775 = vadd.f32 %v649, %v528
        %v776 = vadd.f32 %v654, %v529
        %v777 = vadd.f32 %v654, %v530
        %v778 = vadd.f32 %v654, %v531
        %v779 = vadd.f32 %v654, %v532
        %v780 = vadd.f32 %v654, %v533
        %v781 = vadd.f32 %v654, %v534
        %v782 = vadd.f32 %v654, %v535
        %v783 = vadd.f32 %v654, %v536
        %v784 = vadd.f32 %v659, %v537
        %v785 = vadd.f32 %v659, %v538
        %v786 = vadd.f32 %v659, %v539
        %v787 = vadd.f32 %v659, %v540
        %v788 = vadd.f32 %v659, %v541
        %v789 = vadd.f32 %v659, %v542
        %v790 = vadd.f32 %v659, %v543
        %v791 = vadd.f32 %v659, %v544
        %v792 = vadd.f32 %v664, %v545
        %v793 = vadd.f32 %v664, %v546
        %v794 = vadd.f32 %v664, %v547
        %v795 = vadd.f32 %v664, %v548
        %v796 = vadd.f32 %v664, %v549
        %v797 = vadd.f32 %v664, %v550
        %v798 = vadd.f32 %v664, %v551
        %v799 = vadd.f32 %v664, %v552
        %v800 = vadd.f32 %v669, %v553
        %v801 = vadd.f32 %v669, %v554
        %v802 = vadd.f32 %v669, %v555
        %v803 = vadd.f32 %v669, %v556
        %v804 = vadd.f32 %v669, %v557
        %v805 = vadd.f32 %v669, %v558
        %v806 = vadd.f32 %v669, %v559
        %v807 = vadd.f32 %v669, %v560
        %v808 = vadd.f32 %v674, %v561
        %v809 = vadd.f32 %v674, %v562
        %v810 = vadd.f32 %v674, %v563
        %v811 = vadd.f32 %v674, %v564
        %v812 = vadd.f32 %v674, %v565
        %v813 = vadd.f32 %v674, %v566
        %v814 = vadd.f32 %v674, %v567
        %v815 = vadd.f32 %v674, %v568
        %v816 = vadd.f32 %v679, %v569
        %v817 = vadd.f32 %v679, %v570
        %v818 = vadd.f32 %v679, %v571
        %v819 = vadd.f32 %v679, %v572
        %v820 = vadd.f32 %v679, %v573
        %v821 = vadd.f32 %v679, %v574
        %v822 = vadd.f32 %v679, %v575
        %v823 = vadd.f32 %v679, %v576
        %v824 = vadd.f32 %v684, %v577
        %v825 = vadd.f32 %v684, %v578
        %v826 = vadd.f32 %v684, %v579
        %v827 = vadd.f32 %v684, %v580
        %v828 = vadd.f32 %v684, %v581
        %v829 = vadd.f32 %v684, %v582
        %v830 = vadd.f32 %v684, %v583
        %v831 = vadd.f32 %v684, %v584
        %v832 = vadd.f32 %v689, %v585
        %v833 = vadd.f32 %v689, %v586
        %v834 = vadd.f32 %v689, %v587
        %v835 = vadd.f32 %v689, %v588
        %v836 = vadd.f32 %v689, %v589
        %v837 = vadd.f32 %v689, %v590
        %v838 = vadd.f32 %v689, %v591
        %v839 = vadd.f32 %v689, %v592
        %v840 = vadd.f32 %v694, %v593
        %v841 = vadd.f32 %v694, %v594
        %v842 = vadd.f32 %v694, %v595
        %v843 = vadd.f32 %v694, %v596
        %v844 = vadd.f32 %v694, %v597
        %v845 = vadd.f32 %v694, %v598
        %v846 = vadd.f32 %v694, %v599
        %v847 = vadd.f32 %v694, %v600
        %s848 = scalar_lea.vmem %s295, 1
        %v849 = vld [vmem:[%s848] ss:$2 sm:$0xff]
        %850 = vset.pattern.permute.xlu0 1
        %851 = vperm.xlu0 %850, %v317
        %v852 = vpop.permute.xlu0 %851
        %854 = vset.pattern.permute.xlu0 1
        %855 = vperm.xlu0 %854, %v318
        %v856 = vpop.permute.xlu0 %855
        %858 = vset.pattern.permute.xlu0 1
        %859 = vperm.xlu0 %858, %v319
        %v860 = vpop.permute.xlu0 %859
        %862 = vset.pattern.permute.xlu0 1
        %863 = vperm.xlu0 %862, %v320
        %v864 = vpop.permute.xlu0 %863
        %866 = vset.pattern.permute.xlu0 1
        %867 = vperm.xlu0 %866, %v321
        %v868 = vpop.permute.xlu0 %867
        %870 = vset.pattern.permute.xlu0 1
        %871 = vperm.xlu0 %870, %v322
        %v872 = vpop.permute.xlu0 %871
        %874 = vset.pattern.permute.xlu0 1
        %875 = vperm.xlu0 %874, %v323
        %v876 = vpop.permute.xlu0 %875
        %878 = vset.pattern.permute.xlu0 1
        %879 = vperm.xlu0 %878, %v324
        %v880 = vpop.permute.xlu0 %879
        %882 = vset.pattern.permute.xlu0 1
        %883 = vperm.xlu0 %882, %v325
        %v884 = vpop.permute.xlu0 %883
        %886 = vset.pattern.permute.xlu0 1
        %887 = vperm.xlu0 %886, %v326
        %v888 = vpop.permute.xlu0 %887
        %890 = vset.pattern.permute.xlu0 1
        %891 = vperm.xlu0 %890, %v327
        %v892 = vpop.permute.xlu0 %891
        %894 = vset.pattern.permute.xlu0 1
        %895 = vperm.xlu0 %894, %v328
        %v896 = vpop.permute.xlu0 %895
        %898 = vset.pattern.permute.xlu0 1
        %899 = vperm.xlu0 %898, %v329
        %v900 = vpop.permute.xlu0 %899
        %902 = vset.pattern.permute.xlu0 1
        %903 = vperm.xlu0 %902, %v330
        %v904 = vpop.permute.xlu0 %903
        %906 = vset.pattern.permute.xlu0 1
        %907 = vperm.xlu0 %906, %v331
        %v908 = vpop.permute.xlu0 %907
        %910 = vset.pattern.permute.xlu0 1
        %911 = vperm.xlu0 %910, %v332
        %v912 = vpop.permute.xlu0 %911
        %914 = vset.pattern.permute.xlu0 1
        %915 = vperm.xlu0 %914, %v333
        %v916 = vpop.permute.xlu0 %915
        %918 = vset.pattern.permute.xlu0 1
        %919 = vperm.xlu0 %918, %v334
        %v920 = vpop.permute.xlu0 %919
        %922 = vset.pattern.permute.xlu0 1
        %923 = vperm.xlu0 %922, %v335
        %v924 = vpop.permute.xlu0 %923
        %v927 = vperm.slane %v849, 0
        %v928 = vperm.slane %v849, 1
        %v929 = vperm.slane %v849, 2
        %v930 = vperm.slane %v849, 3
        %v931 = vperm.slane %v849, 4
        %v932 = vperm.slane %v849, 5
        %v933 = vperm.slane %v849, 6
        %v934 = vperm.slane %v849, 7
        %v943 = vmul.f32 %v852, %v927
        %v944 = vmul.f32 %v852, %v928
        %v945 = vmul.f32 %v852, %v929
        %v946 = vmul.f32 %v852, %v930
        %v947 = vmul.f32 %v852, %v931
        %v948 = vmul.f32 %v852, %v932
        %v949 = vmul.f32 %v852, %v933
        %v950 = vmul.f32 %v852, %v934
        %v951 = vmul.f32 %v856, %v927
        %v952 = vmul.f32 %v856, %v928
        %v953 = vmul.f32 %v856, %v929
        %v954 = vmul.f32 %v856, %v930
        %v955 = vmul.f32 %v856, %v931
        %v956 = vmul.f32 %v856, %v932
        %v957 = vmul.f32 %v856, %v933
        %v958 = vmul.f32 %v856, %v934
        %v959 = vmul.f32 %v860, %v927
        %v960 = vmul.f32 %v860, %v928
        %v961 = vmul.f32 %v860, %v929
        %v962 = vmul.f32 %v860, %v930
        %v963 = vmul.f32 %v860, %v931
        %v964 = vmul.f32 %v860, %v932
        %v965 = vmul.f32 %v860, %v933
        %v966 = vmul.f32 %v860, %v934
        %v967 = vmul.f32 %v864, %v927
        %v968 = vmul.f32 %v864, %v928
        %v969 = vmul.f32 %v864, %v929
        %v970 = vmul.f32 %v864, %v930
        %v971 = vmul.f32 %v864, %v931
        %v972 = vmul.f32 %v864, %v932
        %v973 = vmul.f32 %v864, %v933
        %v974 = vmul.f32 %v864, %v934
        %v975 = vmul.f32 %v868, %v927
        %v976 = vmul.f32 %v868, %v928
        %v977 = vmul.f32 %v868, %v929
        %v978 = vmul.f32 %v868, %v930
        %v979 = vmul.f32 %v868, %v931
        %v980 = vmul.f32 %v868, %v932
        %v981 = vmul.f32 %v868, %v933
        %v982 = vmul.f32 %v868, %v934
        %v983 = vmul.f32 %v872, %v927
        %v984 = vmul.f32 %v872, %v928
        %v985 = vmul.f32 %v872, %v929
        %v986 = vmul.f32 %v872, %v930
        %v987 = vmul.f32 %v872, %v931
        %v988 = vmul.f32 %v872, %v932
        %v989 = vmul.f32 %v872, %v933
        %v990 = vmul.f32 %v872, %v934
        %v991 = vmul.f32 %v876, %v927
        %v992 = vmul.f32 %v876, %v928
        %v993 = vmul.f32 %v876, %v929
        %v994 = vmul.f32 %v876, %v930
        %v995 = vmul.f32 %v876, %v931
        %v996 = vmul.f32 %v876, %v932
        %v997 = vmul.f32 %v876, %v933
        %v998 = vmul.f32 %v876, %v934
        %v999 = vmul.f32 %v880, %v927
        %v1000 = vmul.f32 %v880, %v928
        %v1001 = vmul.f32 %v880, %v929
        %v1002 = vmul.f32 %v880, %v930
        %v1003 = vmul.f32 %v880, %v931
        %v1004 = vmul.f32 %v880, %v932
        %v1005 = vmul.f32 %v880, %v933
        %v1006 = vmul.f32 %v880, %v934
        %v1007 = vmul.f32 %v884, %v927
        %v1008 = vmul.f32 %v884, %v928
        %v1009 = vmul.f32 %v884, %v929
        %v1010 = vmul.f32 %v884, %v930
        %v1011 = vmul.f32 %v884, %v931
        %v1012 = vmul.f32 %v884, %v932
        %v1013 = vmul.f32 %v884, %v933
        %v1014 = vmul.f32 %v884, %v934
        %v1015 = vmul.f32 %v888, %v927
        %v1016 = vmul.f32 %v888, %v928
        %v1017 = vmul.f32 %v888, %v929
        %v1018 = vmul.f32 %v888, %v930
        %v1019 = vmul.f32 %v888, %v931
        %v1020 = vmul.f32 %v888, %v932
        %v1021 = vmul.f32 %v888, %v933
        %v1022 = vmul.f32 %v888, %v934
        %v1023 = vmul.f32 %v892, %v927
        %v1024 = vmul.f32 %v892, %v928
        %v1025 = vmul.f32 %v892, %v929
        %v1026 = vmul.f32 %v892, %v930
        %v1027 = vmul.f32 %v892, %v931
        %v1028 = vmul.f32 %v892, %v932
        %v1029 = vmul.f32 %v892, %v933
        %v1030 = vmul.f32 %v892, %v934
        %v1031 = vmul.f32 %v896, %v927
        %v1032 = vmul.f32 %v896, %v928
        %v1033 = vmul.f32 %v896, %v929
        %v1034 = vmul.f32 %v896, %v930
        %v1035 = vmul.f32 %v896, %v931
        %v1036 = vmul.f32 %v896, %v932
        %v1037 = vmul.f32 %v896, %v933
        %v1038 = vmul.f32 %v896, %v934
        %v1039 = vmul.f32 %v900, %v927
        %v1040 = vmul.f32 %v900, %v928
        %v1041 = vmul.f32 %v900, %v929
        %v1042 = vmul.f32 %v900, %v930
        %v1043 = vmul.f32 %v900, %v931
        %v1044 = vmul.f32 %v900, %v932
        %v1045 = vmul.f32 %v900, %v933
        %v1046 = vmul.f32 %v900, %v934
        %v1047 = vmul.f32 %v904, %v927
        %v1048 = vmul.f32 %v904, %v928
        %v1049 = vmul.f32 %v904, %v929
        %v1050 = vmul.f32 %v904, %v930
        %v1051 = vmul.f32 %v904, %v931
        %v1052 = vmul.f32 %v904, %v932
        %v1053 = vmul.f32 %v904, %v933
        %v1054 = vmul.f32 %v904, %v934
        %v1055 = vmul.f32 %v908, %v927
        %v1056 = vmul.f32 %v908, %v928
        %v1057 = vmul.f32 %v908, %v929
        %v1058 = vmul.f32 %v908, %v930
        %v1059 = vmul.f32 %v908, %v931
        %v1060 = vmul.f32 %v908, %v932
        %v1061 = vmul.f32 %v908, %v933
        %v1062 = vmul.f32 %v908, %v934
        %v1063 = vmul.f32 %v912, %v927
        %v1064 = vmul.f32 %v912, %v928
        %v1065 = vmul.f32 %v912, %v929
        %v1066 = vmul.f32 %v912, %v930
        %v1067 = vmul.f32 %v912, %v931
        %v1068 = vmul.f32 %v912, %v932
        %v1069 = vmul.f32 %v912, %v933
        %v1070 = vmul.f32 %v912, %v934
        %v1071 = vmul.f32 %v916, %v927
        %v1072 = vmul.f32 %v916, %v928
        %v1073 = vmul.f32 %v916, %v929
        %v1074 = vmul.f32 %v916, %v930
        %v1075 = vmul.f32 %v916, %v931
        %v1076 = vmul.f32 %v916, %v932
        %v1077 = vmul.f32 %v916, %v933
        %v1078 = vmul.f32 %v916, %v934
        %v1079 = vmul.f32 %v920, %v927
        %v1080 = vmul.f32 %v920, %v928
        %v1081 = vmul.f32 %v920, %v929
        %v1082 = vmul.f32 %v920, %v930
        %v1083 = vmul.f32 %v920, %v931
        %v1084 = vmul.f32 %v920, %v932
        %v1085 = vmul.f32 %v920, %v933
        %v1086 = vmul.f32 %v920, %v934
        %v1087 = vmul.f32 %v924, %v927
        %v1088 = vmul.f32 %v924, %v928
        %v1089 = vmul.f32 %v924, %v929
        %v1090 = vmul.f32 %v924, %v930
        %v1091 = vmul.f32 %v924, %v931
        %v1092 = vmul.f32 %v924, %v932
        %v1093 = vmul.f32 %v924, %v933
        %v1094 = vmul.f32 %v924, %v934
        %v1095 = vadd.f32 %v696, %v943
        %v1096 = vadd.f32 %v697, %v944
        %v1097 = vadd.f32 %v698, %v945
        %v1098 = vadd.f32 %v699, %v946
        %v1099 = vadd.f32 %v700, %v947
        %v1100 = vadd.f32 %v701, %v948
        %v1101 = vadd.f32 %v702, %v949
        %v1102 = vadd.f32 %v703, %v950
        %v1103 = vadd.f32 %v704, %v951
        %v1104 = vadd.f32 %v705, %v952
        %v1105 = vadd.f32 %v706, %v953
        %v1106 = vadd.f32 %v707, %v954
        %v1107 = vadd.f32 %v708, %v955
        %v1108 = vadd.f32 %v709, %v956
        %v1109 = vadd.f32 %v710, %v957
        %v1110 = vadd.f32 %v711, %v958
        %v1111 = vadd.f32 %v712, %v959
        %v1112 = vadd.f32 %v713, %v960
        %v1113 = vadd.f32 %v714, %v961
        %v1114 = vadd.f32 %v715, %v962
        %v1115 = vadd.f32 %v716, %v963
        %v1116 = vadd.f32 %v717, %v964
        %v1117 = vadd.f32 %v718, %v965
        %v1118 = vadd.f32 %v719, %v966
        %v1119 = vadd.f32 %v720, %v967
        %v1120 = vadd.f32 %v721, %v968
        %v1121 = vadd.f32 %v722, %v969
        %v1122 = vadd.f32 %v723, %v970
        %v1123 = vadd.f32 %v724, %v971
        %v1124 = vadd.f32 %v725, %v972
        %v1125 = vadd.f32 %v726, %v973
        %v1126 = vadd.f32 %v727, %v974
        %v1127 = vadd.f32 %v728, %v975
        %v1128 = vadd.f32 %v729, %v976
        %v1129 = vadd.f32 %v730, %v977
        %v1130 = vadd.f32 %v731, %v978
        %v1131 = vadd.f32 %v732, %v979
        %v1132 = vadd.f32 %v733, %v980
        %v1133 = vadd.f32 %v734, %v981
        %v1134 = vadd.f32 %v735, %v982
        %v1135 = vadd.f32 %v736, %v983
        %v1136 = vadd.f32 %v737, %v984
        %v1137 = vadd.f32 %v738, %v985
        %v1138 = vadd.f32 %v739, %v986
        %v1139 = vadd.f32 %v740, %v987
        %v1140 = vadd.f32 %v741, %v988
        %v1141 = vadd.f32 %v742, %v989
        %v1142 = vadd.f32 %v743, %v990
        %v1143 = vadd.f32 %v744, %v991
        %v1144 = vadd.f32 %v745, %v992
        %v1145 = vadd.f32 %v746, %v993
        %v1146 = vadd.f32 %v747, %v994
        %v1147 = vadd.f32 %v748, %v995
        %v1148 = vadd.f32 %v749, %v996
        %v1149 = vadd.f32 %v750, %v997
        %v1150 = vadd.f32 %v751, %v998
        %v1151 = vadd.f32 %v752, %v999
        %v1152 = vadd.f32 %v753, %v1000
        %v1153 = vadd.f32 %v754, %v1001
        %v1154 = vadd.f32 %v755, %v1002
        %v1155 = vadd.f32 %v756, %v1003
        %v1156 = vadd.f32 %v757, %v1004
        %v1157 = vadd.f32 %v758, %v1005
        %v1158 = vadd.f32 %v759, %v1006
        %v1159 = vadd.f32 %v760, %v1007
        %v1160 = vadd.f32 %v761, %v1008
        %v1161 = vadd.f32 %v762, %v1009
        %v1162 = vadd.f32 %v763, %v1010
        %v1163 = vadd.f32 %v764, %v1011
        %v1164 = vadd.f32 %v765, %v1012
        %v1165 = vadd.f32 %v766, %v1013
        %v1166 = vadd.f32 %v767, %v1014
        %v1167 = vadd.f32 %v768, %v1015
        %v1168 = vadd.f32 %v769, %v1016
        %v1169 = vadd.f32 %v770, %v1017
        %v1170 = vadd.f32 %v771, %v1018
        %v1171 = vadd.f32 %v772, %v1019
        %v1172 = vadd.f32 %v773, %v1020
        %v1173 = vadd.f32 %v774, %v1021
        %v1174 = vadd.f32 %v775, %v1022
        %v1175 = vadd.f32 %v776, %v1023
        %v1176 = vadd.f32 %v777, %v1024
        %v1177 = vadd.f32 %v778, %v1025
        %v1178 = vadd.f32 %v779, %v1026
        %v1179 = vadd.f32 %v780, %v1027
        %v1180 = vadd.f32 %v781, %v1028
        %v1181 = vadd.f32 %v782, %v1029
        %v1182 = vadd.f32 %v783, %v1030
        %v1183 = vadd.f32 %v784, %v1031
        %v1184 = vadd.f32 %v785, %v1032
        %v1185 = vadd.f32 %v786, %v1033
        %v1186 = vadd.f32 %v787, %v1034
        %v1187 = vadd.f32 %v788, %v1035
        %v1188 = vadd.f32 %v789, %v1036
        %v1189 = vadd.f32 %v790, %v1037
        %v1190 = vadd.f32 %v791, %v1038
        %v1191 = vadd.f32 %v792, %v1039
        %v1192 = vadd.f32 %v793, %v1040
        %v1193 = vadd.f32 %v794, %v1041
        %v1194 = vadd.f32 %v795, %v1042
        %v1195 = vadd.f32 %v796, %v1043
        %v1196 = vadd.f32 %v797, %v1044
        %v1197 = vadd.f32 %v798, %v1045
        %v1198 = vadd.f32 %v799, %v1046
        %v1199 = vadd.f32 %v800, %v1047
        %v1200 = vadd.f32 %v801, %v1048
        %v1201 = vadd.f32 %v802, %v1049
        %v1202 = vadd.f32 %v803, %v1050
        %v1203 = vadd.f32 %v804, %v1051
        %v1204 = vadd.f32 %v805, %v1052
        %v1205 = vadd.f32 %v806, %v1053
        %v1206 = vadd.f32 %v807, %v1054
        %v1207 = vadd.f32 %v808, %v1055
        %v1208 = vadd.f32 %v809, %v1056
        %v1209 = vadd.f32 %v810, %v1057
        %v1210 = vadd.f32 %v811, %v1058
        %v1211 = vadd.f32 %v812, %v1059
        %v1212 = vadd.f32 %v813, %v1060
        %v1213 = vadd.f32 %v814, %v1061
        %v1214 = vadd.f32 %v815, %v1062
        %v1215 = vadd.f32 %v816, %v1063
        %v1216 = vadd.f32 %v817, %v1064
        %v1217 = vadd.f32 %v818, %v1065
        %v1218 = vadd.f32 %v819, %v1066
        %v1219 = vadd.f32 %v820, %v1067
        %v1220 = vadd.f32 %v821, %v1068
        %v1221 = vadd.f32 %v822, %v1069
        %v1222 = vadd.f32 %v823, %v1070
        %v1223 = vadd.f32 %v824, %v1071
        %v1224 = vadd.f32 %v825, %v1072
        %v1225 = vadd.f32 %v826, %v1073
        %v1226 = vadd.f32 %v827, %v1074
        %v1227 = vadd.f32 %v828, %v1075
        %v1228 = vadd.f32 %v829, %v1076
        %v1229 = vadd.f32 %v830, %v1077
        %v1230 = vadd.f32 %v831, %v1078
        %v1231 = vadd.f32 %v832, %v1079
        %v1232 = vadd.f32 %v833, %v1080
        %v1233 = vadd.f32 %v834, %v1081
        %v1234 = vadd.f32 %v835, %v1082
        %v1235 = vadd.f32 %v836, %v1083
        %v1236 = vadd.f32 %v837, %v1084
        %v1237 = vadd.f32 %v838, %v1085
        %v1238 = vadd.f32 %v839, %v1086
        %v1239 = vadd.f32 %v840, %v1087
        %v1240 = vadd.f32 %v841, %v1088
        %v1241 = vadd.f32 %v842, %v1089
        %v1242 = vadd.f32 %v843, %v1090
        %v1243 = vadd.f32 %v844, %v1091
        %v1244 = vadd.f32 %v845, %v1092
        %v1245 = vadd.f32 %v846, %v1093
        %v1246 = vadd.f32 %v847, %v1094
        %v1247 = vtanh.pop %v1095
        %v1248 = vtanh.pop %v1096
        %v1249 = vtanh.pop %v1097
        %v1250 = vtanh.pop %v1098
        %v1251 = vtanh.pop %v1099
        %v1252 = vtanh.pop %v1100
        %v1253 = vtanh.pop %v1101
        %v1254 = vtanh.pop %v1102
        %v1255 = vtanh.pop %v1103
        %v1256 = vtanh.pop %v1104
        %v1257 = vtanh.pop %v1105
        %v1258 = vtanh.pop %v1106
        %v1259 = vtanh.pop %v1107
        %v1260 = vtanh.pop %v1108
        %v1261 = vtanh.pop %v1109
        %v1262 = vtanh.pop %v1110
        %v1263 = vtanh.pop %v1111
        %v1264 = vtanh.pop %v1112
        %v1265 = vtanh.pop %v1113
        %v1266 = vtanh.pop %v1114
        %v1267 = vtanh.pop %v1115
        %v1268 = vtanh.pop %v1116
        %v1269 = vtanh.pop %v1117
        %v1270 = vtanh.pop %v1118
        %v1271 = vtanh.pop %v1119
        %v1272 = vtanh.pop %v1120
        %v1273 = vtanh.pop %v1121
        %v1274 = vtanh.pop %v1122
        %v1275 = vtanh.pop %v1123
        %v1276 = vtanh.pop %v1124
        %v1277 = vtanh.pop %v1125
        %v1278 = vtanh.pop %v1126
        %v1279 = vtanh.pop %v1127
        %v1280 = vtanh.pop %v1128
        %v1281 = vtanh.pop %v1129
        %v1282 = vtanh.pop %v1130
        %v1283 = vtanh.pop %v1131
        %v1284 = vtanh.pop %v1132
        %v1285 = vtanh.pop %v1133
        %v1286 = vtanh.pop %v1134
        %v1287 = vtanh.pop %v1135
        %v1288 = vtanh.pop %v1136
        %v1289 = vtanh.pop %v1137
        %v1290 = vtanh.pop %v1138
        %v1291 = vtanh.pop %v1139
        %v1292 = vtanh.pop %v1140
        %v1293 = vtanh.pop %v1141
        %v1294 = vtanh.pop %v1142
        %v1295 = vtanh.pop %v1143
        %v1296 = vtanh.pop %v1144
        %v1297 = vtanh.pop %v1145
        %v1298 = vtanh.pop %v1146
        %v1299 = vtanh.pop %v1147
        %v1300 = vtanh.pop %v1148
        %v1301 = vtanh.pop %v1149
        %v1302 = vtanh.pop %v1150
        %v1303 = vtanh.pop %v1151
        %v1304 = vtanh.pop %v1152
        %v1305 = vtanh.pop %v1153
        %v1306 = vtanh.pop %v1154
        %v1307 = vtanh.pop %v1155
        %v1308 = vtanh.pop %v1156
        %v1309 = vtanh.pop %v1157
        %v1310 = vtanh.pop %v1158
        %v1311 = vtanh.pop %v1159
        %v1312 = vtanh.pop %v1160
        %v1313 = vtanh.pop %v1161
        %v1314 = vtanh.pop %v1162
        %v1315 = vtanh.pop %v1163
        %v1316 = vtanh.pop %v1164
        %v1317 = vtanh.pop %v1165
        %v1318 = vtanh.pop %v1166
        %v1319 = vtanh.pop %v1167
        %v1320 = vtanh.pop %v1168
        %v1321 = vtanh.pop %v1169
        %v1322 = vtanh.pop %v1170
        %v1323 = vtanh.pop %v1171
        %v1324 = vtanh.pop %v1172
        %v1325 = vtanh.pop %v1173
        %v1326 = vtanh.pop %v1174
        %v1327 = vtanh.pop %v1175
        %v1328 = vtanh.pop %v1176
        %v1329 = vtanh.pop %v1177
        %v1330 = vtanh.pop %v1178
        %v1331 = vtanh.pop %v1179
        %v1332 = vtanh.pop %v1180
        %v1333 = vtanh.pop %v1181
        %v1334 = vtanh.pop %v1182
        %v1335 = vtanh.pop %v1183
        %v1336 = vtanh.pop %v1184
        %v1337 = vtanh.pop %v1185
        %v1338 = vtanh.pop %v1186
        %v1339 = vtanh.pop %v1187
        %v1340 = vtanh.pop %v1188
        %v1341 = vtanh.pop %v1189
        %v1342 = vtanh.pop %v1190
        %v1343 = vtanh.pop %v1191
        %v1344 = vtanh.pop %v1192
        %v1345 = vtanh.pop %v1193
        %v1346 = vtanh.pop %v1194
        %v1347 = vtanh.pop %v1195
        %v1348 = vtanh.pop %v1196
        %v1349 = vtanh.pop %v1197
        %v1350 = vtanh.pop %v1198
        %v1351 = vtanh.pop %v1199
        %v1352 = vtanh.pop %v1200
        %v1353 = vtanh.pop %v1201
        %v1354 = vtanh.pop %v1202
        %v1355 = vtanh.pop %v1203
        %v1356 = vtanh.pop %v1204
        %v1357 = vtanh.pop %v1205
        %v1358 = vtanh.pop %v1206
        %v1359 = vtanh.pop %v1207
        %v1360 = vtanh.pop %v1208
        %v1361 = vtanh.pop %v1209
        %v1362 = vtanh.pop %v1210
        %v1363 = vtanh.pop %v1211
        %v1364 = vtanh.pop %v1212
        %v1365 = vtanh.pop %v1213
        %v1366 = vtanh.pop %v1214
        %v1367 = vtanh.pop %v1215
        %v1368 = vtanh.pop %v1216
        %v1369 = vtanh.pop %v1217
        %v1370 = vtanh.pop %v1218
        %v1371 = vtanh.pop %v1219
        %v1372 = vtanh.pop %v1220
        %v1373 = vtanh.pop %v1221
        %v1374 = vtanh.pop %v1222
        %v1375 = vtanh.pop %v1223
        %v1376 = vtanh.pop %v1224
        %v1377 = vtanh.pop %v1225
        %v1378 = vtanh.pop %v1226
        %v1379 = vtanh.pop %v1227
        %v1380 = vtanh.pop %v1228
        %v1381 = vtanh.pop %v1229
        %v1382 = vtanh.pop %v1230
        %v1383 = vtanh.pop %v1231
        %v1384 = vtanh.pop %v1232
        %v1385 = vtanh.pop %v1233
        %v1386 = vtanh.pop %v1234
        %v1387 = vtanh.pop %v1235
        %v1388 = vtanh.pop %v1236
        %v1389 = vtanh.pop %v1237
        %v1390 = vtanh.pop %v1238
        %v1391 = vtanh.pop %v1239
        %v1392 = vtanh.pop %v1240
        %v1393 = vtanh.pop %v1241
        %v1394 = vtanh.pop %v1242
        %v1395 = vtanh.pop %v1243
        %v1396 = vtanh.pop %v1244
        %v1397 = vtanh.pop %v1245
        %v1398 = vtanh.pop %v1246
        %v1399 = vld [vmem:[#allocation3] sm:$0xff]
        %v1400 = vld [vmem:[#allocation3 + $0x8] sm:$0xff]
        %v1401 = vld [vmem:[#allocation3 + $0x10] sm:$0xff]
        %v1402 = vld [vmem:[#allocation3 + $0x18] sm:$0xff]
        %v1403 = vld [vmem:[#allocation3 + $0x20] sm:$0xff]
        %v1404 = vld [vmem:[#allocation3 + $0x28] sm:$0xff]
        %v1405 = vld [vmem:[#allocation3 + $0x30] sm:$0xff]
        %v1406 = vld [vmem:[#allocation3 + $0x38] sm:$0xff]
        %v1407 = vld [vmem:[#allocation3 + $0x40] sm:$0xff]
        %v1408 = vld [vmem:[#allocation3 + $0x48] sm:$0xff]
        %v1409 = vld [vmem:[#allocation3 + $0x50] sm:$0xff]
        %v1410 = vld [vmem:[#allocation3 + $0x58] sm:$0xff]
        %v1411 = vld [vmem:[#allocation3 + $0x60] sm:$0xff]
        %v1412 = vld [vmem:[#allocation3 + $0x68] sm:$0xff]
        %v1413 = vld [vmem:[#allocation3 + $0x70] sm:$0xff]
        %v1414 = vld [vmem:[#allocation3 + $0x78] sm:$0xff]
        %v1415 = vld [vmem:[#allocation3 + $0x80] sm:$0xff]
        %v1416 = vld [vmem:[#allocation3 + $0x88] sm:$0xff]
        %v1417 = vld [vmem:[#allocation3 + $0x90] sm:$0xff]
        %v1418 = vld [vmem:[#allocation3 + $0x98] sm:$0xff]
        %v1419 = vld [vmem:[#allocation3 + $0xa0] sm:$0xff]
        %v1420 = vld [vmem:[#allocation3 + $0xa8] sm:$0xff]
        %v1421 = vld [vmem:[#allocation3 + $0xb0] sm:$0xff]
        %v1422 = vld [vmem:[#allocation3 + $0xb8] sm:$0xff]
        %v1423 = vld [vmem:[#allocation3 + $0xc0] sm:$0xff]
        %v1424 = vld [vmem:[#allocation3 + $0xc8] sm:$0xff]
        %v1425 = vld [vmem:[#allocation3 + $0xd0] sm:$0xff]
        %v1426 = vld [vmem:[#allocation3 + $0xd8] sm:$0xff]
        %v1427 = vld [vmem:[#allocation3 + $0xe0] sm:$0xff]
        %v1428 = vld [vmem:[#allocation3 + $0xe8] sm:$0xff]
        %v1429 = vld [vmem:[#allocation3 + $0xf0] sm:$0xff]
        %v1430 = vld [vmem:[#allocation3 + $0xf8] sm:$0xff]
        %v1431 = vld [vmem:[#allocation3 + $0x100] sm:$0xff]
        %v1432 = vld [vmem:[#allocation3 + $0x108] sm:$0xff]
        %v1433 = vld [vmem:[#allocation3 + $0x110] sm:$0xff]
        %v1434 = vld [vmem:[#allocation3 + $0x118] sm:$0xff]
        %v1435 = vld [vmem:[#allocation3 + $0x120] sm:$0x3f]
        %v1436 = vld [vmem:[#allocation3 + $0x128] sm:$0x3f]
        %v1437 = vld [vmem:[%s4] sm:$0xff]
        %v1438 = vld [vmem:[%s4 + $0x8] sm:$0xff]
        %v1439 = vld [vmem:[%s4 + $0x10] sm:$0xff]
        %v1440 = vld [vmem:[%s4 + $0x18] sm:$0xff]
        %v1441 = vld [vmem:[%s4 + $0x20] sm:$0xff]
        %v1442 = vld [vmem:[%s4 + $0x28] sm:$0xff]
        %v1443 = vld [vmem:[%s4 + $0x30] sm:$0xff]
        %v1444 = vld [vmem:[%s4 + $0x38] sm:$0xff]
        %v1445 = vld [vmem:[%s4 + $0x40] sm:$0xff]
        %v1446 = vld [vmem:[%s4 + $0x48] sm:$0xff]
        %v1447 = vld [vmem:[%s4 + $0x50] sm:$0xff]
        %v1448 = vld [vmem:[%s4 + $0x58] sm:$0xff]
        %v1449 = vld [vmem:[%s4 + $0x60] sm:$0xff]
        %v1450 = vld [vmem:[%s4 + $0x68] sm:$0xff]
        %v1451 = vld [vmem:[%s4 + $0x70] sm:$0xff]
        %v1452 = vld [vmem:[%s4 + $0x78] sm:$0xff]
        %v1453 = vld [vmem:[%s4 + $0x80] sm:$0xff]
        %v1454 = vld [vmem:[%s4 + $0x88] sm:$0xff]
        %v1455 = vld [vmem:[%s4 + $0x90] sm:$0x3f]
        %1457 = vset.pattern.permute.xlu0 0
        %1458 = vperm.xlu0 %1457, %v1437
        %v1459 = vpop.permute.xlu0 %1458
        %1462 = vset.pattern.permute.xlu0 0
        %1463 = vperm.xlu0 %1462, %v1438
        %v1464 = vpop.permute.xlu0 %1463
        %1467 = vset.pattern.permute.xlu0 0
        %1468 = vperm.xlu0 %1467, %v1439
        %v1469 = vpop.permute.xlu0 %1468
        %1472 = vset.pattern.permute.xlu0 0
        %1473 = vperm.xlu0 %1472, %v1440
        %v1474 = vpop.permute.xlu0 %1473
        %1477 = vset.pattern.permute.xlu0 0
        %1478 = vperm.xlu0 %1477, %v1441
        %v1479 = vpop.permute.xlu0 %1478
        %1482 = vset.pattern.permute.xlu0 0
        %1483 = vperm.xlu0 %1482, %v1442
        %v1484 = vpop.permute.xlu0 %1483
        %1487 = vset.pattern.permute.xlu0 0
        %1488 = vperm.xlu0 %1487, %v1443
        %v1489 = vpop.permute.xlu0 %1488
        %1492 = vset.pattern.permute.xlu0 0
        %1493 = vperm.xlu0 %1492, %v1444
        %v1494 = vpop.permute.xlu0 %1493
        %1497 = vset.pattern.permute.xlu0 0
        %1498 = vperm.xlu0 %1497, %v1445
        %v1499 = vpop.permute.xlu0 %1498
        %1502 = vset.pattern.permute.xlu0 0
        %1503 = vperm.xlu0 %1502, %v1446
        %v1504 = vpop.permute.xlu0 %1503
        %1507 = vset.pattern.permute.xlu0 0
        %1508 = vperm.xlu0 %1507, %v1447
        %v1509 = vpop.permute.xlu0 %1508
        %1512 = vset.pattern.permute.xlu0 0
        %1513 = vperm.xlu0 %1512, %v1448
        %v1514 = vpop.permute.xlu0 %1513
        %1517 = vset.pattern.permute.xlu0 0
        %1518 = vperm.xlu0 %1517, %v1449
        %v1519 = vpop.permute.xlu0 %1518
        %1522 = vset.pattern.permute.xlu0 0
        %1523 = vperm.xlu0 %1522, %v1450
        %v1524 = vpop.permute.xlu0 %1523
        %1527 = vset.pattern.permute.xlu0 0
        %1528 = vperm.xlu0 %1527, %v1451
        %v1529 = vpop.permute.xlu0 %1528
        %1532 = vset.pattern.permute.xlu0 0
        %1533 = vperm.xlu0 %1532, %v1452
        %v1534 = vpop.permute.xlu0 %1533
        %1537 = vset.pattern.permute.xlu0 0
        %1538 = vperm.xlu0 %1537, %v1453
        %v1539 = vpop.permute.xlu0 %1538
        %1542 = vset.pattern.permute.xlu0 0
        %1543 = vperm.xlu0 %1542, %v1454
        %v1544 = vpop.permute.xlu0 %1543
        %1547 = vset.pattern.permute.xlu0 0
        %1548 = vperm.xlu0 %1547, %v1455
        %v1549 = vpop.permute.xlu0 %1548
        %vm1551 = vcmask 179200
        %v1553 = vsel %vm1551, %v1400, 0
        %v1556 = vsel %vm1551, %v1402, 0
        %v1559 = vsel %vm1551, %v1404, 0
        %v1562 = vsel %vm1551, %v1406, 0
        %v1565 = vsel %vm1551, %v1408, 0
        %v1568 = vsel %vm1551, %v1410, 0
        %v1571 = vsel %vm1551, %v1412, 0
        %v1574 = vsel %vm1551, %v1414, 0
        %v1577 = vsel %vm1551, %v1416, 0
        %v1580 = vsel %vm1551, %v1418, 0
        %v1583 = vsel %vm1551, %v1420, 0
        %v1586 = vsel %vm1551, %v1422, 0
        %v1589 = vsel %vm1551, %v1424, 0
        %v1592 = vsel %vm1551, %v1426, 0
        %v1595 = vsel %vm1551, %v1428, 0
        %v1598 = vsel %vm1551, %v1430, 0
        %v1601 = vsel %vm1551, %v1432, 0
        %v1604 = vsel %vm1551, %v1434, 0
        %v1607 = vsel %vm1551, %v1436, 0
        %vm1609 = vcmask 1045504
        %v1611 = vsel %vm1609, %v1391, 0
        %v1614 = vsel %vm1609, %v1392, 0
        %v1617 = vsel %vm1609, %v1393, 0
        %v1620 = vsel %vm1609, %v1394, 0
        %v1623 = vsel %vm1609, %v1395, 0
        %v1626 = vsel %vm1609, %v1396, 0
        %v1629 = vsel %vm1609, %v1397, 0
        %v1632 = vsel %vm1609, %v1398, 0
        %1634 = vmatpush.msra.mxu0 %v1367
        %1635 = vmatpush.msra.mxu0 %v1359
        %1636 = vmatpush.msra.mxu0 %v1351
        %1637 = vmatpush.msra.mxu0 %v1343
        %1638 = vmatpush.msra.mxu0 %v1335
        %1639 = vmatpush.msra.mxu0 %v1327
        %1640 = vmatpush.msra.mxu0 %v1319
        %1641 = vmatpush.msra.mxu0 %v1311
        %1642 = vmatpush.msra.mxu0 %v1303
        %1643 = vmatpush.msra.mxu0 %v1295
        %1644 = vmatpush.msra.mxu0 %v1287
        %1645 = vmatpush.msra.mxu0 %v1279
        %1646 = vmatpush.msra.mxu0 %v1271
        %1647 = vmatpush.msra.mxu0 %v1263
        %1648 = vmatpush.msra.mxu0 %v1255
        %1649 = vmatpush.msra.mxu0 %v1247
        %1650 = vmatmul.f32.gmra.mxu0 %v1399
        %v1651 = vpop.f32.mrf.mxu0
        %v1652 = vadd.f32 %v1459, %v1651
        %1653 = vmatmul.f32.gmra.mxu0 %v1401
        %v1654 = vpop.f32.mrf.mxu0
        %v1655 = vadd.f32 %v1464, %v1654
        %1656 = vmatmul.f32.gmra.mxu0 %v1403
        %v1657 = vpop.f32.mrf.mxu0
        %v1658 = vadd.f32 %v1469, %v1657
        %1659 = vmatmul.f32.gmra.mxu0 %v1405
        %v1660 = vpop.f32.mrf.mxu0
        %v1661 = vadd.f32 %v1474, %v1660
        %1662 = vmatmul.f32.gmra.mxu0 %v1407
        %v1663 = vpop.f32.mrf.mxu0
        %v1664 = vadd.f32 %v1479, %v1663
        %1665 = vmatmul.f32.gmra.mxu0 %v1409
        %v1666 = vpop.f32.mrf.mxu0
        %v1667 = vadd.f32 %v1484, %v1666
        %1668 = vmatmul.f32.gmra.mxu0 %v1411
        %v1669 = vpop.f32.mrf.mxu0
        %v1670 = vadd.f32 %v1489, %v1669
        %1671 = vmatmul.f32.gmra.mxu0 %v1413
        %v1672 = vpop.f32.mrf.mxu0
        %v1673 = vadd.f32 %v1494, %v1672
        %1674 = vmatmul.f32.gmra.mxu0 %v1415
        %v1675 = vpop.f32.mrf.mxu0
        %v1676 = vadd.f32 %v1499, %v1675
        %1677 = vmatmul.f32.gmra.mxu0 %v1417
        %v1678 = vpop.f32.mrf.mxu0
        %v1679 = vadd.f32 %v1504, %v1678
        %1680 = vmatmul.f32.gmra.mxu0 %v1419
        %v1681 = vpop.f32.mrf.mxu0
        %v1682 = vadd.f32 %v1509, %v1681
        %1683 = vmatmul.f32.gmra.mxu0 %v1421
        %v1684 = vpop.f32.mrf.mxu0
        %v1685 = vadd.f32 %v1514, %v1684
        %1686 = vmatmul.f32.gmra.mxu0 %v1423
        %v1687 = vpop.f32.mrf.mxu0
        %v1688 = vadd.f32 %v1519, %v1687
        %1689 = vmatmul.f32.gmra.mxu0 %v1425
        %v1690 = vpop.f32.mrf.mxu0
        %v1691 = vadd.f32 %v1524, %v1690
        %1692 = vmatmul.f32.gmra.mxu0 %v1427
        %v1693 = vpop.f32.mrf.mxu0
        %v1694 = vadd.f32 %v1529, %v1693
        %1695 = vmatmul.f32.gmra.mxu0 %v1429
        %v1696 = vpop.f32.mrf.mxu0
        %v1697 = vadd.f32 %v1534, %v1696
        %1698 = vmatmul.f32.gmra.mxu0 %v1431
        %v1699 = vpop.f32.mrf.mxu0
        %v1700 = vadd.f32 %v1539, %v1699
        %1701 = vmatmul.f32.gmra.mxu0 %v1433
        %v1702 = vpop.f32.mrf.mxu0
        %v1703 = vadd.f32 %v1544, %v1702
        %1704 = vmatmul.f32.gmra.mxu0 %v1435
        %v1705 = vpop.f32.mrf.mxu0
        %v1706 = vadd.f32 %v1549, %v1705
        %1707 = vdwg.mxu0
        %1708 = vmatpush.msra.mxu0 0.0
        %1709 = vmatpush.msra.mxu0 0.0
        %1710 = vmatpush.msra.mxu0 0.0
        %1711 = vmatpush.msra.mxu0 0.0
        %1712 = vmatpush.msra.mxu0 0.0
        %1713 = vmatpush.msra.mxu0 0.0
        %1714 = vmatpush.msra.mxu0 0.0
        %1715 = vmatpush.msra.mxu0 0.0
        %1716 = vmatpush.msra.mxu0 0.0
        %1717 = vmatpush.msra.mxu0 0.0
        %1718 = vmatpush.msra.mxu0 0.0
        %1719 = vmatpush.msra.mxu0 0.0
        %1720 = vmatpush.msra.mxu0 0.0
        %1721 = vmatpush.msra.mxu0 %v1611
        %1722 = vmatpush.msra.mxu0 %v1383
        %1723 = vmatpush.msra.mxu0 %v1375
        %1724 = vmatmul.f32.gmra.mxu0 %v1553
        %v1725 = vpop.f32.mrf.mxu0
        %v1726 = vadd.f32 %v1652, %v1725
        %1727 = vmatmul.f32.gmra.mxu0 %v1556
        %v1728 = vpop.f32.mrf.mxu0
        %v1729 = vadd.f32 %v1655, %v1728
        %1730 = vmatmul.f32.gmra.mxu0 %v1559
        %v1731 = vpop.f32.mrf.mxu0
        %v1732 = vadd.f32 %v1658, %v1731
        %1733 = vmatmul.f32.gmra.mxu0 %v1562
        %v1734 = vpop.f32.mrf.mxu0
        %v1735 = vadd.f32 %v1661, %v1734
        %1736 = vmatmul.f32.gmra.mxu0 %v1565
        %v1737 = vpop.f32.mrf.mxu0
        %v1738 = vadd.f32 %v1664, %v1737
        %1739 = vmatmul.f32.gmra.mxu0 %v1568
        %v1740 = vpop.f32.mrf.mxu0
        %v1741 = vadd.f32 %v1667, %v1740
        %1742 = vmatmul.f32.gmra.mxu0 %v1571
        %v1743 = vpop.f32.mrf.mxu0
        %v1744 = vadd.f32 %v1670, %v1743
        %1745 = vmatmul.f32.gmra.mxu0 %v1574
        %v1746 = vpop.f32.mrf.mxu0
        %v1747 = vadd.f32 %v1673, %v1746
        %1748 = vmatmul.f32.gmra.mxu0 %v1577
        %v1749 = vpop.f32.mrf.mxu0
        %v1750 = vadd.f32 %v1676, %v1749
        %1751 = vmatmul.f32.gmra.mxu0 %v1580
        %v1752 = vpop.f32.mrf.mxu0
        %v1753 = vadd.f32 %v1679, %v1752
        %1754 = vmatmul.f32.gmra.mxu0 %v1583
        %v1755 = vpop.f32.mrf.mxu0
        %v1756 = vadd.f32 %v1682, %v1755
        %1757 = vmatmul.f32.gmra.mxu0 %v1586
        %v1758 = vpop.f32.mrf.mxu0
        %v1759 = vadd.f32 %v1685, %v1758
        %1760 = vmatmul.f32.gmra.mxu0 %v1589
        %v1761 = vpop.f32.mrf.mxu0
        %v1762 = vadd.f32 %v1688, %v1761
        %1763 = vmatmul.f32.gmra.mxu0 %v1592
        %v1764 = vpop.f32.mrf.mxu0
        %v1765 = vadd.f32 %v1691, %v1764
        %1766 = vmatmul.f32.gmra.mxu0 %v1595
        %v1767 = vpop.f32.mrf.mxu0
        %v1768 = vadd.f32 %v1694, %v1767
        %1769 = vmatmul.f32.gmra.mxu0 %v1598
        %v1770 = vpop.f32.mrf.mxu0
        %v1771 = vadd.f32 %v1697, %v1770
        %1772 = vmatmul.f32.gmra.mxu0 %v1601
        %v1773 = vpop.f32.mrf.mxu0
        %v1774 = vadd.f32 %v1700, %v1773
        %1775 = vmatmul.f32.gmra.mxu0 %v1604
        %v1776 = vpop.f32.mrf.mxu0
        %v1777 = vadd.f32 %v1703, %v1776
        %1778 = vmatmul.f32.gmra.mxu0 %v1607
        %v1779 = vpop.f32.mrf.mxu0
        %v1780 = vadd.f32 %v1706, %v1779
        %1781 = vdwg.mxu0
        %1782 = vmatpush.msra.mxu0 %v1368
        %1783 = vmatpush.msra.mxu0 %v1360
        %1784 = vmatpush.msra.mxu0 %v1352
        %1785 = vmatpush.msra.mxu0 %v1344
        %1786 = vmatpush.msra.mxu0 %v1336
        %1787 = vmatpush.msra.mxu0 %v1328
        %1788 = vmatpush.msra.mxu0 %v1320
        %1789 = vmatpush.msra.mxu0 %v1312
        %1790 = vmatpush.msra.mxu0 %v1304
        %1791 = vmatpush.msra.mxu0 %v1296
        %1792 = vmatpush.msra.mxu0 %v1288
        %1793 = vmatpush.msra.mxu0 %v1280
        %1794 = vmatpush.msra.mxu0 %v1272
        %1795 = vmatpush.msra.mxu0 %v1264
        %1796 = vmatpush.msra.mxu0 %v1256
        %1797 = vmatpush.msra.mxu0 %v1248
        %1798 = vmatmul.f32.gmra.mxu0 %v1399
        %v1799 = vpop.f32.mrf.mxu0
        %v1800 = vadd.f32 %v1459, %v1799
        %1801 = vmatmul.f32.gmra.mxu0 %v1401
        %v1802 = vpop.f32.mrf.mxu0
        %v1803 = vadd.f32 %v1464, %v1802
        %1804 = vmatmul.f32.gmra.mxu0 %v1403
        %v1805 = vpop.f32.mrf.mxu0
        %v1806 = vadd.f32 %v1469, %v1805
        %1807 = vmatmul.f32.gmra.mxu0 %v1405
        %v1808 = vpop.f32.mrf.mxu0
        %v1809 = vadd.f32 %v1474, %v1808
        %1810 = vmatmul.f32.gmra.mxu0 %v1407
        %v1811 = vpop.f32.mrf.mxu0
        %v1812 = vadd.f32 %v1479, %v1811
        %1813 = vmatmul.f32.gmra.mxu0 %v1409
        %v1814 = vpop.f32.mrf.mxu0
        %v1815 = vadd.f32 %v1484, %v1814
        %1816 = vmatmul.f32.gmra.mxu0 %v1411
        %v1817 = vpop.f32.mrf.mxu0
        %v1818 = vadd.f32 %v1489, %v1817
        %1819 = vmatmul.f32.gmra.mxu0 %v1413
        %v1820 = vpop.f32.mrf.mxu0
        %v1821 = vadd.f32 %v1494, %v1820
        %1822 = vmatmul.f32.gmra.mxu0 %v1415
        %v1823 = vpop.f32.mrf.mxu0
        %v1824 = vadd.f32 %v1499, %v1823
        %1825 = vmatmul.f32.gmra.mxu0 %v1417
        %v1826 = vpop.f32.mrf.mxu0
        %v1827 = vadd.f32 %v1504, %v1826
        %1828 = vmatmul.f32.gmra.mxu0 %v1419
        %v1829 = vpop.f32.mrf.mxu0
        %v1830 = vadd.f32 %v1509, %v1829
        %1831 = vmatmul.f32.gmra.mxu0 %v1421
        %v1832 = vpop.f32.mrf.mxu0
        %v1833 = vadd.f32 %v1514, %v1832
        %1834 = vmatmul.f32.gmra.mxu0 %v1423
        %v1835 = vpop.f32.mrf.mxu0
        %v1836 = vadd.f32 %v1519, %v1835
        %1837 = vmatmul.f32.gmra.mxu0 %v1425
        %v1838 = vpop.f32.mrf.mxu0
        %v1839 = vadd.f32 %v1524, %v1838
        %1840 = vmatmul.f32.gmra.mxu0 %v1427
        %v1841 = vpop.f32.mrf.mxu0
        %v1842 = vadd.f32 %v1529, %v1841
        %1843 = vmatmul.f32.gmra.mxu0 %v1429
        %v1844 = vpop.f32.mrf.mxu0
        %v1845 = vadd.f32 %v1534, %v1844
        %1846 = vmatmul.f32.gmra.mxu0 %v1431
        %v1847 = vpop.f32.mrf.mxu0
        %v1848 = vadd.f32 %v1539, %v1847
        %1849 = vmatmul.f32.gmra.mxu0 %v1433
        %v1850 = vpop.f32.mrf.mxu0
        %v1851 = vadd.f32 %v1544, %v1850
        %1852 = vmatmul.f32.gmra.mxu0 %v1435
        %v1853 = vpop.f32.mrf.mxu0
        %v1854 = vadd.f32 %v1549, %v1853
        %1855 = vdwg.mxu0
        %1856 = vmatpush.msra.mxu0 0.0
        %1857 = vmatpush.msra.mxu0 0.0
        %1858 = vmatpush.msra.mxu0 0.0
        %1859 = vmatpush.msra.mxu0 0.0
        %1860 = vmatpush.msra.mxu0 0.0
        %1861 = vmatpush.msra.mxu0 0.0
        %1862 = vmatpush.msra.mxu0 0.0
        %1863 = vmatpush.msra.mxu0 0.0
        %1864 = vmatpush.msra.mxu0 0.0
        %1865 = vmatpush.msra.mxu0 0.0
        %1866 = vmatpush.msra.mxu0 0.0
        %1867 = vmatpush.msra.mxu0 0.0
        %1868 = vmatpush.msra.mxu0 0.0
        %1869 = vmatpush.msra.mxu0 %v1614
        %1870 = vmatpush.msra.mxu0 %v1384
        %1871 = vmatpush.msra.mxu0 %v1376
        %1872 = vmatmul.f32.gmra.mxu0 %v1553
        %v1873 = vpop.f32.mrf.mxu0
        %v1874 = vadd.f32 %v1800, %v1873
        %1875 = vmatmul.f32.gmra.mxu0 %v1556
        %v1876 = vpop.f32.mrf.mxu0
        %v1877 = vadd.f32 %v1803, %v1876
        %1878 = vmatmul.f32.gmra.mxu0 %v1559
        %v1879 = vpop.f32.mrf.mxu0
        %v1880 = vadd.f32 %v1806, %v1879
        %1881 = vmatmul.f32.gmra.mxu0 %v1562
        %v1882 = vpop.f32.mrf.mxu0
        %v1883 = vadd.f32 %v1809, %v1882
        %1884 = vmatmul.f32.gmra.mxu0 %v1565
        %v1885 = vpop.f32.mrf.mxu0
        %v1886 = vadd.f32 %v1812, %v1885
        %1887 = vmatmul.f32.gmra.mxu0 %v1568
        %v1888 = vpop.f32.mrf.mxu0
        %v1889 = vadd.f32 %v1815, %v1888
        %1890 = vmatmul.f32.gmra.mxu0 %v1571
        %v1891 = vpop.f32.mrf.mxu0
        %v1892 = vadd.f32 %v1818, %v1891
        %1893 = vmatmul.f32.gmra.mxu0 %v1574
        %v1894 = vpop.f32.mrf.mxu0
        %v1895 = vadd.f32 %v1821, %v1894
        %1896 = vmatmul.f32.gmra.mxu0 %v1577
        %v1897 = vpop.f32.mrf.mxu0
        %v1898 = vadd.f32 %v1824, %v1897
        %1899 = vmatmul.f32.gmra.mxu0 %v1580
        %v1900 = vpop.f32.mrf.mxu0
        %v1901 = vadd.f32 %v1827, %v1900
        %1902 = vmatmul.f32.gmra.mxu0 %v1583
        %v1903 = vpop.f32.mrf.mxu0
        %v1904 = vadd.f32 %v1830, %v1903
        %1905 = vmatmul.f32.gmra.mxu0 %v1586
        %v1906 = vpop.f32.mrf.mxu0
        %v1907 = vadd.f32 %v1833, %v1906
        %1908 = vmatmul.f32.gmra.mxu0 %v1589
        %v1909 = vpop.f32.mrf.mxu0
        %v1910 = vadd.f32 %v1836, %v1909
        %1911 = vmatmul.f32.gmra.mxu0 %v1592
        %v1912 = vpop.f32.mrf.mxu0
        %v1913 = vadd.f32 %v1839, %v1912
        %1914 = vmatmul.f32.gmra.mxu0 %v1595
        %v1915 = vpop.f32.mrf.mxu0
        %v1916 = vadd.f32 %v1842, %v1915
        %1917 = vmatmul.f32.gmra.mxu0 %v1598
        %v1918 = vpop.f32.mrf.mxu0
        %v1919 = vadd.f32 %v1845, %v1918
        %1920 = vmatmul.f32.gmra.mxu0 %v1601
        %v1921 = vpop.f32.mrf.mxu0
        %v1922 = vadd.f32 %v1848, %v1921
        %1923 = vmatmul.f32.gmra.mxu0 %v1604
        %v1924 = vpop.f32.mrf.mxu0
        %v1925 = vadd.f32 %v1851, %v1924
        %1926 = vmatmul.f32.gmra.mxu0 %v1607
        %v1927 = vpop.f32.mrf.mxu0
        %v1928 = vadd.f32 %v1854, %v1927
        %1929 = vdwg.mxu0
        %1930 = vmatpush.msra.mxu0 %v1369
        %1931 = vmatpush.msra.mxu0 %v1361
        %1932 = vmatpush.msra.mxu0 %v1353
        %1933 = vmatpush.msra.mxu0 %v1345
        %1934 = vmatpush.msra.mxu0 %v1337
        %1935 = vmatpush.msra.mxu0 %v1329
        %1936 = vmatpush.msra.mxu0 %v1321
        %1937 = vmatpush.msra.mxu0 %v1313
        %1938 = vmatpush.msra.mxu0 %v1305
        %1939 = vmatpush.msra.mxu0 %v1297
        %1940 = vmatpush.msra.mxu0 %v1289
        %1941 = vmatpush.msra.mxu0 %v1281
        %1942 = vmatpush.msra.mxu0 %v1273
        %1943 = vmatpush.msra.mxu0 %v1265
        %1944 = vmatpush.msra.mxu0 %v1257
        %1945 = vmatpush.msra.mxu0 %v1249
        %1946 = vmatmul.f32.gmra.mxu0 %v1399
        %v1947 = vpop.f32.mrf.mxu0
        %v1948 = vadd.f32 %v1459, %v1947
        %1949 = vmatmul.f32.gmra.mxu0 %v1401
        %v1950 = vpop.f32.mrf.mxu0
        %v1951 = vadd.f32 %v1464, %v1950
        %1952 = vmatmul.f32.gmra.mxu0 %v1403
        %v1953 = vpop.f32.mrf.mxu0
        %v1954 = vadd.f32 %v1469, %v1953
        %1955 = vmatmul.f32.gmra.mxu0 %v1405
        %v1956 = vpop.f32.mrf.mxu0
        %v1957 = vadd.f32 %v1474, %v1956
        %1958 = vmatmul.f32.gmra.mxu0 %v1407
        %v1959 = vpop.f32.mrf.mxu0
        %v1960 = vadd.f32 %v1479, %v1959
        %1961 = vmatmul.f32.gmra.mxu0 %v1409
        %v1962 = vpop.f32.mrf.mxu0
        %v1963 = vadd.f32 %v1484, %v1962
        %1964 = vmatmul.f32.gmra.mxu0 %v1411
        %v1965 = vpop.f32.mrf.mxu0
        %v1966 = vadd.f32 %v1489, %v1965
        %1967 = vmatmul.f32.gmra.mxu0 %v1413
        %v1968 = vpop.f32.mrf.mxu0
        %v1969 = vadd.f32 %v1494, %v1968
        %1970 = vmatmul.f32.gmra.mxu0 %v1415
        %v1971 = vpop.f32.mrf.mxu0
        %v1972 = vadd.f32 %v1499, %v1971
        %1973 = vmatmul.f32.gmra.mxu0 %v1417
        %v1974 = vpop.f32.mrf.mxu0
        %v1975 = vadd.f32 %v1504, %v1974
        %1976 = vmatmul.f32.gmra.mxu0 %v1419
        %v1977 = vpop.f32.mrf.mxu0
        %v1978 = vadd.f32 %v1509, %v1977
        %1979 = vmatmul.f32.gmra.mxu0 %v1421
        %v1980 = vpop.f32.mrf.mxu0
        %v1981 = vadd.f32 %v1514, %v1980
        %1982 = vmatmul.f32.gmra.mxu0 %v1423
        %v1983 = vpop.f32.mrf.mxu0
        %v1984 = vadd.f32 %v1519, %v1983
        %1985 = vmatmul.f32.gmra.mxu0 %v1425
        %v1986 = vpop.f32.mrf.mxu0
        %v1987 = vadd.f32 %v1524, %v1986
        %1988 = vmatmul.f32.gmra.mxu0 %v1427
        %v1989 = vpop.f32.mrf.mxu0
        %v1990 = vadd.f32 %v1529, %v1989
        %1991 = vmatmul.f32.gmra.mxu0 %v1429
        %v1992 = vpop.f32.mrf.mxu0
        %v1993 = vadd.f32 %v1534, %v1992
        %1994 = vmatmul.f32.gmra.mxu0 %v1431
        %v1995 = vpop.f32.mrf.mxu0
        %v1996 = vadd.f32 %v1539, %v1995
        %1997 = vmatmul.f32.gmra.mxu0 %v1433
        %v1998 = vpop.f32.mrf.mxu0
        %v1999 = vadd.f32 %v1544, %v1998
        %2000 = vmatmul.f32.gmra.mxu0 %v1435
        %v2001 = vpop.f32.mrf.mxu0
        %v2002 = vadd.f32 %v1549, %v2001
        %2003 = vdwg.mxu0
        %2004 = vmatpush.msra.mxu0 0.0
        %2005 = vmatpush.msra.mxu0 0.0
        %2006 = vmatpush.msra.mxu0 0.0
        %2007 = vmatpush.msra.mxu0 0.0
        %2008 = vmatpush.msra.mxu0 0.0
        %2009 = vmatpush.msra.mxu0 0.0
        %2010 = vmatpush.msra.mxu0 0.0
        %2011 = vmatpush.msra.mxu0 0.0
        %2012 = vmatpush.msra.mxu0 0.0
        %2013 = vmatpush.msra.mxu0 0.0
        %2014 = vmatpush.msra.mxu0 0.0
        %2015 = vmatpush.msra.mxu0 0.0
        %2016 = vmatpush.msra.mxu0 0.0
        %2017 = vmatpush.msra.mxu0 %v1617
        %2018 = vmatpush.msra.mxu0 %v1385
        %2019 = vmatpush.msra.mxu0 %v1377
        %2020 = vmatmul.f32.gmra.mxu0 %v1553
        %v2021 = vpop.f32.mrf.mxu0
        %v2022 = vadd.f32 %v1948, %v2021
        %2023 = vmatmul.f32.gmra.mxu0 %v1556
        %v2024 = vpop.f32.mrf.mxu0
        %v2025 = vadd.f32 %v1951, %v2024
        %2026 = vmatmul.f32.gmra.mxu0 %v1559
        %v2027 = vpop.f32.mrf.mxu0
        %v2028 = vadd.f32 %v1954, %v2027
        %2029 = vmatmul.f32.gmra.mxu0 %v1562
        %v2030 = vpop.f32.mrf.mxu0
        %v2031 = vadd.f32 %v1957, %v2030
        %2032 = vmatmul.f32.gmra.mxu0 %v1565
        %v2033 = vpop.f32.mrf.mxu0
        %v2034 = vadd.f32 %v1960, %v2033
        %2035 = vmatmul.f32.gmra.mxu0 %v1568
        %v2036 = vpop.f32.mrf.mxu0
        %v2037 = vadd.f32 %v1963, %v2036
        %2038 = vmatmul.f32.gmra.mxu0 %v1571
        %v2039 = vpop.f32.mrf.mxu0
        %v2040 = vadd.f32 %v1966, %v2039
        %2041 = vmatmul.f32.gmra.mxu0 %v1574
        %v2042 = vpop.f32.mrf.mxu0
        %v2043 = vadd.f32 %v1969, %v2042
        %2044 = vmatmul.f32.gmra.mxu0 %v1577
        %v2045 = vpop.f32.mrf.mxu0
        %v2046 = vadd.f32 %v1972, %v2045
        %2047 = vmatmul.f32.gmra.mxu0 %v1580
        %v2048 = vpop.f32.mrf.mxu0
        %v2049 = vadd.f32 %v1975, %v2048
        %2050 = vmatmul.f32.gmra.mxu0 %v1583
        %v2051 = vpop.f32.mrf.mxu0
        %v2052 = vadd.f32 %v1978, %v2051
        %2053 = vmatmul.f32.gmra.mxu0 %v1586
        %v2054 = vpop.f32.mrf.mxu0
        %v2055 = vadd.f32 %v1981, %v2054
        %2056 = vmatmul.f32.gmra.mxu0 %v1589
        %v2057 = vpop.f32.mrf.mxu0
        %v2058 = vadd.f32 %v1984, %v2057
        %2059 = vmatmul.f32.gmra.mxu0 %v1592
        %v2060 = vpop.f32.mrf.mxu0
        %v2061 = vadd.f32 %v1987, %v2060
        %2062 = vmatmul.f32.gmra.mxu0 %v1595
        %v2063 = vpop.f32.mrf.mxu0
        %v2064 = vadd.f32 %v1990, %v2063
        %2065 = vmatmul.f32.gmra.mxu0 %v1598
        %v2066 = vpop.f32.mrf.mxu0
        %v2067 = vadd.f32 %v1993, %v2066
        %2068 = vmatmul.f32.gmra.mxu0 %v1601
        %v2069 = vpop.f32.mrf.mxu0
        %v2070 = vadd.f32 %v1996, %v2069
        %2071 = vmatmul.f32.gmra.mxu0 %v1604
        %v2072 = vpop.f32.mrf.mxu0
        %v2073 = vadd.f32 %v1999, %v2072
        %2074 = vmatmul.f32.gmra.mxu0 %v1607
        %v2075 = vpop.f32.mrf.mxu0
        %v2076 = vadd.f32 %v2002, %v2075
        %2077 = vdwg.mxu0
        %2078 = vmatpush.msra.mxu0 %v1370
        %2079 = vmatpush.msra.mxu0 %v1362
        %2080 = vmatpush.msra.mxu0 %v1354
        %2081 = vmatpush.msra.mxu0 %v1346
        %2082 = vmatpush.msra.mxu0 %v1338
        %2083 = vmatpush.msra.mxu0 %v1330
        %2084 = vmatpush.msra.mxu0 %v1322
        %2085 = vmatpush.msra.mxu0 %v1314
        %2086 = vmatpush.msra.mxu0 %v1306
        %2087 = vmatpush.msra.mxu0 %v1298
        %2088 = vmatpush.msra.mxu0 %v1290
        %2089 = vmatpush.msra.mxu0 %v1282
        %2090 = vmatpush.msra.mxu0 %v1274
        %2091 = vmatpush.msra.mxu0 %v1266
        %2092 = vmatpush.msra.mxu0 %v1258
        %2093 = vmatpush.msra.mxu0 %v1250
        %2094 = vmatmul.f32.gmra.mxu0 %v1399
        %v2095 = vpop.f32.mrf.mxu0
        %v2096 = vadd.f32 %v1459, %v2095
        %2097 = vmatmul.f32.gmra.mxu0 %v1401
        %v2098 = vpop.f32.mrf.mxu0
        %v2099 = vadd.f32 %v1464, %v2098
        %2100 = vmatmul.f32.gmra.mxu0 %v1403
        %v2101 = vpop.f32.mrf.mxu0
        %v2102 = vadd.f32 %v1469, %v2101
        %2103 = vmatmul.f32.gmra.mxu0 %v1405
        %v2104 = vpop.f32.mrf.mxu0
        %v2105 = vadd.f32 %v1474, %v2104
        %2106 = vmatmul.f32.gmra.mxu0 %v1407
        %v2107 = vpop.f32.mrf.mxu0
        %v2108 = vadd.f32 %v1479, %v2107
        %2109 = vmatmul.f32.gmra.mxu0 %v1409
        %v2110 = vpop.f32.mrf.mxu0
        %v2111 = vadd.f32 %v1484, %v2110
        %2112 = vmatmul.f32.gmra.mxu0 %v1411
        %v2113 = vpop.f32.mrf.mxu0
        %v2114 = vadd.f32 %v1489, %v2113
        %2115 = vmatmul.f32.gmra.mxu0 %v1413
        %v2116 = vpop.f32.mrf.mxu0
        %v2117 = vadd.f32 %v1494, %v2116
        %2118 = vmatmul.f32.gmra.mxu0 %v1415
        %v2119 = vpop.f32.mrf.mxu0
        %v2120 = vadd.f32 %v1499, %v2119
        %2121 = vmatmul.f32.gmra.mxu0 %v1417
        %v2122 = vpop.f32.mrf.mxu0
        %v2123 = vadd.f32 %v1504, %v2122
        %2124 = vmatmul.f32.gmra.mxu0 %v1419
        %v2125 = vpop.f32.mrf.mxu0
        %v2126 = vadd.f32 %v1509, %v2125
        %2127 = vmatmul.f32.gmra.mxu0 %v1421
        %v2128 = vpop.f32.mrf.mxu0
        %v2129 = vadd.f32 %v1514, %v2128
        %2130 = vmatmul.f32.gmra.mxu0 %v1423
        %v2131 = vpop.f32.mrf.mxu0
        %v2132 = vadd.f32 %v1519, %v2131
        %2133 = vmatmul.f32.gmra.mxu0 %v1425
        %v2134 = vpop.f32.mrf.mxu0
        %v2135 = vadd.f32 %v1524, %v2134
        %2136 = vmatmul.f32.gmra.mxu0 %v1427
        %v2137 = vpop.f32.mrf.mxu0
        %v2138 = vadd.f32 %v1529, %v2137
        %2139 = vmatmul.f32.gmra.mxu0 %v1429
        %v2140 = vpop.f32.mrf.mxu0
        %v2141 = vadd.f32 %v1534, %v2140
        %2142 = vmatmul.f32.gmra.mxu0 %v1431
        %v2143 = vpop.f32.mrf.mxu0
        %v2144 = vadd.f32 %v1539, %v2143
        %2145 = vmatmul.f32.gmra.mxu0 %v1433
        %v2146 = vpop.f32.mrf.mxu0
        %v2147 = vadd.f32 %v1544, %v2146
        %2148 = vmatmul.f32.gmra.mxu0 %v1435
        %v2149 = vpop.f32.mrf.mxu0
        %v2150 = vadd.f32 %v1549, %v2149
        %2151 = vdwg.mxu0
        %2152 = vmatpush.msra.mxu0 0.0
        %2153 = vmatpush.msra.mxu0 0.0
        %2154 = vmatpush.msra.mxu0 0.0
        %2155 = vmatpush.msra.mxu0 0.0
        %2156 = vmatpush.msra.mxu0 0.0
        %2157 = vmatpush.msra.mxu0 0.0
        %2158 = vmatpush.msra.mxu0 0.0
        %2159 = vmatpush.msra.mxu0 0.0
        %2160 = vmatpush.msra.mxu0 0.0
        %2161 = vmatpush.msra.mxu0 0.0
        %2162 = vmatpush.msra.mxu0 0.0
        %2163 = vmatpush.msra.mxu0 0.0
        %2164 = vmatpush.msra.mxu0 0.0
        %2165 = vmatpush.msra.mxu0 %v1620
        %2166 = vmatpush.msra.mxu0 %v1386
        %2167 = vmatpush.msra.mxu0 %v1378
        %2168 = vmatmul.f32.gmra.mxu0 %v1553
        %v2169 = vpop.f32.mrf.mxu0
        %v2170 = vadd.f32 %v2096, %v2169
        %2171 = vmatmul.f32.gmra.mxu0 %v1556
        %v2172 = vpop.f32.mrf.mxu0
        %v2173 = vadd.f32 %v2099, %v2172
        %2174 = vmatmul.f32.gmra.mxu0 %v1559
        %v2175 = vpop.f32.mrf.mxu0
        %v2176 = vadd.f32 %v2102, %v2175
        %2177 = vmatmul.f32.gmra.mxu0 %v1562
        %v2178 = vpop.f32.mrf.mxu0
        %v2179 = vadd.f32 %v2105, %v2178
        %2180 = vmatmul.f32.gmra.mxu0 %v1565
        %v2181 = vpop.f32.mrf.mxu0
        %v2182 = vadd.f32 %v2108, %v2181
        %2183 = vmatmul.f32.gmra.mxu0 %v1568
        %v2184 = vpop.f32.mrf.mxu0
        %v2185 = vadd.f32 %v2111, %v2184
        %2186 = vmatmul.f32.gmra.mxu0 %v1571
        %v2187 = vpop.f32.mrf.mxu0
        %v2188 = vadd.f32 %v2114, %v2187
        %2189 = vmatmul.f32.gmra.mxu0 %v1574
        %v2190 = vpop.f32.mrf.mxu0
        %v2191 = vadd.f32 %v2117, %v2190
        %2192 = vmatmul.f32.gmra.mxu0 %v1577
        %v2193 = vpop.f32.mrf.mxu0
        %v2194 = vadd.f32 %v2120, %v2193
        %2195 = vmatmul.f32.gmra.mxu0 %v1580
        %v2196 = vpop.f32.mrf.mxu0
        %v2197 = vadd.f32 %v2123, %v2196
        %2198 = vmatmul.f32.gmra.mxu0 %v1583
        %v2199 = vpop.f32.mrf.mxu0
        %v2200 = vadd.f32 %v2126, %v2199
        %2201 = vmatmul.f32.gmra.mxu0 %v1586
        %v2202 = vpop.f32.mrf.mxu0
        %v2203 = vadd.f32 %v2129, %v2202
        %2204 = vmatmul.f32.gmra.mxu0 %v1589
        %v2205 = vpop.f32.mrf.mxu0
        %v2206 = vadd.f32 %v2132, %v2205
        %2207 = vmatmul.f32.gmra.mxu0 %v1592
        %v2208 = vpop.f32.mrf.mxu0
        %v2209 = vadd.f32 %v2135, %v2208
        %2210 = vmatmul.f32.gmra.mxu0 %v1595
        %v2211 = vpop.f32.mrf.mxu0
        %v2212 = vadd.f32 %v2138, %v2211
        %2213 = vmatmul.f32.gmra.mxu0 %v1598
        %v2214 = vpop.f32.mrf.mxu0
        %v2215 = vadd.f32 %v2141, %v2214
        %2216 = vmatmul.f32.gmra.mxu0 %v1601
        %v2217 = vpop.f32.mrf.mxu0
        %v2218 = vadd.f32 %v2144, %v2217
        %2219 = vmatmul.f32.gmra.mxu0 %v1604
        %v2220 = vpop.f32.mrf.mxu0
        %v2221 = vadd.f32 %v2147, %v2220
        %2222 = vmatmul.f32.gmra.mxu0 %v1607
        %v2223 = vpop.f32.mrf.mxu0
        %v2224 = vadd.f32 %v2150, %v2223
        %2225 = vdwg.mxu0
        %2226 = vmatpush.msra.mxu0 %v1371
        %2227 = vmatpush.msra.mxu0 %v1363
        %2228 = vmatpush.msra.mxu0 %v1355
        %2229 = vmatpush.msra.mxu0 %v1347
        %2230 = vmatpush.msra.mxu0 %v1339
        %2231 = vmatpush.msra.mxu0 %v1331
        %2232 = vmatpush.msra.mxu0 %v1323
        %2233 = vmatpush.msra.mxu0 %v1315
        %2234 = vmatpush.msra.mxu0 %v1307
        %2235 = vmatpush.msra.mxu0 %v1299
        %2236 = vmatpush.msra.mxu0 %v1291
        %2237 = vmatpush.msra.mxu0 %v1283
        %2238 = vmatpush.msra.mxu0 %v1275
        %2239 = vmatpush.msra.mxu0 %v1267
        %2240 = vmatpush.msra.mxu0 %v1259
        %2241 = vmatpush.msra.mxu0 %v1251
        %2242 = vmatmul.f32.gmra.mxu0 %v1399
        %v2243 = vpop.f32.mrf.mxu0
        %v2244 = vadd.f32 %v1459, %v2243
        %2245 = vmatmul.f32.gmra.mxu0 %v1401
        %v2246 = vpop.f32.mrf.mxu0
        %v2247 = vadd.f32 %v1464, %v2246
        %2248 = vmatmul.f32.gmra.mxu0 %v1403
        %v2249 = vpop.f32.mrf.mxu0
        %v2250 = vadd.f32 %v1469, %v2249
        %2251 = vmatmul.f32.gmra.mxu0 %v1405
        %v2252 = vpop.f32.mrf.mxu0
        %v2253 = vadd.f32 %v1474, %v2252
        %2254 = vmatmul.f32.gmra.mxu0 %v1407
        %v2255 = vpop.f32.mrf.mxu0
        %v2256 = vadd.f32 %v1479, %v2255
        %2257 = vmatmul.f32.gmra.mxu0 %v1409
        %v2258 = vpop.f32.mrf.mxu0
        %v2259 = vadd.f32 %v1484, %v2258
        %2260 = vmatmul.f32.gmra.mxu0 %v1411
        %v2261 = vpop.f32.mrf.mxu0
        %v2262 = vadd.f32 %v1489, %v2261
        %2263 = vmatmul.f32.gmra.mxu0 %v1413
        %v2264 = vpop.f32.mrf.mxu0
        %v2265 = vadd.f32 %v1494, %v2264
        %2266 = vmatmul.f32.gmra.mxu0 %v1415
        %v2267 = vpop.f32.mrf.mxu0
        %v2268 = vadd.f32 %v1499, %v2267
        %2269 = vmatmul.f32.gmra.mxu0 %v1417
        %v2270 = vpop.f32.mrf.mxu0
        %v2271 = vadd.f32 %v1504, %v2270
        %2272 = vmatmul.f32.gmra.mxu0 %v1419
        %v2273 = vpop.f32.mrf.mxu0
        %v2274 = vadd.f32 %v1509, %v2273
        %2275 = vmatmul.f32.gmra.mxu0 %v1421
        %v2276 = vpop.f32.mrf.mxu0
        %v2277 = vadd.f32 %v1514, %v2276
        %2278 = vmatmul.f32.gmra.mxu0 %v1423
        %v2279 = vpop.f32.mrf.mxu0
        %v2280 = vadd.f32 %v1519, %v2279
        %2281 = vmatmul.f32.gmra.mxu0 %v1425
        %v2282 = vpop.f32.mrf.mxu0
        %v2283 = vadd.f32 %v1524, %v2282
        %2284 = vmatmul.f32.gmra.mxu0 %v1427
        %v2285 = vpop.f32.mrf.mxu0
        %v2286 = vadd.f32 %v1529, %v2285
        %2287 = vmatmul.f32.gmra.mxu0 %v1429
        %v2288 = vpop.f32.mrf.mxu0
        %v2289 = vadd.f32 %v1534, %v2288
        %2290 = vmatmul.f32.gmra.mxu0 %v1431
        %v2291 = vpop.f32.mrf.mxu0
        %v2292 = vadd.f32 %v1539, %v2291
        %2293 = vmatmul.f32.gmra.mxu0 %v1433
        %v2294 = vpop.f32.mrf.mxu0
        %v2295 = vadd.f32 %v1544, %v2294
        %2296 = vmatmul.f32.gmra.mxu0 %v1435
        %v2297 = vpop.f32.mrf.mxu0
        %v2298 = vadd.f32 %v1549, %v2297
        %2299 = vdwg.mxu0
        %2300 = vmatpush.msra.mxu0 0.0
        %2301 = vmatpush.msra.mxu0 0.0
        %2302 = vmatpush.msra.mxu0 0.0
        %2303 = vmatpush.msra.mxu0 0.0
        %2304 = vmatpush.msra.mxu0 0.0
        %2305 = vmatpush.msra.mxu0 0.0
        %2306 = vmatpush.msra.mxu0 0.0
        %2307 = vmatpush.msra.mxu0 0.0
        %2308 = vmatpush.msra.mxu0 0.0
        %2309 = vmatpush.msra.mxu0 0.0
        %2310 = vmatpush.msra.mxu0 0.0
        %2311 = vmatpush.msra.mxu0 0.0
        %2312 = vmatpush.msra.mxu0 0.0
        %2313 = vmatpush.msra.mxu0 %v1623
        %2314 = vmatpush.msra.mxu0 %v1387
        %2315 = vmatpush.msra.mxu0 %v1379
        %2316 = vmatmul.f32.gmra.mxu0 %v1553
        %v2317 = vpop.f32.mrf.mxu0
        %v2318 = vadd.f32 %v2244, %v2317
        %2319 = vmatmul.f32.gmra.mxu0 %v1556
        %v2320 = vpop.f32.mrf.mxu0
        %v2321 = vadd.f32 %v2247, %v2320
        %2322 = vmatmul.f32.gmra.mxu0 %v1559
        %v2323 = vpop.f32.mrf.mxu0
        %v2324 = vadd.f32 %v2250, %v2323
        %2325 = vmatmul.f32.gmra.mxu0 %v1562
        %v2326 = vpop.f32.mrf.mxu0
        %v2327 = vadd.f32 %v2253, %v2326
        %2328 = vmatmul.f32.gmra.mxu0 %v1565
        %v2329 = vpop.f32.mrf.mxu0
        %v2330 = vadd.f32 %v2256, %v2329
        %2331 = vmatmul.f32.gmra.mxu0 %v1568
        %v2332 = vpop.f32.mrf.mxu0
        %v2333 = vadd.f32 %v2259, %v2332
        %2334 = vmatmul.f32.gmra.mxu0 %v1571
        %v2335 = vpop.f32.mrf.mxu0
        %v2336 = vadd.f32 %v2262, %v2335
        %2337 = vmatmul.f32.gmra.mxu0 %v1574
        %v2338 = vpop.f32.mrf.mxu0
        %v2339 = vadd.f32 %v2265, %v2338
        %2340 = vmatmul.f32.gmra.mxu0 %v1577
        %v2341 = vpop.f32.mrf.mxu0
        %v2342 = vadd.f32 %v2268, %v2341
        %2343 = vmatmul.f32.gmra.mxu0 %v1580
        %v2344 = vpop.f32.mrf.mxu0
        %v2345 = vadd.f32 %v2271, %v2344
        %2346 = vmatmul.f32.gmra.mxu0 %v1583
        %v2347 = vpop.f32.mrf.mxu0
        %v2348 = vadd.f32 %v2274, %v2347
        %2349 = vmatmul.f32.gmra.mxu0 %v1586
        %v2350 = vpop.f32.mrf.mxu0
        %v2351 = vadd.f32 %v2277, %v2350
        %2352 = vmatmul.f32.gmra.mxu0 %v1589
        %v2353 = vpop.f32.mrf.mxu0
        %v2354 = vadd.f32 %v2280, %v2353
        %2355 = vmatmul.f32.gmra.mxu0 %v1592
        %v2356 = vpop.f32.mrf.mxu0
        %v2357 = vadd.f32 %v2283, %v2356
        %2358 = vmatmul.f32.gmra.mxu0 %v1595
        %v2359 = vpop.f32.mrf.mxu0
        %v2360 = vadd.f32 %v2286, %v2359
        %2361 = vmatmul.f32.gmra.mxu0 %v1598
        %v2362 = vpop.f32.mrf.mxu0
        %v2363 = vadd.f32 %v2289, %v2362
        %2364 = vmatmul.f32.gmra.mxu0 %v1601
        %v2365 = vpop.f32.mrf.mxu0
        %v2366 = vadd.f32 %v2292, %v2365
        %2367 = vmatmul.f32.gmra.mxu0 %v1604
        %v2368 = vpop.f32.mrf.mxu0
        %v2369 = vadd.f32 %v2295, %v2368
        %2370 = vmatmul.f32.gmra.mxu0 %v1607
        %v2371 = vpop.f32.mrf.mxu0
        %v2372 = vadd.f32 %v2298, %v2371
        %2373 = vdwg.mxu0
        %2374 = vmatpush.msra.mxu0 %v1372
        %2375 = vmatpush.msra.mxu0 %v1364
        %2376 = vmatpush.msra.mxu0 %v1356
        %2377 = vmatpush.msra.mxu0 %v1348
        %2378 = vmatpush.msra.mxu0 %v1340
        %2379 = vmatpush.msra.mxu0 %v1332
        %2380 = vmatpush.msra.mxu0 %v1324
        %2381 = vmatpush.msra.mxu0 %v1316
        %2382 = vmatpush.msra.mxu0 %v1308
        %2383 = vmatpush.msra.mxu0 %v1300
        %2384 = vmatpush.msra.mxu0 %v1292
        %2385 = vmatpush.msra.mxu0 %v1284
        %2386 = vmatpush.msra.mxu0 %v1276
        %2387 = vmatpush.msra.mxu0 %v1268
        %2388 = vmatpush.msra.mxu0 %v1260
        %2389 = vmatpush.msra.mxu0 %v1252
        %2390 = vmatmul.f32.gmra.mxu0 %v1399
        %v2391 = vpop.f32.mrf.mxu0
        %v2392 = vadd.f32 %v1459, %v2391
        %2393 = vmatmul.f32.gmra.mxu0 %v1401
        %v2394 = vpop.f32.mrf.mxu0
        %v2395 = vadd.f32 %v1464, %v2394
        %2396 = vmatmul.f32.gmra.mxu0 %v1403
        %v2397 = vpop.f32.mrf.mxu0
        %v2398 = vadd.f32 %v1469, %v2397
        %2399 = vmatmul.f32.gmra.mxu0 %v1405
        %v2400 = vpop.f32.mrf.mxu0
        %v2401 = vadd.f32 %v1474, %v2400
        %2402 = vmatmul.f32.gmra.mxu0 %v1407
        %v2403 = vpop.f32.mrf.mxu0
        %v2404 = vadd.f32 %v1479, %v2403
        %2405 = vmatmul.f32.gmra.mxu0 %v1409
        %v2406 = vpop.f32.mrf.mxu0
        %v2407 = vadd.f32 %v1484, %v2406
        %2408 = vmatmul.f32.gmra.mxu0 %v1411
        %v2409 = vpop.f32.mrf.mxu0
        %v2410 = vadd.f32 %v1489, %v2409
        %2411 = vmatmul.f32.gmra.mxu0 %v1413
        %v2412 = vpop.f32.mrf.mxu0
        %v2413 = vadd.f32 %v1494, %v2412
        %2414 = vmatmul.f32.gmra.mxu0 %v1415
        %v2415 = vpop.f32.mrf.mxu0
        %v2416 = vadd.f32 %v1499, %v2415
        %2417 = vmatmul.f32.gmra.mxu0 %v1417
        %v2418 = vpop.f32.mrf.mxu0
        %v2419 = vadd.f32 %v1504, %v2418
        %2420 = vmatmul.f32.gmra.mxu0 %v1419
        %v2421 = vpop.f32.mrf.mxu0
        %v2422 = vadd.f32 %v1509, %v2421
        %2423 = vmatmul.f32.gmra.mxu0 %v1421
        %v2424 = vpop.f32.mrf.mxu0
        %v2425 = vadd.f32 %v1514, %v2424
        %2426 = vmatmul.f32.gmra.mxu0 %v1423
        %v2427 = vpop.f32.mrf.mxu0
        %v2428 = vadd.f32 %v1519, %v2427
        %2429 = vmatmul.f32.gmra.mxu0 %v1425
        %v2430 = vpop.f32.mrf.mxu0
        %v2431 = vadd.f32 %v1524, %v2430
        %2432 = vmatmul.f32.gmra.mxu0 %v1427
        %v2433 = vpop.f32.mrf.mxu0
        %v2434 = vadd.f32 %v1529, %v2433
        %2435 = vmatmul.f32.gmra.mxu0 %v1429
        %v2436 = vpop.f32.mrf.mxu0
        %v2437 = vadd.f32 %v1534, %v2436
        %2438 = vmatmul.f32.gmra.mxu0 %v1431
        %v2439 = vpop.f32.mrf.mxu0
        %v2440 = vadd.f32 %v1539, %v2439
        %2441 = vmatmul.f32.gmra.mxu0 %v1433
        %v2442 = vpop.f32.mrf.mxu0
        %v2443 = vadd.f32 %v1544, %v2442
        %2444 = vmatmul.f32.gmra.mxu0 %v1435
        %v2445 = vpop.f32.mrf.mxu0
        %v2446 = vadd.f32 %v1549, %v2445
        %2447 = vdwg.mxu0
        %2448 = vmatpush.msra.mxu0 0.0
        %2449 = vmatpush.msra.mxu0 0.0
        %2450 = vmatpush.msra.mxu0 0.0
        %2451 = vmatpush.msra.mxu0 0.0
        %2452 = vmatpush.msra.mxu0 0.0
        %2453 = vmatpush.msra.mxu0 0.0
        %2454 = vmatpush.msra.mxu0 0.0
        %2455 = vmatpush.msra.mxu0 0.0
        %2456 = vmatpush.msra.mxu0 0.0
        %2457 = vmatpush.msra.mxu0 0.0
        %2458 = vmatpush.msra.mxu0 0.0
        %2459 = vmatpush.msra.mxu0 0.0
        %2460 = vmatpush.msra.mxu0 0.0
        %2461 = vmatpush.msra.mxu0 %v1626
        %2462 = vmatpush.msra.mxu0 %v1388
        %2463 = vmatpush.msra.mxu0 %v1380
        %2464 = vmatmul.f32.gmra.mxu0 %v1553
        %v2465 = vpop.f32.mrf.mxu0
        %v2466 = vadd.f32 %v2392, %v2465
        %2467 = vmatmul.f32.gmra.mxu0 %v1556
        %v2468 = vpop.f32.mrf.mxu0
        %v2469 = vadd.f32 %v2395, %v2468
        %2470 = vmatmul.f32.gmra.mxu0 %v1559
        %v2471 = vpop.f32.mrf.mxu0
        %v2472 = vadd.f32 %v2398, %v2471
        %2473 = vmatmul.f32.gmra.mxu0 %v1562
        %v2474 = vpop.f32.mrf.mxu0
        %v2475 = vadd.f32 %v2401, %v2474
        %2476 = vmatmul.f32.gmra.mxu0 %v1565
        %v2477 = vpop.f32.mrf.mxu0
        %v2478 = vadd.f32 %v2404, %v2477
        %2479 = vmatmul.f32.gmra.mxu0 %v1568
        %v2480 = vpop.f32.mrf.mxu0
        %v2481 = vadd.f32 %v2407, %v2480
        %2482 = vmatmul.f32.gmra.mxu0 %v1571
        %v2483 = vpop.f32.mrf.mxu0
        %v2484 = vadd.f32 %v2410, %v2483
        %2485 = vmatmul.f32.gmra.mxu0 %v1574
        %v2486 = vpop.f32.mrf.mxu0
        %v2487 = vadd.f32 %v2413, %v2486
        %2488 = vmatmul.f32.gmra.mxu0 %v1577
        %v2489 = vpop.f32.mrf.mxu0
        %v2490 = vadd.f32 %v2416, %v2489
        %2491 = vmatmul.f32.gmra.mxu0 %v1580
        %v2492 = vpop.f32.mrf.mxu0
        %v2493 = vadd.f32 %v2419, %v2492
        %2494 = vmatmul.f32.gmra.mxu0 %v1583
        %v2495 = vpop.f32.mrf.mxu0
        %v2496 = vadd.f32 %v2422, %v2495
        %2497 = vmatmul.f32.gmra.mxu0 %v1586
        %v2498 = vpop.f32.mrf.mxu0
        %v2499 = vadd.f32 %v2425, %v2498
        %2500 = vmatmul.f32.gmra.mxu0 %v1589
        %v2501 = vpop.f32.mrf.mxu0
        %v2502 = vadd.f32 %v2428, %v2501
        %2503 = vmatmul.f32.gmra.mxu0 %v1592
        %v2504 = vpop.f32.mrf.mxu0
        %v2505 = vadd.f32 %v2431, %v2504
        %2506 = vmatmul.f32.gmra.mxu0 %v1595
        %v2507 = vpop.f32.mrf.mxu0
        %v2508 = vadd.f32 %v2434, %v2507
        %2509 = vmatmul.f32.gmra.mxu0 %v1598
        %v2510 = vpop.f32.mrf.mxu0
        %v2511 = vadd.f32 %v2437, %v2510
        %2512 = vmatmul.f32.gmra.mxu0 %v1601
        %v2513 = vpop.f32.mrf.mxu0
        %v2514 = vadd.f32 %v2440, %v2513
        %2515 = vmatmul.f32.gmra.mxu0 %v1604
        %v2516 = vpop.f32.mrf.mxu0
        %v2517 = vadd.f32 %v2443, %v2516
        %2518 = vmatmul.f32.gmra.mxu0 %v1607
        %v2519 = vpop.f32.mrf.mxu0
        %v2520 = vadd.f32 %v2446, %v2519
        %2521 = vdwg.mxu0
        %2522 = vmatpush.msra.mxu0 %v1373
        %2523 = vmatpush.msra.mxu0 %v1365
        %2524 = vmatpush.msra.mxu0 %v1357
        %2525 = vmatpush.msra.mxu0 %v1349
        %2526 = vmatpush.msra.mxu0 %v1341
        %2527 = vmatpush.msra.mxu0 %v1333
        %2528 = vmatpush.msra.mxu0 %v1325
        %2529 = vmatpush.msra.mxu0 %v1317
        %2530 = vmatpush.msra.mxu0 %v1309
        %2531 = vmatpush.msra.mxu0 %v1301
        %2532 = vmatpush.msra.mxu0 %v1293
        %2533 = vmatpush.msra.mxu0 %v1285
        %2534 = vmatpush.msra.mxu0 %v1277
        %2535 = vmatpush.msra.mxu0 %v1269
        %2536 = vmatpush.msra.mxu0 %v1261
        %2537 = vmatpush.msra.mxu0 %v1253
        %2538 = vmatmul.f32.gmra.mxu0 %v1399
        %v2539 = vpop.f32.mrf.mxu0
        %v2540 = vadd.f32 %v1459, %v2539
        %2541 = vmatmul.f32.gmra.mxu0 %v1401
        %v2542 = vpop.f32.mrf.mxu0
        %v2543 = vadd.f32 %v1464, %v2542
        %2544 = vmatmul.f32.gmra.mxu0 %v1403
        %v2545 = vpop.f32.mrf.mxu0
        %v2546 = vadd.f32 %v1469, %v2545
        %2547 = vmatmul.f32.gmra.mxu0 %v1405
        %v2548 = vpop.f32.mrf.mxu0
        %v2549 = vadd.f32 %v1474, %v2548
        %2550 = vmatmul.f32.gmra.mxu0 %v1407
        %v2551 = vpop.f32.mrf.mxu0
        %v2552 = vadd.f32 %v1479, %v2551
        %2553 = vmatmul.f32.gmra.mxu0 %v1409
        %v2554 = vpop.f32.mrf.mxu0
        %v2555 = vadd.f32 %v1484, %v2554
        %2556 = vmatmul.f32.gmra.mxu0 %v1411
        %v2557 = vpop.f32.mrf.mxu0
        %v2558 = vadd.f32 %v1489, %v2557
        %2559 = vmatmul.f32.gmra.mxu0 %v1413
        %v2560 = vpop.f32.mrf.mxu0
        %v2561 = vadd.f32 %v1494, %v2560
        %2562 = vmatmul.f32.gmra.mxu0 %v1415
        %v2563 = vpop.f32.mrf.mxu0
        %v2564 = vadd.f32 %v1499, %v2563
        %2565 = vmatmul.f32.gmra.mxu0 %v1417
        %v2566 = vpop.f32.mrf.mxu0
        %v2567 = vadd.f32 %v1504, %v2566
        %2568 = vmatmul.f32.gmra.mxu0 %v1419
        %v2569 = vpop.f32.mrf.mxu0
        %v2570 = vadd.f32 %v1509, %v2569
        %2571 = vmatmul.f32.gmra.mxu0 %v1421
        %v2572 = vpop.f32.mrf.mxu0
        %v2573 = vadd.f32 %v1514, %v2572
        %2574 = vmatmul.f32.gmra.mxu0 %v1423
        %v2575 = vpop.f32.mrf.mxu0
        %v2576 = vadd.f32 %v1519, %v2575
        %2577 = vmatmul.f32.gmra.mxu0 %v1425
        %v2578 = vpop.f32.mrf.mxu0
        %v2579 = vadd.f32 %v1524, %v2578
        %2580 = vmatmul.f32.gmra.mxu0 %v1427
        %v2581 = vpop.f32.mrf.mxu0
        %v2582 = vadd.f32 %v1529, %v2581
        %2583 = vmatmul.f32.gmra.mxu0 %v1429
        %v2584 = vpop.f32.mrf.mxu0
        %v2585 = vadd.f32 %v1534, %v2584
        %2586 = vmatmul.f32.gmra.mxu0 %v1431
        %v2587 = vpop.f32.mrf.mxu0
        %v2588 = vadd.f32 %v1539, %v2587
        %2589 = vmatmul.f32.gmra.mxu0 %v1433
        %v2590 = vpop.f32.mrf.mxu0
        %v2591 = vadd.f32 %v1544, %v2590
        %2592 = vmatmul.f32.gmra.mxu0 %v1435
        %v2593 = vpop.f32.mrf.mxu0
        %v2594 = vadd.f32 %v1549, %v2593
        %2595 = vdwg.mxu0
        %2596 = vmatpush.msra.mxu0 0.0
        %2597 = vmatpush.msra.mxu0 0.0
        %2598 = vmatpush.msra.mxu0 0.0
        %2599 = vmatpush.msra.mxu0 0.0
        %2600 = vmatpush.msra.mxu0 0.0
        %2601 = vmatpush.msra.mxu0 0.0
        %2602 = vmatpush.msra.mxu0 0.0
        %2603 = vmatpush.msra.mxu0 0.0
        %2604 = vmatpush.msra.mxu0 0.0
        %2605 = vmatpush.msra.mxu0 0.0
        %2606 = vmatpush.msra.mxu0 0.0
        %2607 = vmatpush.msra.mxu0 0.0
        %2608 = vmatpush.msra.mxu0 0.0
        %2609 = vmatpush.msra.mxu0 %v1629
        %2610 = vmatpush.msra.mxu0 %v1389
        %2611 = vmatpush.msra.mxu0 %v1381
        %2612 = vmatmul.f32.gmra.mxu0 %v1553
        %v2613 = vpop.f32.mrf.mxu0
        %v2614 = vadd.f32 %v2540, %v2613
        %2615 = vmatmul.f32.gmra.mxu0 %v1556
        %v2616 = vpop.f32.mrf.mxu0
        %v2617 = vadd.f32 %v2543, %v2616
        %2618 = vmatmul.f32.gmra.mxu0 %v1559
        %v2619 = vpop.f32.mrf.mxu0
        %v2620 = vadd.f32 %v2546, %v2619
        %2621 = vmatmul.f32.gmra.mxu0 %v1562
        %v2622 = vpop.f32.mrf.mxu0
        %v2623 = vadd.f32 %v2549, %v2622
        %2624 = vmatmul.f32.gmra.mxu0 %v1565
        %v2625 = vpop.f32.mrf.mxu0
        %v2626 = vadd.f32 %v2552, %v2625
        %2627 = vmatmul.f32.gmra.mxu0 %v1568
        %v2628 = vpop.f32.mrf.mxu0
        %v2629 = vadd.f32 %v2555, %v2628
        %2630 = vmatmul.f32.gmra.mxu0 %v1571
        %v2631 = vpop.f32.mrf.mxu0
        %v2632 = vadd.f32 %v2558, %v2631
        %2633 = vmatmul.f32.gmra.mxu0 %v1574
        %v2634 = vpop.f32.mrf.mxu0
        %v2635 = vadd.f32 %v2561, %v2634
        %2636 = vmatmul.f32.gmra.mxu0 %v1577
        %v2637 = vpop.f32.mrf.mxu0
        %v2638 = vadd.f32 %v2564, %v2637
        %2639 = vmatmul.f32.gmra.mxu0 %v1580
        %v2640 = vpop.f32.mrf.mxu0
        %v2641 = vadd.f32 %v2567, %v2640
        %2642 = vmatmul.f32.gmra.mxu0 %v1583
        %v2643 = vpop.f32.mrf.mxu0
        %v2644 = vadd.f32 %v2570, %v2643
        %2645 = vmatmul.f32.gmra.mxu0 %v1586
        %v2646 = vpop.f32.mrf.mxu0
        %v2647 = vadd.f32 %v2573, %v2646
        %2648 = vmatmul.f32.gmra.mxu0 %v1589
        %v2649 = vpop.f32.mrf.mxu0
        %v2650 = vadd.f32 %v2576, %v2649
        %2651 = vmatmul.f32.gmra.mxu0 %v1592
        %v2652 = vpop.f32.mrf.mxu0
        %v2653 = vadd.f32 %v2579, %v2652
        %2654 = vmatmul.f32.gmra.mxu0 %v1595
        %v2655 = vpop.f32.mrf.mxu0
        %v2656 = vadd.f32 %v2582, %v2655
        %2657 = vmatmul.f32.gmra.mxu0 %v1598
        %v2658 = vpop.f32.mrf.mxu0
        %v2659 = vadd.f32 %v2585, %v2658
        %2660 = vmatmul.f32.gmra.mxu0 %v1601
        %v2661 = vpop.f32.mrf.mxu0
        %v2662 = vadd.f32 %v2588, %v2661
        %2663 = vmatmul.f32.gmra.mxu0 %v1604
        %v2664 = vpop.f32.mrf.mxu0
        %v2665 = vadd.f32 %v2591, %v2664
        %2666 = vmatmul.f32.gmra.mxu0 %v1607
        %v2667 = vpop.f32.mrf.mxu0
        %v2668 = vadd.f32 %v2594, %v2667
        %2669 = vdwg.mxu0
        %2670 = vmatpush.msra.mxu0 %v1374
        %2671 = vmatpush.msra.mxu0 %v1366
        %2672 = vmatpush.msra.mxu0 %v1358
        %2673 = vmatpush.msra.mxu0 %v1350
        %2674 = vmatpush.msra.mxu0 %v1342
        %2675 = vmatpush.msra.mxu0 %v1334
        %2676 = vmatpush.msra.mxu0 %v1326
        %2677 = vmatpush.msra.mxu0 %v1318
        %2678 = vmatpush.msra.mxu0 %v1310
        %2679 = vmatpush.msra.mxu0 %v1302
        %2680 = vmatpush.msra.mxu0 %v1294
        %2681 = vmatpush.msra.mxu0 %v1286
        %2682 = vmatpush.msra.mxu0 %v1278
        %2683 = vmatpush.msra.mxu0 %v1270
        %2684 = vmatpush.msra.mxu0 %v1262
        %2685 = vmatpush.msra.mxu0 %v1254
        %2686 = vmatmul.f32.gmra.mxu0 %v1399
        %v2687 = vpop.f32.mrf.mxu0
        %v2688 = vadd.f32 %v1459, %v2687
        %2689 = vmatmul.f32.gmra.mxu0 %v1401
        %v2690 = vpop.f32.mrf.mxu0
        %v2691 = vadd.f32 %v1464, %v2690
        %2692 = vmatmul.f32.gmra.mxu0 %v1403
        %v2693 = vpop.f32.mrf.mxu0
        %v2694 = vadd.f32 %v1469, %v2693
        %2695 = vmatmul.f32.gmra.mxu0 %v1405
        %v2696 = vpop.f32.mrf.mxu0
        %v2697 = vadd.f32 %v1474, %v2696
        %2698 = vmatmul.f32.gmra.mxu0 %v1407
        %v2699 = vpop.f32.mrf.mxu0
        %v2700 = vadd.f32 %v1479, %v2699
        %2701 = vmatmul.f32.gmra.mxu0 %v1409
        %v2702 = vpop.f32.mrf.mxu0
        %v2703 = vadd.f32 %v1484, %v2702
        %2704 = vmatmul.f32.gmra.mxu0 %v1411
        %v2705 = vpop.f32.mrf.mxu0
        %v2706 = vadd.f32 %v1489, %v2705
        %2707 = vmatmul.f32.gmra.mxu0 %v1413
        %v2708 = vpop.f32.mrf.mxu0
        %v2709 = vadd.f32 %v1494, %v2708
        %2710 = vmatmul.f32.gmra.mxu0 %v1415
        %v2711 = vpop.f32.mrf.mxu0
        %v2712 = vadd.f32 %v1499, %v2711
        %2713 = vmatmul.f32.gmra.mxu0 %v1417
        %v2714 = vpop.f32.mrf.mxu0
        %v2715 = vadd.f32 %v1504, %v2714
        %2716 = vmatmul.f32.gmra.mxu0 %v1419
        %v2717 = vpop.f32.mrf.mxu0
        %v2718 = vadd.f32 %v1509, %v2717
        %2719 = vmatmul.f32.gmra.mxu0 %v1421
        %v2720 = vpop.f32.mrf.mxu0
        %v2721 = vadd.f32 %v1514, %v2720
        %2722 = vmatmul.f32.gmra.mxu0 %v1423
        %v2723 = vpop.f32.mrf.mxu0
        %v2724 = vadd.f32 %v1519, %v2723
        %2725 = vmatmul.f32.gmra.mxu0 %v1425
        %v2726 = vpop.f32.mrf.mxu0
        %v2727 = vadd.f32 %v1524, %v2726
        %2728 = vmatmul.f32.gmra.mxu0 %v1427
        %v2729 = vpop.f32.mrf.mxu0
        %v2730 = vadd.f32 %v1529, %v2729
        %2731 = vmatmul.f32.gmra.mxu0 %v1429
        %v2732 = vpop.f32.mrf.mxu0
        %v2733 = vadd.f32 %v1534, %v2732
        %2734 = vmatmul.f32.gmra.mxu0 %v1431
        %v2735 = vpop.f32.mrf.mxu0
        %v2736 = vadd.f32 %v1539, %v2735
        %2737 = vmatmul.f32.gmra.mxu0 %v1433
        %v2738 = vpop.f32.mrf.mxu0
        %v2739 = vadd.f32 %v1544, %v2738
        %2740 = vmatmul.f32.gmra.mxu0 %v1435
        %v2741 = vpop.f32.mrf.mxu0
        %v2742 = vadd.f32 %v1549, %v2741
        %2743 = vdwg.mxu0
        %2744 = vmatpush.msra.mxu0 0.0
        %2745 = vmatpush.msra.mxu0 0.0
        %2746 = vmatpush.msra.mxu0 0.0
        %2747 = vmatpush.msra.mxu0 0.0
        %2748 = vmatpush.msra.mxu0 0.0
        %2749 = vmatpush.msra.mxu0 0.0
        %2750 = vmatpush.msra.mxu0 0.0
        %2751 = vmatpush.msra.mxu0 0.0
        %2752 = vmatpush.msra.mxu0 0.0
        %2753 = vmatpush.msra.mxu0 0.0
        %2754 = vmatpush.msra.mxu0 0.0
        %2755 = vmatpush.msra.mxu0 0.0
        %2756 = vmatpush.msra.mxu0 0.0
        %2757 = vmatpush.msra.mxu0 %v1632
        %2758 = vmatpush.msra.mxu0 %v1390
        %2759 = vmatpush.msra.mxu0 %v1382
        %2760 = vmatmul.f32.gmra.mxu0 %v1553
        %v2761 = vpop.f32.mrf.mxu0
        %v2762 = vadd.f32 %v2688, %v2761
        %2763 = vmatmul.f32.gmra.mxu0 %v1556
        %v2764 = vpop.f32.mrf.mxu0
        %v2765 = vadd.f32 %v2691, %v2764
        %2766 = vmatmul.f32.gmra.mxu0 %v1559
        %v2767 = vpop.f32.mrf.mxu0
        %v2768 = vadd.f32 %v2694, %v2767
        %2769 = vmatmul.f32.gmra.mxu0 %v1562
        %v2770 = vpop.f32.mrf.mxu0
        %v2771 = vadd.f32 %v2697, %v2770
        %2772 = vmatmul.f32.gmra.mxu0 %v1565
        %v2773 = vpop.f32.mrf.mxu0
        %v2774 = vadd.f32 %v2700, %v2773
        %2775 = vmatmul.f32.gmra.mxu0 %v1568
        %v2776 = vpop.f32.mrf.mxu0
        %v2777 = vadd.f32 %v2703, %v2776
        %2778 = vmatmul.f32.gmra.mxu0 %v1571
        %v2779 = vpop.f32.mrf.mxu0
        %v2780 = vadd.f32 %v2706, %v2779
        %2781 = vmatmul.f32.gmra.mxu0 %v1574
        %v2782 = vpop.f32.mrf.mxu0
        %v2783 = vadd.f32 %v2709, %v2782
        %2784 = vmatmul.f32.gmra.mxu0 %v1577
        %v2785 = vpop.f32.mrf.mxu0
        %v2786 = vadd.f32 %v2712, %v2785
        %2787 = vmatmul.f32.gmra.mxu0 %v1580
        %v2788 = vpop.f32.mrf.mxu0
        %v2789 = vadd.f32 %v2715, %v2788
        %2790 = vmatmul.f32.gmra.mxu0 %v1583
        %v2791 = vpop.f32.mrf.mxu0
        %v2792 = vadd.f32 %v2718, %v2791
        %2793 = vmatmul.f32.gmra.mxu0 %v1586
        %v2794 = vpop.f32.mrf.mxu0
        %v2795 = vadd.f32 %v2721, %v2794
        %2796 = vmatmul.f32.gmra.mxu0 %v1589
        %v2797 = vpop.f32.mrf.mxu0
        %v2798 = vadd.f32 %v2724, %v2797
        %2799 = vmatmul.f32.gmra.mxu0 %v1592
        %v2800 = vpop.f32.mrf.mxu0
        %v2801 = vadd.f32 %v2727, %v2800
        %2802 = vmatmul.f32.gmra.mxu0 %v1595
        %v2803 = vpop.f32.mrf.mxu0
        %v2804 = vadd.f32 %v2730, %v2803
        %2805 = vmatmul.f32.gmra.mxu0 %v1598
        %v2806 = vpop.f32.mrf.mxu0
        %v2807 = vadd.f32 %v2733, %v2806
        %2808 = vmatmul.f32.gmra.mxu0 %v1601
        %v2809 = vpop.f32.mrf.mxu0
        %v2810 = vadd.f32 %v2736, %v2809
        %2811 = vmatmul.f32.gmra.mxu0 %v1604
        %v2812 = vpop.f32.mrf.mxu0
        %v2813 = vadd.f32 %v2739, %v2812
        %2814 = vmatmul.f32.gmra.mxu0 %v1607
        %v2815 = vpop.f32.mrf.mxu0
        %v2816 = vadd.f32 %v2742, %v2815
        %2817 = vdwg.mxu0
        %v2818 = vtanh.pop %v1726
        %v2819 = vtanh.pop %v1874
        %v2820 = vtanh.pop %v2022
        %v2821 = vtanh.pop %v2170
        %v2822 = vtanh.pop %v2318
        %v2823 = vtanh.pop %v2466
        %v2824 = vtanh.pop %v2614
        %v2825 = vtanh.pop %v2762
        %v2826 = vtanh.pop %v1729
        %v2827 = vtanh.pop %v1877
        %v2828 = vtanh.pop %v2025
        %v2829 = vtanh.pop %v2173
        %v2830 = vtanh.pop %v2321
        %v2831 = vtanh.pop %v2469
        %v2832 = vtanh.pop %v2617
        %v2833 = vtanh.pop %v2765
        %v2834 = vtanh.pop %v1732
        %v2835 = vtanh.pop %v1880
        %v2836 = vtanh.pop %v2028
        %v2837 = vtanh.pop %v2176
        %v2838 = vtanh.pop %v2324
        %v2839 = vtanh.pop %v2472
        %v2840 = vtanh.pop %v2620
        %v2841 = vtanh.pop %v2768
        %v2842 = vtanh.pop %v1735
        %v2843 = vtanh.pop %v1883
        %v2844 = vtanh.pop %v2031
        %v2845 = vtanh.pop %v2179
        %v2846 = vtanh.pop %v2327
        %v2847 = vtanh.pop %v2475
        %v2848 = vtanh.pop %v2623
        %v2849 = vtanh.pop %v2771
        %v2850 = vtanh.pop %v1738
        %v2851 = vtanh.pop %v1886
        %v2852 = vtanh.pop %v2034
        %v2853 = vtanh.pop %v2182
        %v2854 = vtanh.pop %v2330
        %v2855 = vtanh.pop %v2478
        %v2856 = vtanh.pop %v2626
        %v2857 = vtanh.pop %v2774
        %v2858 = vtanh.pop %v1741
        %v2859 = vtanh.pop %v1889
        %v2860 = vtanh.pop %v2037
        %v2861 = vtanh.pop %v2185
        %v2862 = vtanh.pop %v2333
        %v2863 = vtanh.pop %v2481
        %v2864 = vtanh.pop %v2629
        %v2865 = vtanh.pop %v2777
        %v2866 = vtanh.pop %v1744
        %v2867 = vtanh.pop %v1892
        %v2868 = vtanh.pop %v2040
        %v2869 = vtanh.pop %v2188
        %v2870 = vtanh.pop %v2336
        %v2871 = vtanh.pop %v2484
        %v2872 = vtanh.pop %v2632
        %v2873 = vtanh.pop %v2780
        %v2874 = vtanh.pop %v1747
        %v2875 = vtanh.pop %v1895
        %v2876 = vtanh.pop %v2043
        %v2877 = vtanh.pop %v2191
        %v2878 = vtanh.pop %v2339
        %v2879 = vtanh.pop %v2487
        %v2880 = vtanh.pop %v2635
        %v2881 = vtanh.pop %v2783
        %v2882 = vtanh.pop %v1750
        %v2883 = vtanh.pop %v1898
        %v2884 = vtanh.pop %v2046
        %v2885 = vtanh.pop %v2194
        %v2886 = vtanh.pop %v2342
        %v2887 = vtanh.pop %v2490
        %v2888 = vtanh.pop %v2638
        %v2889 = vtanh.pop %v2786
        %v2890 = vtanh.pop %v1753
        %v2891 = vtanh.pop %v1901
        %v2892 = vtanh.pop %v2049
        %v2893 = vtanh.pop %v2197
        %v2894 = vtanh.pop %v2345
        %v2895 = vtanh.pop %v2493
        %v2896 = vtanh.pop %v2641
        %v2897 = vtanh.pop %v2789
        %v2898 = vtanh.pop %v1756
        %v2899 = vtanh.pop %v1904
        %v2900 = vtanh.pop %v2052
        %v2901 = vtanh.pop %v2200
        %v2902 = vtanh.pop %v2348
        %v2903 = vtanh.pop %v2496
        %v2904 = vtanh.pop %v2644
        %v2905 = vtanh.pop %v2792
        %v2906 = vtanh.pop %v1759
        %v2907 = vtanh.pop %v1907
        %v2908 = vtanh.pop %v2055
        %v2909 = vtanh.pop %v2203
        %v2910 = vtanh.pop %v2351
        %v2911 = vtanh.pop %v2499
        %v2912 = vtanh.pop %v2647
        %v2913 = vtanh.pop %v2795
        %v2914 = vtanh.pop %v1762
        %v2915 = vtanh.pop %v1910
        %v2916 = vtanh.pop %v2058
        %v2917 = vtanh.pop %v2206
        %v2918 = vtanh.pop %v2354
        %v2919 = vtanh.pop %v2502
        %v2920 = vtanh.pop %v2650
        %v2921 = vtanh.pop %v2798
        %v2922 = vtanh.pop %v1765
        %v2923 = vtanh.pop %v1913
        %v2924 = vtanh.pop %v2061
        %v2925 = vtanh.pop %v2209
        %v2926 = vtanh.pop %v2357
        %v2927 = vtanh.pop %v2505
        %v2928 = vtanh.pop %v2653
        %v2929 = vtanh.pop %v2801
        %v2930 = vtanh.pop %v1768
        %v2931 = vtanh.pop %v1916
        %v2932 = vtanh.pop %v2064
        %v2933 = vtanh.pop %v2212
        %v2934 = vtanh.pop %v2360
        %v2935 = vtanh.pop %v2508
        %v2936 = vtanh.pop %v2656
        %v2937 = vtanh.pop %v2804
        %v2938 = vtanh.pop %v1771
        %v2939 = vtanh.pop %v1919
        %v2940 = vtanh.pop %v2067
        %v2941 = vtanh.pop %v2215
        %v2942 = vtanh.pop %v2363
        %v2943 = vtanh.pop %v2511
        %v2944 = vtanh.pop %v2659
        %v2945 = vtanh.pop %v2807
        %v2946 = vtanh.pop %v1774
        %v2947 = vtanh.pop %v1922
        %v2948 = vtanh.pop %v2070
        %v2949 = vtanh.pop %v2218
        %v2950 = vtanh.pop %v2366
        %v2951 = vtanh.pop %v2514
        %v2952 = vtanh.pop %v2662
        %v2953 = vtanh.pop %v2810
        %v2954 = vtanh.pop %v1777
        %v2955 = vtanh.pop %v1925
        %v2956 = vtanh.pop %v2073
        %v2957 = vtanh.pop %v2221
        %v2958 = vtanh.pop %v2369
        %v2959 = vtanh.pop %v2517
        %v2960 = vtanh.pop %v2665
        %v2961 = vtanh.pop %v2813
        %v2962 = vtanh.pop %v1780
        %v2963 = vtanh.pop %v1928
        %v2964 = vtanh.pop %v2076
        %v2965 = vtanh.pop %v2224
        %v2966 = vtanh.pop %v2372
        %v2967 = vtanh.pop %v2520
        %v2968 = vtanh.pop %v2668
        %v2969 = vtanh.pop %v2816
        %s2970 = scalar_lea.vmem [#allocation3], 304
        %v2971 = vld [vmem:[%s2970] sm:$0xff]
        %v2972 = vld [vmem:[%s2970 + $0x8] sm:$0xff]
        %v2973 = vld [vmem:[%s2970 + $0x10] sm:$0xff]
        %v2974 = vld [vmem:[%s2970 + $0x18] sm:$0xff]
        %v2975 = vld [vmem:[%s2970 + $0x20] sm:$0xff]
        %v2976 = vld [vmem:[%s2970 + $0x28] sm:$0xff]
        %v2977 = vld [vmem:[%s2970 + $0x30] sm:$0xff]
        %v2978 = vld [vmem:[%s2970 + $0x38] sm:$0xff]
        %v2979 = vld [vmem:[%s2970 + $0x40] sm:$0xff]
        %v2980 = vld [vmem:[%s2970 + $0x48] sm:$0xff]
        %v2981 = vld [vmem:[%s2970 + $0x50] sm:$0xff]
        %v2982 = vld [vmem:[%s2970 + $0x58] sm:$0xff]
        %v2983 = vld [vmem:[%s2970 + $0x60] sm:$0xff]
        %v2984 = vld [vmem:[%s2970 + $0x68] sm:$0xff]
        %v2985 = vld [vmem:[%s2970 + $0x70] sm:$0xff]
        %v2986 = vld [vmem:[%s2970 + $0x78] sm:$0xff]
        %v2987 = vld [vmem:[%s2970 + $0x80] sm:$0xff]
        %v2988 = vld [vmem:[%s2970 + $0x88] sm:$0xff]
        %v2989 = vld [vmem:[%s2970 + $0x90] sm:$0xff]
        %v2990 = vld [vmem:[%s2970 + $0x98] sm:$0xff]
        %v2991 = vld [vmem:[%s2970 + $0xa0] sm:$0xff]
        %v2992 = vld [vmem:[%s2970 + $0xa8] sm:$0xff]
        %v2993 = vld [vmem:[%s2970 + $0xb0] sm:$0xff]
        %v2994 = vld [vmem:[%s2970 + $0xb8] sm:$0xff]
        %v2995 = vld [vmem:[%s2970 + $0xc0] sm:$0xff]
        %v2996 = vld [vmem:[%s2970 + $0xc8] sm:$0xff]
        %v2997 = vld [vmem:[%s2970 + $0xd0] sm:$0xff]
        %v2998 = vld [vmem:[%s2970 + $0xd8] sm:$0xff]
        %v2999 = vld [vmem:[%s2970 + $0xe0] sm:$0xff]
        %v3000 = vld [vmem:[%s2970 + $0xe8] sm:$0xff]
        %v3001 = vld [vmem:[%s2970 + $0xf0] sm:$0xff]
        %v3002 = vld [vmem:[%s2970 + $0xf8] sm:$0xff]
        %v3003 = vld [vmem:[%s2970 + $0x100] sm:$0xff]
        %v3004 = vld [vmem:[%s2970 + $0x108] sm:$0xff]
        %v3005 = vld [vmem:[%s2970 + $0x110] sm:$0xff]
        %v3006 = vld [vmem:[%s2970 + $0x118] sm:$0xff]
        %v3007 = vld [vmem:[%s2970 + $0x120] sm:$0x3f]
        %v3008 = vld [vmem:[%s2970 + $0x128] sm:$0x3f]
        %s3009 = scalar_lea.vmem %s4, 152
        %v3010 = vld [vmem:[%s3009] sm:$0xff]
        %v3011 = vld [vmem:[%s3009 + $0x8] sm:$0xff]
        %v3012 = vld [vmem:[%s3009 + $0x10] sm:$0xff]
        %v3013 = vld [vmem:[%s3009 + $0x18] sm:$0xff]
        %v3014 = vld [vmem:[%s3009 + $0x20] sm:$0xff]
        %v3015 = vld [vmem:[%s3009 + $0x28] sm:$0xff]
        %v3016 = vld [vmem:[%s3009 + $0x30] sm:$0xff]
        %v3017 = vld [vmem:[%s3009 + $0x38] sm:$0xff]
        %v3018 = vld [vmem:[%s3009 + $0x40] sm:$0xff]
        %v3019 = vld [vmem:[%s3009 + $0x48] sm:$0xff]
        %v3020 = vld [vmem:[%s3009 + $0x50] sm:$0xff]
        %v3021 = vld [vmem:[%s3009 + $0x58] sm:$0xff]
        %v3022 = vld [vmem:[%s3009 + $0x60] sm:$0xff]
        %v3023 = vld [vmem:[%s3009 + $0x68] sm:$0xff]
        %v3024 = vld [vmem:[%s3009 + $0x70] sm:$0xff]
        %v3025 = vld [vmem:[%s3009 + $0x78] sm:$0xff]
        %v3026 = vld [vmem:[%s3009 + $0x80] sm:$0xff]
        %v3027 = vld [vmem:[%s3009 + $0x88] sm:$0xff]
        %v3028 = vld [vmem:[%s3009 + $0x90] sm:$0x3f]
        %3030 = vset.pattern.permute.xlu0 0
        %3031 = vperm.xlu0 %3030, %v3010
        %v3032 = vpop.permute.xlu0 %3031
        %3035 = vset.pattern.permute.xlu0 0
        %3036 = vperm.xlu0 %3035, %v3011
        %v3037 = vpop.permute.xlu0 %3036
        %3040 = vset.pattern.permute.xlu0 0
        %3041 = vperm.xlu0 %3040, %v3012
        %v3042 = vpop.permute.xlu0 %3041
        %3045 = vset.pattern.permute.xlu0 0
        %3046 = vperm.xlu0 %3045, %v3013
        %v3047 = vpop.permute.xlu0 %3046
        %3050 = vset.pattern.permute.xlu0 0
        %3051 = vperm.xlu0 %3050, %v3014
        %v3052 = vpop.permute.xlu0 %3051
        %3055 = vset.pattern.permute.xlu0 0
        %3056 = vperm.xlu0 %3055, %v3015
        %v3057 = vpop.permute.xlu0 %3056
        %3060 = vset.pattern.permute.xlu0 0
        %3061 = vperm.xlu0 %3060, %v3016
        %v3062 = vpop.permute.xlu0 %3061
        %3065 = vset.pattern.permute.xlu0 0
        %3066 = vperm.xlu0 %3065, %v3017
        %v3067 = vpop.permute.xlu0 %3066
        %3070 = vset.pattern.permute.xlu0 0
        %3071 = vperm.xlu0 %3070, %v3018
        %v3072 = vpop.permute.xlu0 %3071
        %3075 = vset.pattern.permute.xlu0 0
        %3076 = vperm.xlu0 %3075, %v3019
        %v3077 = vpop.permute.xlu0 %3076
        %3080 = vset.pattern.permute.xlu0 0
        %3081 = vperm.xlu0 %3080, %v3020
        %v3082 = vpop.permute.xlu0 %3081
        %3085 = vset.pattern.permute.xlu0 0
        %3086 = vperm.xlu0 %3085, %v3021
        %v3087 = vpop.permute.xlu0 %3086
        %3090 = vset.pattern.permute.xlu0 0
        %3091 = vperm.xlu0 %3090, %v3022
        %v3092 = vpop.permute.xlu0 %3091
        %3095 = vset.pattern.permute.xlu0 0
        %3096 = vperm.xlu0 %3095, %v3023
        %v3097 = vpop.permute.xlu0 %3096
        %3100 = vset.pattern.permute.xlu0 0
        %3101 = vperm.xlu0 %3100, %v3024
        %v3102 = vpop.permute.xlu0 %3101
        %3105 = vset.pattern.permute.xlu0 0
        %3106 = vperm.xlu0 %3105, %v3025
        %v3107 = vpop.permute.xlu0 %3106
        %3110 = vset.pattern.permute.xlu0 0
        %3111 = vperm.xlu0 %3110, %v3026
        %v3112 = vpop.permute.xlu0 %3111
        %3115 = vset.pattern.permute.xlu0 0
        %3116 = vperm.xlu0 %3115, %v3027
        %v3117 = vpop.permute.xlu0 %3116
        %3120 = vset.pattern.permute.xlu0 0
        %3121 = vperm.xlu0 %3120, %v3028
        %v3122 = vpop.permute.xlu0 %3121
        %v3125 = vsel %vm1551, %v2972, 0
        %v3128 = vsel %vm1551, %v2974, 0
        %v3131 = vsel %vm1551, %v2976, 0
        %v3134 = vsel %vm1551, %v2978, 0
        %v3137 = vsel %vm1551, %v2980, 0
        %v3140 = vsel %vm1551, %v2982, 0
        %v3143 = vsel %vm1551, %v2984, 0
        %v3146 = vsel %vm1551, %v2986, 0
        %v3149 = vsel %vm1551, %v2988, 0
        %v3152 = vsel %vm1551, %v2990, 0
        %v3155 = vsel %vm1551, %v2992, 0
        %v3158 = vsel %vm1551, %v2994, 0
        %v3161 = vsel %vm1551, %v2996, 0
        %v3164 = vsel %vm1551, %v2998, 0
        %v3167 = vsel %vm1551, %v3000, 0
        %v3170 = vsel %vm1551, %v3002, 0
        %v3173 = vsel %vm1551, %v3004, 0
        %v3176 = vsel %vm1551, %v3006, 0
        %v3179 = vsel %vm1551, %v3008, 0
        %v3182 = vsel %vm1609, %v2962, 0
        %v3185 = vsel %vm1609, %v2963, 0
        %v3188 = vsel %vm1609, %v2964, 0
        %v3191 = vsel %vm1609, %v2965, 0
        %v3194 = vsel %vm1609, %v2966, 0
        %v3197 = vsel %vm1609, %v2967, 0
        %v3200 = vsel %vm1609, %v2968, 0
        %v3203 = vsel %vm1609, %v2969, 0
        %3205 = vmatpush.msra.mxu0 %v2938
        %3206 = vmatpush.msra.mxu0 %v2930
        %3207 = vmatpush.msra.mxu0 %v2922
        %3208 = vmatpush.msra.mxu0 %v2914
        %3209 = vmatpush.msra.mxu0 %v2906
        %3210 = vmatpush.msra.mxu0 %v2898
        %3211 = vmatpush.msra.mxu0 %v2890
        %3212 = vmatpush.msra.mxu0 %v2882
        %3213 = vmatpush.msra.mxu0 %v2874
        %3214 = vmatpush.msra.mxu0 %v2866
        %3215 = vmatpush.msra.mxu0 %v2858
        %3216 = vmatpush.msra.mxu0 %v2850
        %3217 = vmatpush.msra.mxu0 %v2842
        %3218 = vmatpush.msra.mxu0 %v2834
        %3219 = vmatpush.msra.mxu0 %v2826
        %3220 = vmatpush.msra.mxu0 %v2818
        %3221 = vmatmul.f32.gmra.mxu0 %v2971
        %v3222 = vpop.f32.mrf.mxu0
        %v3223 = vadd.f32 %v3032, %v3222
        %3224 = vmatmul.f32.gmra.mxu0 %v2973
        %v3225 = vpop.f32.mrf.mxu0
        %v3226 = vadd.f32 %v3037, %v3225
        %3227 = vmatmul.f32.gmra.mxu0 %v2975
        %v3228 = vpop.f32.mrf.mxu0
        %v3229 = vadd.f32 %v3042, %v3228
        %3230 = vmatmul.f32.gmra.mxu0 %v2977
        %v3231 = vpop.f32.mrf.mxu0
        %v3232 = vadd.f32 %v3047, %v3231
        %3233 = vmatmul.f32.gmra.mxu0 %v2979
        %v3234 = vpop.f32.mrf.mxu0
        %v3235 = vadd.f32 %v3052, %v3234
        %3236 = vmatmul.f32.gmra.mxu0 %v2981
        %v3237 = vpop.f32.mrf.mxu0
        %v3238 = vadd.f32 %v3057, %v3237
        %3239 = vmatmul.f32.gmra.mxu0 %v2983
        %v3240 = vpop.f32.mrf.mxu0
        %v3241 = vadd.f32 %v3062, %v3240
        %3242 = vmatmul.f32.gmra.mxu0 %v2985
        %v3243 = vpop.f32.mrf.mxu0
        %v3244 = vadd.f32 %v3067, %v3243
        %3245 = vmatmul.f32.gmra.mxu0 %v2987
        %v3246 = vpop.f32.mrf.mxu0
        %v3247 = vadd.f32 %v3072, %v3246
        %3248 = vmatmul.f32.gmra.mxu0 %v2989
        %v3249 = vpop.f32.mrf.mxu0
        %v3250 = vadd.f32 %v3077, %v3249
        %3251 = vmatmul.f32.gmra.mxu0 %v2991
        %v3252 = vpop.f32.mrf.mxu0
        %v3253 = vadd.f32 %v3082, %v3252
        %3254 = vmatmul.f32.gmra.mxu0 %v2993
        %v3255 = vpop.f32.mrf.mxu0
        %v3256 = vadd.f32 %v3087, %v3255
        %3257 = vmatmul.f32.gmra.mxu0 %v2995
        %v3258 = vpop.f32.mrf.mxu0
        %v3259 = vadd.f32 %v3092, %v3258
        %3260 = vmatmul.f32.gmra.mxu0 %v2997
        %v3261 = vpop.f32.mrf.mxu0
        %v3262 = vadd.f32 %v3097, %v3261
        %3263 = vmatmul.f32.gmra.mxu0 %v2999
        %v3264 = vpop.f32.mrf.mxu0
        %v3265 = vadd.f32 %v3102, %v3264
        %3266 = vmatmul.f32.gmra.mxu0 %v3001
        %v3267 = vpop.f32.mrf.mxu0
        %v3268 = vadd.f32 %v3107, %v3267
        %3269 = vmatmul.f32.gmra.mxu0 %v3003
        %v3270 = vpop.f32.mrf.mxu0
        %v3271 = vadd.f32 %v3112, %v3270
        %3272 = vmatmul.f32.gmra.mxu0 %v3005
        %v3273 = vpop.f32.mrf.mxu0
        %v3274 = vadd.f32 %v3117, %v3273
        %3275 = vmatmul.f32.gmra.mxu0 %v3007
        %v3276 = vpop.f32.mrf.mxu0
        %v3277 = vadd.f32 %v3122, %v3276
        %3278 = vdwg.mxu0
        %3279 = vmatpush.msra.mxu0 0.0
        %3280 = vmatpush.msra.mxu0 0.0
        %3281 = vmatpush.msra.mxu0 0.0
        %3282 = vmatpush.msra.mxu0 0.0
        %3283 = vmatpush.msra.mxu0 0.0
        %3284 = vmatpush.msra.mxu0 0.0
        %3285 = vmatpush.msra.mxu0 0.0
        %3286 = vmatpush.msra.mxu0 0.0
        %3287 = vmatpush.msra.mxu0 0.0
        %3288 = vmatpush.msra.mxu0 0.0
        %3289 = vmatpush.msra.mxu0 0.0
        %3290 = vmatpush.msra.mxu0 0.0
        %3291 = vmatpush.msra.mxu0 0.0
        %3292 = vmatpush.msra.mxu0 %v3182
        %3293 = vmatpush.msra.mxu0 %v2954
        %3294 = vmatpush.msra.mxu0 %v2946
        %3295 = vmatmul.f32.gmra.mxu0 %v3125
        %v3296 = vpop.f32.mrf.mxu0
        %v3297 = vadd.f32 %v3223, %v3296
        %3298 = vmatmul.f32.gmra.mxu0 %v3128
        %v3299 = vpop.f32.mrf.mxu0
        %v3300 = vadd.f32 %v3226, %v3299
        %3301 = vmatmul.f32.gmra.mxu0 %v3131
        %v3302 = vpop.f32.mrf.mxu0
        %v3303 = vadd.f32 %v3229, %v3302
        %3304 = vmatmul.f32.gmra.mxu0 %v3134
        %v3305 = vpop.f32.mrf.mxu0
        %v3306 = vadd.f32 %v3232, %v3305
        %3307 = vmatmul.f32.gmra.mxu0 %v3137
        %v3308 = vpop.f32.mrf.mxu0
        %v3309 = vadd.f32 %v3235, %v3308
        %3310 = vmatmul.f32.gmra.mxu0 %v3140
        %v3311 = vpop.f32.mrf.mxu0
        %v3312 = vadd.f32 %v3238, %v3311
        %3313 = vmatmul.f32.gmra.mxu0 %v3143
        %v3314 = vpop.f32.mrf.mxu0
        %v3315 = vadd.f32 %v3241, %v3314
        %3316 = vmatmul.f32.gmra.mxu0 %v3146
        %v3317 = vpop.f32.mrf.mxu0
        %v3318 = vadd.f32 %v3244, %v3317
        %3319 = vmatmul.f32.gmra.mxu0 %v3149
        %v3320 = vpop.f32.mrf.mxu0
        %v3321 = vadd.f32 %v3247, %v3320
        %3322 = vmatmul.f32.gmra.mxu0 %v3152
        %v3323 = vpop.f32.mrf.mxu0
        %v3324 = vadd.f32 %v3250, %v3323
        %3325 = vmatmul.f32.gmra.mxu0 %v3155
        %v3326 = vpop.f32.mrf.mxu0
        %v3327 = vadd.f32 %v3253, %v3326
        %3328 = vmatmul.f32.gmra.mxu0 %v3158
        %v3329 = vpop.f32.mrf.mxu0
        %v3330 = vadd.f32 %v3256, %v3329
        %3331 = vmatmul.f32.gmra.mxu0 %v3161
        %v3332 = vpop.f32.mrf.mxu0
        %v3333 = vadd.f32 %v3259, %v3332
        %3334 = vmatmul.f32.gmra.mxu0 %v3164
        %v3335 = vpop.f32.mrf.mxu0
        %v3336 = vadd.f32 %v3262, %v3335
        %3337 = vmatmul.f32.gmra.mxu0 %v3167
        %v3338 = vpop.f32.mrf.mxu0
        %v3339 = vadd.f32 %v3265, %v3338
        %3340 = vmatmul.f32.gmra.mxu0 %v3170
        %v3341 = vpop.f32.mrf.mxu0
        %v3342 = vadd.f32 %v3268, %v3341
        %3343 = vmatmul.f32.gmra.mxu0 %v3173
        %v3344 = vpop.f32.mrf.mxu0
        %v3345 = vadd.f32 %v3271, %v3344
        %3346 = vmatmul.f32.gmra.mxu0 %v3176
        %v3347 = vpop.f32.mrf.mxu0
        %v3348 = vadd.f32 %v3274, %v3347
        %3349 = vmatmul.f32.gmra.mxu0 %v3179
        %v3350 = vpop.f32.mrf.mxu0
        %v3351 = vadd.f32 %v3277, %v3350
        %3352 = vdwg.mxu0
        %3353 = vmatpush.msra.mxu0 %v2939
        %3354 = vmatpush.msra.mxu0 %v2931
        %3355 = vmatpush.msra.mxu0 %v2923
        %3356 = vmatpush.msra.mxu0 %v2915
        %3357 = vmatpush.msra.mxu0 %v2907
        %3358 = vmatpush.msra.mxu0 %v2899
        %3359 = vmatpush.msra.mxu0 %v2891
        %3360 = vmatpush.msra.mxu0 %v2883
        %3361 = vmatpush.msra.mxu0 %v2875
        %3362 = vmatpush.msra.mxu0 %v2867
        %3363 = vmatpush.msra.mxu0 %v2859
        %3364 = vmatpush.msra.mxu0 %v2851
        %3365 = vmatpush.msra.mxu0 %v2843
        %3366 = vmatpush.msra.mxu0 %v2835
        %3367 = vmatpush.msra.mxu0 %v2827
        %3368 = vmatpush.msra.mxu0 %v2819
        %3369 = vmatmul.f32.gmra.mxu0 %v2971
        %v3370 = vpop.f32.mrf.mxu0
        %v3371 = vadd.f32 %v3032, %v3370
        %3372 = vmatmul.f32.gmra.mxu0 %v2973
        %v3373 = vpop.f32.mrf.mxu0
        %v3374 = vadd.f32 %v3037, %v3373
        %3375 = vmatmul.f32.gmra.mxu0 %v2975
        %v3376 = vpop.f32.mrf.mxu0
        %v3377 = vadd.f32 %v3042, %v3376
        %3378 = vmatmul.f32.gmra.mxu0 %v2977
        %v3379 = vpop.f32.mrf.mxu0
        %v3380 = vadd.f32 %v3047, %v3379
        %3381 = vmatmul.f32.gmra.mxu0 %v2979
        %v3382 = vpop.f32.mrf.mxu0
        %v3383 = vadd.f32 %v3052, %v3382
        %3384 = vmatmul.f32.gmra.mxu0 %v2981
        %v3385 = vpop.f32.mrf.mxu0
        %v3386 = vadd.f32 %v3057, %v3385
        %3387 = vmatmul.f32.gmra.mxu0 %v2983
        %v3388 = vpop.f32.mrf.mxu0
        %v3389 = vadd.f32 %v3062, %v3388
        %3390 = vmatmul.f32.gmra.mxu0 %v2985
        %v3391 = vpop.f32.mrf.mxu0
        %v3392 = vadd.f32 %v3067, %v3391
        %3393 = vmatmul.f32.gmra.mxu0 %v2987
        %v3394 = vpop.f32.mrf.mxu0
        %v3395 = vadd.f32 %v3072, %v3394
        %3396 = vmatmul.f32.gmra.mxu0 %v2989
        %v3397 = vpop.f32.mrf.mxu0
        %v3398 = vadd.f32 %v3077, %v3397
        %3399 = vmatmul.f32.gmra.mxu0 %v2991
        %v3400 = vpop.f32.mrf.mxu0
        %v3401 = vadd.f32 %v3082, %v3400
        %3402 = vmatmul.f32.gmra.mxu0 %v2993
        %v3403 = vpop.f32.mrf.mxu0
        %v3404 = vadd.f32 %v3087, %v3403
        %3405 = vmatmul.f32.gmra.mxu0 %v2995
        %v3406 = vpop.f32.mrf.mxu0
        %v3407 = vadd.f32 %v3092, %v3406
        %3408 = vmatmul.f32.gmra.mxu0 %v2997
        %v3409 = vpop.f32.mrf.mxu0
        %v3410 = vadd.f32 %v3097, %v3409
        %3411 = vmatmul.f32.gmra.mxu0 %v2999
        %v3412 = vpop.f32.mrf.mxu0
        %v3413 = vadd.f32 %v3102, %v3412
        %3414 = vmatmul.f32.gmra.mxu0 %v3001
        %v3415 = vpop.f32.mrf.mxu0
        %v3416 = vadd.f32 %v3107, %v3415
        %3417 = vmatmul.f32.gmra.mxu0 %v3003
        %v3418 = vpop.f32.mrf.mxu0
        %v3419 = vadd.f32 %v3112, %v3418
        %3420 = vmatmul.f32.gmra.mxu0 %v3005
        %v3421 = vpop.f32.mrf.mxu0
        %v3422 = vadd.f32 %v3117, %v3421
        %3423 = vmatmul.f32.gmra.mxu0 %v3007
        %v3424 = vpop.f32.mrf.mxu0
        %v3425 = vadd.f32 %v3122, %v3424
        %3426 = vdwg.mxu0
        %3427 = vmatpush.msra.mxu0 0.0
        %3428 = vmatpush.msra.mxu0 0.0
        %3429 = vmatpush.msra.mxu0 0.0
        %3430 = vmatpush.msra.mxu0 0.0
        %3431 = vmatpush.msra.mxu0 0.0
        %3432 = vmatpush.msra.mxu0 0.0
        %3433 = vmatpush.msra.mxu0 0.0
        %3434 = vmatpush.msra.mxu0 0.0
        %3435 = vmatpush.msra.mxu0 0.0
        %3436 = vmatpush.msra.mxu0 0.0
        %3437 = vmatpush.msra.mxu0 0.0
        %3438 = vmatpush.msra.mxu0 0.0
        %3439 = vmatpush.msra.mxu0 0.0
        %3440 = vmatpush.msra.mxu0 %v3185
        %3441 = vmatpush.msra.mxu0 %v2955
        %3442 = vmatpush.msra.mxu0 %v2947
        %3443 = vmatmul.f32.gmra.mxu0 %v3125
        %v3444 = vpop.f32.mrf.mxu0
        %v3445 = vadd.f32 %v3371, %v3444
        %3446 = vmatmul.f32.gmra.mxu0 %v3128
        %v3447 = vpop.f32.mrf.mxu0
        %v3448 = vadd.f32 %v3374, %v3447
        %3449 = vmatmul.f32.gmra.mxu0 %v3131
        %v3450 = vpop.f32.mrf.mxu0
        %v3451 = vadd.f32 %v3377, %v3450
        %3452 = vmatmul.f32.gmra.mxu0 %v3134
        %v3453 = vpop.f32.mrf.mxu0
        %v3454 = vadd.f32 %v3380, %v3453
        %3455 = vmatmul.f32.gmra.mxu0 %v3137
        %v3456 = vpop.f32.mrf.mxu0
        %v3457 = vadd.f32 %v3383, %v3456
        %3458 = vmatmul.f32.gmra.mxu0 %v3140
        %v3459 = vpop.f32.mrf.mxu0
        %v3460 = vadd.f32 %v3386, %v3459
        %3461 = vmatmul.f32.gmra.mxu0 %v3143
        %v3462 = vpop.f32.mrf.mxu0
        %v3463 = vadd.f32 %v3389, %v3462
        %3464 = vmatmul.f32.gmra.mxu0 %v3146
        %v3465 = vpop.f32.mrf.mxu0
        %v3466 = vadd.f32 %v3392, %v3465
        %3467 = vmatmul.f32.gmra.mxu0 %v3149
        %v3468 = vpop.f32.mrf.mxu0
        %v3469 = vadd.f32 %v3395, %v3468
        %3470 = vmatmul.f32.gmra.mxu0 %v3152
        %v3471 = vpop.f32.mrf.mxu0
        %v3472 = vadd.f32 %v3398, %v3471
        %3473 = vmatmul.f32.gmra.mxu0 %v3155
        %v3474 = vpop.f32.mrf.mxu0
        %v3475 = vadd.f32 %v3401, %v3474
        %3476 = vmatmul.f32.gmra.mxu0 %v3158
        %v3477 = vpop.f32.mrf.mxu0
        %v3478 = vadd.f32 %v3404, %v3477
        %3479 = vmatmul.f32.gmra.mxu0 %v3161
        %v3480 = vpop.f32.mrf.mxu0
        %v3481 = vadd.f32 %v3407, %v3480
        %3482 = vmatmul.f32.gmra.mxu0 %v3164
        %v3483 = vpop.f32.mrf.mxu0
        %v3484 = vadd.f32 %v3410, %v3483
        %3485 = vmatmul.f32.gmra.mxu0 %v3167
        %v3486 = vpop.f32.mrf.mxu0
        %v3487 = vadd.f32 %v3413, %v3486
        %3488 = vmatmul.f32.gmra.mxu0 %v3170
        %v3489 = vpop.f32.mrf.mxu0
        %v3490 = vadd.f32 %v3416, %v3489
        %3491 = vmatmul.f32.gmra.mxu0 %v3173
        %v3492 = vpop.f32.mrf.mxu0
        %v3493 = vadd.f32 %v3419, %v3492
        %3494 = vmatmul.f32.gmra.mxu0 %v3176
        %v3495 = vpop.f32.mrf.mxu0
        %v3496 = vadd.f32 %v3422, %v3495
        %3497 = vmatmul.f32.gmra.mxu0 %v3179
        %v3498 = vpop.f32.mrf.mxu0
        %v3499 = vadd.f32 %v3425, %v3498
        %3500 = vdwg.mxu0
        %3501 = vmatpush.msra.mxu0 %v2940
        %3502 = vmatpush.msra.mxu0 %v2932
        %3503 = vmatpush.msra.mxu0 %v2924
        %3504 = vmatpush.msra.mxu0 %v2916
        %3505 = vmatpush.msra.mxu0 %v2908
        %3506 = vmatpush.msra.mxu0 %v2900
        %3507 = vmatpush.msra.mxu0 %v2892
        %3508 = vmatpush.msra.mxu0 %v2884
        %3509 = vmatpush.msra.mxu0 %v2876
        %3510 = vmatpush.msra.mxu0 %v2868
        %3511 = vmatpush.msra.mxu0 %v2860
        %3512 = vmatpush.msra.mxu0 %v2852
        %3513 = vmatpush.msra.mxu0 %v2844
        %3514 = vmatpush.msra.mxu0 %v2836
        %3515 = vmatpush.msra.mxu0 %v2828
        %3516 = vmatpush.msra.mxu0 %v2820
        %3517 = vmatmul.f32.gmra.mxu0 %v2971
        %v3518 = vpop.f32.mrf.mxu0
        %v3519 = vadd.f32 %v3032, %v3518
        %3520 = vmatmul.f32.gmra.mxu0 %v2973
        %v3521 = vpop.f32.mrf.mxu0
        %v3522 = vadd.f32 %v3037, %v3521
        %3523 = vmatmul.f32.gmra.mxu0 %v2975
        %v3524 = vpop.f32.mrf.mxu0
        %v3525 = vadd.f32 %v3042, %v3524
        %3526 = vmatmul.f32.gmra.mxu0 %v2977
        %v3527 = vpop.f32.mrf.mxu0
        %v3528 = vadd.f32 %v3047, %v3527
        %3529 = vmatmul.f32.gmra.mxu0 %v2979
        %v3530 = vpop.f32.mrf.mxu0
        %v3531 = vadd.f32 %v3052, %v3530
        %3532 = vmatmul.f32.gmra.mxu0 %v2981
        %v3533 = vpop.f32.mrf.mxu0
        %v3534 = vadd.f32 %v3057, %v3533
        %3535 = vmatmul.f32.gmra.mxu0 %v2983
        %v3536 = vpop.f32.mrf.mxu0
        %v3537 = vadd.f32 %v3062, %v3536
        %3538 = vmatmul.f32.gmra.mxu0 %v2985
        %v3539 = vpop.f32.mrf.mxu0
        %v3540 = vadd.f32 %v3067, %v3539
        %3541 = vmatmul.f32.gmra.mxu0 %v2987
        %v3542 = vpop.f32.mrf.mxu0
        %v3543 = vadd.f32 %v3072, %v3542
        %3544 = vmatmul.f32.gmra.mxu0 %v2989
        %v3545 = vpop.f32.mrf.mxu0
        %v3546 = vadd.f32 %v3077, %v3545
        %3547 = vmatmul.f32.gmra.mxu0 %v2991
        %v3548 = vpop.f32.mrf.mxu0
        %v3549 = vadd.f32 %v3082, %v3548
        %3550 = vmatmul.f32.gmra.mxu0 %v2993
        %v3551 = vpop.f32.mrf.mxu0
        %v3552 = vadd.f32 %v3087, %v3551
        %3553 = vmatmul.f32.gmra.mxu0 %v2995
        %v3554 = vpop.f32.mrf.mxu0
        %v3555 = vadd.f32 %v3092, %v3554
        %3556 = vmatmul.f32.gmra.mxu0 %v2997
        %v3557 = vpop.f32.mrf.mxu0
        %v3558 = vadd.f32 %v3097, %v3557
        %3559 = vmatmul.f32.gmra.mxu0 %v2999
        %v3560 = vpop.f32.mrf.mxu0
        %v3561 = vadd.f32 %v3102, %v3560
        %3562 = vmatmul.f32.gmra.mxu0 %v3001
        %v3563 = vpop.f32.mrf.mxu0
        %v3564 = vadd.f32 %v3107, %v3563
        %3565 = vmatmul.f32.gmra.mxu0 %v3003
        %v3566 = vpop.f32.mrf.mxu0
        %v3567 = vadd.f32 %v3112, %v3566
        %3568 = vmatmul.f32.gmra.mxu0 %v3005
        %v3569 = vpop.f32.mrf.mxu0
        %v3570 = vadd.f32 %v3117, %v3569
        %3571 = vmatmul.f32.gmra.mxu0 %v3007
        %v3572 = vpop.f32.mrf.mxu0
        %v3573 = vadd.f32 %v3122, %v3572
        %3574 = vdwg.mxu0
        %3575 = vmatpush.msra.mxu0 0.0
        %3576 = vmatpush.msra.mxu0 0.0
        %3577 = vmatpush.msra.mxu0 0.0
        %3578 = vmatpush.msra.mxu0 0.0
        %3579 = vmatpush.msra.mxu0 0.0
        %3580 = vmatpush.msra.mxu0 0.0
        %3581 = vmatpush.msra.mxu0 0.0
        %3582 = vmatpush.msra.mxu0 0.0
        %3583 = vmatpush.msra.mxu0 0.0
        %3584 = vmatpush.msra.mxu0 0.0
        %3585 = vmatpush.msra.mxu0 0.0
        %3586 = vmatpush.msra.mxu0 0.0
        %3587 = vmatpush.msra.mxu0 0.0
        %3588 = vmatpush.msra.mxu0 %v3188
        %3589 = vmatpush.msra.mxu0 %v2956
        %3590 = vmatpush.msra.mxu0 %v2948
        %3591 = vmatmul.f32.gmra.mxu0 %v3125
        %v3592 = vpop.f32.mrf.mxu0
        %v3593 = vadd.f32 %v3519, %v3592
        %3594 = vmatmul.f32.gmra.mxu0 %v3128
        %v3595 = vpop.f32.mrf.mxu0
        %v3596 = vadd.f32 %v3522, %v3595
        %3597 = vmatmul.f32.gmra.mxu0 %v3131
        %v3598 = vpop.f32.mrf.mxu0
        %v3599 = vadd.f32 %v3525, %v3598
        %3600 = vmatmul.f32.gmra.mxu0 %v3134
        %v3601 = vpop.f32.mrf.mxu0
        %v3602 = vadd.f32 %v3528, %v3601
        %3603 = vmatmul.f32.gmra.mxu0 %v3137
        %v3604 = vpop.f32.mrf.mxu0
        %v3605 = vadd.f32 %v3531, %v3604
        %3606 = vmatmul.f32.gmra.mxu0 %v3140
        %v3607 = vpop.f32.mrf.mxu0
        %v3608 = vadd.f32 %v3534, %v3607
        %3609 = vmatmul.f32.gmra.mxu0 %v3143
        %v3610 = vpop.f32.mrf.mxu0
        %v3611 = vadd.f32 %v3537, %v3610
        %3612 = vmatmul.f32.gmra.mxu0 %v3146
        %v3613 = vpop.f32.mrf.mxu0
        %v3614 = vadd.f32 %v3540, %v3613
        %3615 = vmatmul.f32.gmra.mxu0 %v3149
        %v3616 = vpop.f32.mrf.mxu0
        %v3617 = vadd.f32 %v3543, %v3616
        %3618 = vmatmul.f32.gmra.mxu0 %v3152
        %v3619 = vpop.f32.mrf.mxu0
        %v3620 = vadd.f32 %v3546, %v3619
        %3621 = vmatmul.f32.gmra.mxu0 %v3155
        %v3622 = vpop.f32.mrf.mxu0
        %v3623 = vadd.f32 %v3549, %v3622
        %3624 = vmatmul.f32.gmra.mxu0 %v3158
        %v3625 = vpop.f32.mrf.mxu0
        %v3626 = vadd.f32 %v3552, %v3625
        %3627 = vmatmul.f32.gmra.mxu0 %v3161
        %v3628 = vpop.f32.mrf.mxu0
        %v3629 = vadd.f32 %v3555, %v3628
        %3630 = vmatmul.f32.gmra.mxu0 %v3164
        %v3631 = vpop.f32.mrf.mxu0
        %v3632 = vadd.f32 %v3558, %v3631
        %3633 = vmatmul.f32.gmra.mxu0 %v3167
        %v3634 = vpop.f32.mrf.mxu0
        %v3635 = vadd.f32 %v3561, %v3634
        %3636 = vmatmul.f32.gmra.mxu0 %v3170
        %v3637 = vpop.f32.mrf.mxu0
        %v3638 = vadd.f32 %v3564, %v3637
        %3639 = vmatmul.f32.gmra.mxu0 %v3173
        %v3640 = vpop.f32.mrf.mxu0
        %v3641 = vadd.f32 %v3567, %v3640
        %3642 = vmatmul.f32.gmra.mxu0 %v3176
        %v3643 = vpop.f32.mrf.mxu0
        %v3644 = vadd.f32 %v3570, %v3643
        %3645 = vmatmul.f32.gmra.mxu0 %v3179
        %v3646 = vpop.f32.mrf.mxu0
        %v3647 = vadd.f32 %v3573, %v3646
        %3648 = vdwg.mxu0
        %3649 = vmatpush.msra.mxu0 %v2941
        %3650 = vmatpush.msra.mxu0 %v2933
        %3651 = vmatpush.msra.mxu0 %v2925
        %3652 = vmatpush.msra.mxu0 %v2917
        %3653 = vmatpush.msra.mxu0 %v2909
        %3654 = vmatpush.msra.mxu0 %v2901
        %3655 = vmatpush.msra.mxu0 %v2893
        %3656 = vmatpush.msra.mxu0 %v2885
        %3657 = vmatpush.msra.mxu0 %v2877
        %3658 = vmatpush.msra.mxu0 %v2869
        %3659 = vmatpush.msra.mxu0 %v2861
        %3660 = vmatpush.msra.mxu0 %v2853
        %3661 = vmatpush.msra.mxu0 %v2845
        %3662 = vmatpush.msra.mxu0 %v2837
        %3663 = vmatpush.msra.mxu0 %v2829
        %3664 = vmatpush.msra.mxu0 %v2821
        %3665 = vmatmul.f32.gmra.mxu0 %v2971
        %v3666 = vpop.f32.mrf.mxu0
        %v3667 = vadd.f32 %v3032, %v3666
        %3668 = vmatmul.f32.gmra.mxu0 %v2973
        %v3669 = vpop.f32.mrf.mxu0
        %v3670 = vadd.f32 %v3037, %v3669
        %3671 = vmatmul.f32.gmra.mxu0 %v2975
        %v3672 = vpop.f32.mrf.mxu0
        %v3673 = vadd.f32 %v3042, %v3672
        %3674 = vmatmul.f32.gmra.mxu0 %v2977
        %v3675 = vpop.f32.mrf.mxu0
        %v3676 = vadd.f32 %v3047, %v3675
        %3677 = vmatmul.f32.gmra.mxu0 %v2979
        %v3678 = vpop.f32.mrf.mxu0
        %v3679 = vadd.f32 %v3052, %v3678
        %3680 = vmatmul.f32.gmra.mxu0 %v2981
        %v3681 = vpop.f32.mrf.mxu0
        %v3682 = vadd.f32 %v3057, %v3681
        %3683 = vmatmul.f32.gmra.mxu0 %v2983
        %v3684 = vpop.f32.mrf.mxu0
        %v3685 = vadd.f32 %v3062, %v3684
        %3686 = vmatmul.f32.gmra.mxu0 %v2985
        %v3687 = vpop.f32.mrf.mxu0
        %v3688 = vadd.f32 %v3067, %v3687
        %3689 = vmatmul.f32.gmra.mxu0 %v2987
        %v3690 = vpop.f32.mrf.mxu0
        %v3691 = vadd.f32 %v3072, %v3690
        %3692 = vmatmul.f32.gmra.mxu0 %v2989
        %v3693 = vpop.f32.mrf.mxu0
        %v3694 = vadd.f32 %v3077, %v3693
        %3695 = vmatmul.f32.gmra.mxu0 %v2991
        %v3696 = vpop.f32.mrf.mxu0
        %v3697 = vadd.f32 %v3082, %v3696
        %3698 = vmatmul.f32.gmra.mxu0 %v2993
        %v3699 = vpop.f32.mrf.mxu0
        %v3700 = vadd.f32 %v3087, %v3699
        %3701 = vmatmul.f32.gmra.mxu0 %v2995
        %v3702 = vpop.f32.mrf.mxu0
        %v3703 = vadd.f32 %v3092, %v3702
        %3704 = vmatmul.f32.gmra.mxu0 %v2997
        %v3705 = vpop.f32.mrf.mxu0
        %v3706 = vadd.f32 %v3097, %v3705
        %3707 = vmatmul.f32.gmra.mxu0 %v2999
        %v3708 = vpop.f32.mrf.mxu0
        %v3709 = vadd.f32 %v3102, %v3708
        %3710 = vmatmul.f32.gmra.mxu0 %v3001
        %v3711 = vpop.f32.mrf.mxu0
        %v3712 = vadd.f32 %v3107, %v3711
        %3713 = vmatmul.f32.gmra.mxu0 %v3003
        %v3714 = vpop.f32.mrf.mxu0
        %v3715 = vadd.f32 %v3112, %v3714
        %3716 = vmatmul.f32.gmra.mxu0 %v3005
        %v3717 = vpop.f32.mrf.mxu0
        %v3718 = vadd.f32 %v3117, %v3717
        %3719 = vmatmul.f32.gmra.mxu0 %v3007
        %v3720 = vpop.f32.mrf.mxu0
        %v3721 = vadd.f32 %v3122, %v3720
        %3722 = vdwg.mxu0
        %3723 = vmatpush.msra.mxu0 0.0
        %3724 = vmatpush.msra.mxu0 0.0
        %3725 = vmatpush.msra.mxu0 0.0
        %3726 = vmatpush.msra.mxu0 0.0
        %3727 = vmatpush.msra.mxu0 0.0
        %3728 = vmatpush.msra.mxu0 0.0
        %3729 = vmatpush.msra.mxu0 0.0
        %3730 = vmatpush.msra.mxu0 0.0
        %3731 = vmatpush.msra.mxu0 0.0
        %3732 = vmatpush.msra.mxu0 0.0
        %3733 = vmatpush.msra.mxu0 0.0
        %3734 = vmatpush.msra.mxu0 0.0
        %3735 = vmatpush.msra.mxu0 0.0
        %3736 = vmatpush.msra.mxu0 %v3191
        %3737 = vmatpush.msra.mxu0 %v2957
        %3738 = vmatpush.msra.mxu0 %v2949
        %3739 = vmatmul.f32.gmra.mxu0 %v3125
        %v3740 = vpop.f32.mrf.mxu0
        %v3741 = vadd.f32 %v3667, %v3740
        %3742 = vmatmul.f32.gmra.mxu0 %v3128
        %v3743 = vpop.f32.mrf.mxu0
        %v3744 = vadd.f32 %v3670, %v3743
        %3745 = vmatmul.f32.gmra.mxu0 %v3131
        %v3746 = vpop.f32.mrf.mxu0
        %v3747 = vadd.f32 %v3673, %v3746
        %3748 = vmatmul.f32.gmra.mxu0 %v3134
        %v3749 = vpop.f32.mrf.mxu0
        %v3750 = vadd.f32 %v3676, %v3749
        %3751 = vmatmul.f32.gmra.mxu0 %v3137
        %v3752 = vpop.f32.mrf.mxu0
        %v3753 = vadd.f32 %v3679, %v3752
        %3754 = vmatmul.f32.gmra.mxu0 %v3140
        %v3755 = vpop.f32.mrf.mxu0
        %v3756 = vadd.f32 %v3682, %v3755
        %3757 = vmatmul.f32.gmra.mxu0 %v3143
        %v3758 = vpop.f32.mrf.mxu0
        %v3759 = vadd.f32 %v3685, %v3758
        %3760 = vmatmul.f32.gmra.mxu0 %v3146
        %v3761 = vpop.f32.mrf.mxu0
        %v3762 = vadd.f32 %v3688, %v3761
        %3763 = vmatmul.f32.gmra.mxu0 %v3149
        %v3764 = vpop.f32.mrf.mxu0
        %v3765 = vadd.f32 %v3691, %v3764
        %3766 = vmatmul.f32.gmra.mxu0 %v3152
        %v3767 = vpop.f32.mrf.mxu0
        %v3768 = vadd.f32 %v3694, %v3767
        %3769 = vmatmul.f32.gmra.mxu0 %v3155
        %v3770 = vpop.f32.mrf.mxu0
        %v3771 = vadd.f32 %v3697, %v3770
        %3772 = vmatmul.f32.gmra.mxu0 %v3158
        %v3773 = vpop.f32.mrf.mxu0
        %v3774 = vadd.f32 %v3700, %v3773
        %3775 = vmatmul.f32.gmra.mxu0 %v3161
        %v3776 = vpop.f32.mrf.mxu0
        %v3777 = vadd.f32 %v3703, %v3776
        %3778 = vmatmul.f32.gmra.mxu0 %v3164
        %v3779 = vpop.f32.mrf.mxu0
        %v3780 = vadd.f32 %v3706, %v3779
        %3781 = vmatmul.f32.gmra.mxu0 %v3167
        %v3782 = vpop.f32.mrf.mxu0
        %v3783 = vadd.f32 %v3709, %v3782
        %3784 = vmatmul.f32.gmra.mxu0 %v3170
        %v3785 = vpop.f32.mrf.mxu0
        %v3786 = vadd.f32 %v3712, %v3785
        %3787 = vmatmul.f32.gmra.mxu0 %v3173
        %v3788 = vpop.f32.mrf.mxu0
        %v3789 = vadd.f32 %v3715, %v3788
        %3790 = vmatmul.f32.gmra.mxu0 %v3176
        %v3791 = vpop.f32.mrf.mxu0
        %v3792 = vadd.f32 %v3718, %v3791
        %3793 = vmatmul.f32.gmra.mxu0 %v3179
        %v3794 = vpop.f32.mrf.mxu0
        %v3795 = vadd.f32 %v3721, %v3794
        %3796 = vdwg.mxu0
        %3797 = vmatpush.msra.mxu0 %v2942
        %3798 = vmatpush.msra.mxu0 %v2934
        %3799 = vmatpush.msra.mxu0 %v2926
        %3800 = vmatpush.msra.mxu0 %v2918
        %3801 = vmatpush.msra.mxu0 %v2910
        %3802 = vmatpush.msra.mxu0 %v2902
        %3803 = vmatpush.msra.mxu0 %v2894
        %3804 = vmatpush.msra.mxu0 %v2886
        %3805 = vmatpush.msra.mxu0 %v2878
        %3806 = vmatpush.msra.mxu0 %v2870
        %3807 = vmatpush.msra.mxu0 %v2862
        %3808 = vmatpush.msra.mxu0 %v2854
        %3809 = vmatpush.msra.mxu0 %v2846
        %3810 = vmatpush.msra.mxu0 %v2838
        %3811 = vmatpush.msra.mxu0 %v2830
        %3812 = vmatpush.msra.mxu0 %v2822
        %3813 = vmatmul.f32.gmra.mxu0 %v2971
        %v3814 = vpop.f32.mrf.mxu0
        %v3815 = vadd.f32 %v3032, %v3814
        %3816 = vmatmul.f32.gmra.mxu0 %v2973
        %v3817 = vpop.f32.mrf.mxu0
        %v3818 = vadd.f32 %v3037, %v3817
        %3819 = vmatmul.f32.gmra.mxu0 %v2975
        %v3820 = vpop.f32.mrf.mxu0
        %v3821 = vadd.f32 %v3042, %v3820
        %3822 = vmatmul.f32.gmra.mxu0 %v2977
        %v3823 = vpop.f32.mrf.mxu0
        %v3824 = vadd.f32 %v3047, %v3823
        %3825 = vmatmul.f32.gmra.mxu0 %v2979
        %v3826 = vpop.f32.mrf.mxu0
        %v3827 = vadd.f32 %v3052, %v3826
        %3828 = vmatmul.f32.gmra.mxu0 %v2981
        %v3829 = vpop.f32.mrf.mxu0
        %v3830 = vadd.f32 %v3057, %v3829
        %3831 = vmatmul.f32.gmra.mxu0 %v2983
        %v3832 = vpop.f32.mrf.mxu0
        %v3833 = vadd.f32 %v3062, %v3832
        %3834 = vmatmul.f32.gmra.mxu0 %v2985
        %v3835 = vpop.f32.mrf.mxu0
        %v3836 = vadd.f32 %v3067, %v3835
        %3837 = vmatmul.f32.gmra.mxu0 %v2987
        %v3838 = vpop.f32.mrf.mxu0
        %v3839 = vadd.f32 %v3072, %v3838
        %3840 = vmatmul.f32.gmra.mxu0 %v2989
        %v3841 = vpop.f32.mrf.mxu0
        %v3842 = vadd.f32 %v3077, %v3841
        %3843 = vmatmul.f32.gmra.mxu0 %v2991
        %v3844 = vpop.f32.mrf.mxu0
        %v3845 = vadd.f32 %v3082, %v3844
        %3846 = vmatmul.f32.gmra.mxu0 %v2993
        %v3847 = vpop.f32.mrf.mxu0
        %v3848 = vadd.f32 %v3087, %v3847
        %3849 = vmatmul.f32.gmra.mxu0 %v2995
        %v3850 = vpop.f32.mrf.mxu0
        %v3851 = vadd.f32 %v3092, %v3850
        %3852 = vmatmul.f32.gmra.mxu0 %v2997
        %v3853 = vpop.f32.mrf.mxu0
        %v3854 = vadd.f32 %v3097, %v3853
        %3855 = vmatmul.f32.gmra.mxu0 %v2999
        %v3856 = vpop.f32.mrf.mxu0
        %v3857 = vadd.f32 %v3102, %v3856
        %3858 = vmatmul.f32.gmra.mxu0 %v3001
        %v3859 = vpop.f32.mrf.mxu0
        %v3860 = vadd.f32 %v3107, %v3859
        %3861 = vmatmul.f32.gmra.mxu0 %v3003
        %v3862 = vpop.f32.mrf.mxu0
        %v3863 = vadd.f32 %v3112, %v3862
        %3864 = vmatmul.f32.gmra.mxu0 %v3005
        %v3865 = vpop.f32.mrf.mxu0
        %v3866 = vadd.f32 %v3117, %v3865
        %3867 = vmatmul.f32.gmra.mxu0 %v3007
        %v3868 = vpop.f32.mrf.mxu0
        %v3869 = vadd.f32 %v3122, %v3868
        %3870 = vdwg.mxu0
        %3871 = vmatpush.msra.mxu0 0.0
        %3872 = vmatpush.msra.mxu0 0.0
        %3873 = vmatpush.msra.mxu0 0.0
        %3874 = vmatpush.msra.mxu0 0.0
        %3875 = vmatpush.msra.mxu0 0.0
        %3876 = vmatpush.msra.mxu0 0.0
        %3877 = vmatpush.msra.mxu0 0.0
        %3878 = vmatpush.msra.mxu0 0.0
        %3879 = vmatpush.msra.mxu0 0.0
        %3880 = vmatpush.msra.mxu0 0.0
        %3881 = vmatpush.msra.mxu0 0.0
        %3882 = vmatpush.msra.mxu0 0.0
        %3883 = vmatpush.msra.mxu0 0.0
        %3884 = vmatpush.msra.mxu0 %v3194
        %3885 = vmatpush.msra.mxu0 %v2958
        %3886 = vmatpush.msra.mxu0 %v2950
        %3887 = vmatmul.f32.gmra.mxu0 %v3125
        %v3888 = vpop.f32.mrf.mxu0
        %v3889 = vadd.f32 %v3815, %v3888
        %3890 = vmatmul.f32.gmra.mxu0 %v3128
        %v3891 = vpop.f32.mrf.mxu0
        %v3892 = vadd.f32 %v3818, %v3891
        %3893 = vmatmul.f32.gmra.mxu0 %v3131
        %v3894 = vpop.f32.mrf.mxu0
        %v3895 = vadd.f32 %v3821, %v3894
        %3896 = vmatmul.f32.gmra.mxu0 %v3134
        %v3897 = vpop.f32.mrf.mxu0
        %v3898 = vadd.f32 %v3824, %v3897
        %3899 = vmatmul.f32.gmra.mxu0 %v3137
        %v3900 = vpop.f32.mrf.mxu0
        %v3901 = vadd.f32 %v3827, %v3900
        %3902 = vmatmul.f32.gmra.mxu0 %v3140
        %v3903 = vpop.f32.mrf.mxu0
        %v3904 = vadd.f32 %v3830, %v3903
        %3905 = vmatmul.f32.gmra.mxu0 %v3143
        %v3906 = vpop.f32.mrf.mxu0
        %v3907 = vadd.f32 %v3833, %v3906
        %3908 = vmatmul.f32.gmra.mxu0 %v3146
        %v3909 = vpop.f32.mrf.mxu0
        %v3910 = vadd.f32 %v3836, %v3909
        %3911 = vmatmul.f32.gmra.mxu0 %v3149
        %v3912 = vpop.f32.mrf.mxu0
        %v3913 = vadd.f32 %v3839, %v3912
        %3914 = vmatmul.f32.gmra.mxu0 %v3152
        %v3915 = vpop.f32.mrf.mxu0
        %v3916 = vadd.f32 %v3842, %v3915
        %3917 = vmatmul.f32.gmra.mxu0 %v3155
        %v3918 = vpop.f32.mrf.mxu0
        %v3919 = vadd.f32 %v3845, %v3918
        %3920 = vmatmul.f32.gmra.mxu0 %v3158
        %v3921 = vpop.f32.mrf.mxu0
        %v3922 = vadd.f32 %v3848, %v3921
        %3923 = vmatmul.f32.gmra.mxu0 %v3161
        %v3924 = vpop.f32.mrf.mxu0
        %v3925 = vadd.f32 %v3851, %v3924
        %3926 = vmatmul.f32.gmra.mxu0 %v3164
        %v3927 = vpop.f32.mrf.mxu0
        %v3928 = vadd.f32 %v3854, %v3927
        %3929 = vmatmul.f32.gmra.mxu0 %v3167
        %v3930 = vpop.f32.mrf.mxu0
        %v3931 = vadd.f32 %v3857, %v3930
        %3932 = vmatmul.f32.gmra.mxu0 %v3170
        %v3933 = vpop.f32.mrf.mxu0
        %v3934 = vadd.f32 %v3860, %v3933
        %3935 = vmatmul.f32.gmra.mxu0 %v3173
        %v3936 = vpop.f32.mrf.mxu0
        %v3937 = vadd.f32 %v3863, %v3936
        %3938 = vmatmul.f32.gmra.mxu0 %v3176
        %v3939 = vpop.f32.mrf.mxu0
        %v3940 = vadd.f32 %v3866, %v3939
        %3941 = vmatmul.f32.gmra.mxu0 %v3179
        %v3942 = vpop.f32.mrf.mxu0
        %v3943 = vadd.f32 %v3869, %v3942
        %3944 = vdwg.mxu0
        %3945 = vmatpush.msra.mxu0 %v2943
        %3946 = vmatpush.msra.mxu0 %v2935
        %3947 = vmatpush.msra.mxu0 %v2927
        %3948 = vmatpush.msra.mxu0 %v2919
        %3949 = vmatpush.msra.mxu0 %v2911
        %3950 = vmatpush.msra.mxu0 %v2903
        %3951 = vmatpush.msra.mxu0 %v2895
        %3952 = vmatpush.msra.mxu0 %v2887
        %3953 = vmatpush.msra.mxu0 %v2879
        %3954 = vmatpush.msra.mxu0 %v2871
        %3955 = vmatpush.msra.mxu0 %v2863
        %3956 = vmatpush.msra.mxu0 %v2855
        %3957 = vmatpush.msra.mxu0 %v2847
        %3958 = vmatpush.msra.mxu0 %v2839
        %3959 = vmatpush.msra.mxu0 %v2831
        %3960 = vmatpush.msra.mxu0 %v2823
        %3961 = vmatmul.f32.gmra.mxu0 %v2971
        %v3962 = vpop.f32.mrf.mxu0
        %v3963 = vadd.f32 %v3032, %v3962
        %3964 = vmatmul.f32.gmra.mxu0 %v2973
        %v3965 = vpop.f32.mrf.mxu0
        %v3966 = vadd.f32 %v3037, %v3965
        %3967 = vmatmul.f32.gmra.mxu0 %v2975
        %v3968 = vpop.f32.mrf.mxu0
        %v3969 = vadd.f32 %v3042, %v3968
        %3970 = vmatmul.f32.gmra.mxu0 %v2977
        %v3971 = vpop.f32.mrf.mxu0
        %v3972 = vadd.f32 %v3047, %v3971
        %3973 = vmatmul.f32.gmra.mxu0 %v2979
        %v3974 = vpop.f32.mrf.mxu0
        %v3975 = vadd.f32 %v3052, %v3974
        %3976 = vmatmul.f32.gmra.mxu0 %v2981
        %v3977 = vpop.f32.mrf.mxu0
        %v3978 = vadd.f32 %v3057, %v3977
        %3979 = vmatmul.f32.gmra.mxu0 %v2983
        %v3980 = vpop.f32.mrf.mxu0
        %v3981 = vadd.f32 %v3062, %v3980
        %3982 = vmatmul.f32.gmra.mxu0 %v2985
        %v3983 = vpop.f32.mrf.mxu0
        %v3984 = vadd.f32 %v3067, %v3983
        %3985 = vmatmul.f32.gmra.mxu0 %v2987
        %v3986 = vpop.f32.mrf.mxu0
        %v3987 = vadd.f32 %v3072, %v3986
        %3988 = vmatmul.f32.gmra.mxu0 %v2989
        %v3989 = vpop.f32.mrf.mxu0
        %v3990 = vadd.f32 %v3077, %v3989
        %3991 = vmatmul.f32.gmra.mxu0 %v2991
        %v3992 = vpop.f32.mrf.mxu0
        %v3993 = vadd.f32 %v3082, %v3992
        %3994 = vmatmul.f32.gmra.mxu0 %v2993
        %v3995 = vpop.f32.mrf.mxu0
        %v3996 = vadd.f32 %v3087, %v3995
        %3997 = vmatmul.f32.gmra.mxu0 %v2995
        %v3998 = vpop.f32.mrf.mxu0
        %v3999 = vadd.f32 %v3092, %v3998
        %4000 = vmatmul.f32.gmra.mxu0 %v2997
        %v4001 = vpop.f32.mrf.mxu0
        %v4002 = vadd.f32 %v3097, %v4001
        %4003 = vmatmul.f32.gmra.mxu0 %v2999
        %v4004 = vpop.f32.mrf.mxu0
        %v4005 = vadd.f32 %v3102, %v4004
        %4006 = vmatmul.f32.gmra.mxu0 %v3001
        %v4007 = vpop.f32.mrf.mxu0
        %v4008 = vadd.f32 %v3107, %v4007
        %4009 = vmatmul.f32.gmra.mxu0 %v3003
        %v4010 = vpop.f32.mrf.mxu0
        %v4011 = vadd.f32 %v3112, %v4010
        %4012 = vmatmul.f32.gmra.mxu0 %v3005
        %v4013 = vpop.f32.mrf.mxu0
        %v4014 = vadd.f32 %v3117, %v4013
        %4015 = vmatmul.f32.gmra.mxu0 %v3007
        %v4016 = vpop.f32.mrf.mxu0
        %v4017 = vadd.f32 %v3122, %v4016
        %4018 = vdwg.mxu0
        %4019 = vmatpush.msra.mxu0 0.0
        %4020 = vmatpush.msra.mxu0 0.0
        %4021 = vmatpush.msra.mxu0 0.0
        %4022 = vmatpush.msra.mxu0 0.0
        %4023 = vmatpush.msra.mxu0 0.0
        %4024 = vmatpush.msra.mxu0 0.0
        %4025 = vmatpush.msra.mxu0 0.0
        %4026 = vmatpush.msra.mxu0 0.0
        %4027 = vmatpush.msra.mxu0 0.0
        %4028 = vmatpush.msra.mxu0 0.0
        %4029 = vmatpush.msra.mxu0 0.0
        %4030 = vmatpush.msra.mxu0 0.0
        %4031 = vmatpush.msra.mxu0 0.0
        %4032 = vmatpush.msra.mxu0 %v3197
        %4033 = vmatpush.msra.mxu0 %v2959
        %4034 = vmatpush.msra.mxu0 %v2951
        %4035 = vmatmul.f32.gmra.mxu0 %v3125
        %v4036 = vpop.f32.mrf.mxu0
        %v4037 = vadd.f32 %v3963, %v4036
        %4038 = vmatmul.f32.gmra.mxu0 %v3128
        %v4039 = vpop.f32.mrf.mxu0
        %v4040 = vadd.f32 %v3966, %v4039
        %4041 = vmatmul.f32.gmra.mxu0 %v3131
        %v4042 = vpop.f32.mrf.mxu0
        %v4043 = vadd.f32 %v3969, %v4042
        %4044 = vmatmul.f32.gmra.mxu0 %v3134
        %v4045 = vpop.f32.mrf.mxu0
        %v4046 = vadd.f32 %v3972, %v4045
        %4047 = vmatmul.f32.gmra.mxu0 %v3137
        %v4048 = vpop.f32.mrf.mxu0
        %v4049 = vadd.f32 %v3975, %v4048
        %4050 = vmatmul.f32.gmra.mxu0 %v3140
        %v4051 = vpop.f32.mrf.mxu0
        %v4052 = vadd.f32 %v3978, %v4051
        %4053 = vmatmul.f32.gmra.mxu0 %v3143
        %v4054 = vpop.f32.mrf.mxu0
        %v4055 = vadd.f32 %v3981, %v4054
        %4056 = vmatmul.f32.gmra.mxu0 %v3146
        %v4057 = vpop.f32.mrf.mxu0
        %v4058 = vadd.f32 %v3984, %v4057
        %4059 = vmatmul.f32.gmra.mxu0 %v3149
        %v4060 = vpop.f32.mrf.mxu0
        %v4061 = vadd.f32 %v3987, %v4060
        %4062 = vmatmul.f32.gmra.mxu0 %v3152
        %v4063 = vpop.f32.mrf.mxu0
        %v4064 = vadd.f32 %v3990, %v4063
        %4065 = vmatmul.f32.gmra.mxu0 %v3155
        %v4066 = vpop.f32.mrf.mxu0
        %v4067 = vadd.f32 %v3993, %v4066
        %4068 = vmatmul.f32.gmra.mxu0 %v3158
        %v4069 = vpop.f32.mrf.mxu0
        %v4070 = vadd.f32 %v3996, %v4069
        %4071 = vmatmul.f32.gmra.mxu0 %v3161
        %v4072 = vpop.f32.mrf.mxu0
        %v4073 = vadd.f32 %v3999, %v4072
        %4074 = vmatmul.f32.gmra.mxu0 %v3164
        %v4075 = vpop.f32.mrf.mxu0
        %v4076 = vadd.f32 %v4002, %v4075
        %4077 = vmatmul.f32.gmra.mxu0 %v3167
        %v4078 = vpop.f32.mrf.mxu0
        %v4079 = vadd.f32 %v4005, %v4078
        %4080 = vmatmul.f32.gmra.mxu0 %v3170
        %v4081 = vpop.f32.mrf.mxu0
        %v4082 = vadd.f32 %v4008, %v4081
        %4083 = vmatmul.f32.gmra.mxu0 %v3173
        %v4084 = vpop.f32.mrf.mxu0
        %v4085 = vadd.f32 %v4011, %v4084
        %4086 = vmatmul.f32.gmra.mxu0 %v3176
        %v4087 = vpop.f32.mrf.mxu0
        %v4088 = vadd.f32 %v4014, %v4087
        %4089 = vmatmul.f32.gmra.mxu0 %v3179
        %v4090 = vpop.f32.mrf.mxu0
        %v4091 = vadd.f32 %v4017, %v4090
        %4092 = vdwg.mxu0
        %4093 = vmatpush.msra.mxu0 %v2944
        %4094 = vmatpush.msra.mxu0 %v2936
        %4095 = vmatpush.msra.mxu0 %v2928
        %4096 = vmatpush.msra.mxu0 %v2920
        %4097 = vmatpush.msra.mxu0 %v2912
        %4098 = vmatpush.msra.mxu0 %v2904
        %4099 = vmatpush.msra.mxu0 %v2896
        %4100 = vmatpush.msra.mxu0 %v2888
        %4101 = vmatpush.msra.mxu0 %v2880
        %4102 = vmatpush.msra.mxu0 %v2872
        %4103 = vmatpush.msra.mxu0 %v2864
        %4104 = vmatpush.msra.mxu0 %v2856
        %4105 = vmatpush.msra.mxu0 %v2848
        %4106 = vmatpush.msra.mxu0 %v2840
        %4107 = vmatpush.msra.mxu0 %v2832
        %4108 = vmatpush.msra.mxu0 %v2824
        %4109 = vmatmul.f32.gmra.mxu0 %v2971
        %v4110 = vpop.f32.mrf.mxu0
        %v4111 = vadd.f32 %v3032, %v4110
        %4112 = vmatmul.f32.gmra.mxu0 %v2973
        %v4113 = vpop.f32.mrf.mxu0
        %v4114 = vadd.f32 %v3037, %v4113
        %4115 = vmatmul.f32.gmra.mxu0 %v2975
        %v4116 = vpop.f32.mrf.mxu0
        %v4117 = vadd.f32 %v3042, %v4116
        %4118 = vmatmul.f32.gmra.mxu0 %v2977
        %v4119 = vpop.f32.mrf.mxu0
        %v4120 = vadd.f32 %v3047, %v4119
        %4121 = vmatmul.f32.gmra.mxu0 %v2979
        %v4122 = vpop.f32.mrf.mxu0
        %v4123 = vadd.f32 %v3052, %v4122
        %4124 = vmatmul.f32.gmra.mxu0 %v2981
        %v4125 = vpop.f32.mrf.mxu0
        %v4126 = vadd.f32 %v3057, %v4125
        %4127 = vmatmul.f32.gmra.mxu0 %v2983
        %v4128 = vpop.f32.mrf.mxu0
        %v4129 = vadd.f32 %v3062, %v4128
        %4130 = vmatmul.f32.gmra.mxu0 %v2985
        %v4131 = vpop.f32.mrf.mxu0
        %v4132 = vadd.f32 %v3067, %v4131
        %4133 = vmatmul.f32.gmra.mxu0 %v2987
        %v4134 = vpop.f32.mrf.mxu0
        %v4135 = vadd.f32 %v3072, %v4134
        %4136 = vmatmul.f32.gmra.mxu0 %v2989
        %v4137 = vpop.f32.mrf.mxu0
        %v4138 = vadd.f32 %v3077, %v4137
        %4139 = vmatmul.f32.gmra.mxu0 %v2991
        %v4140 = vpop.f32.mrf.mxu0
        %v4141 = vadd.f32 %v3082, %v4140
        %4142 = vmatmul.f32.gmra.mxu0 %v2993
        %v4143 = vpop.f32.mrf.mxu0
        %v4144 = vadd.f32 %v3087, %v4143
        %4145 = vmatmul.f32.gmra.mxu0 %v2995
        %v4146 = vpop.f32.mrf.mxu0
        %v4147 = vadd.f32 %v3092, %v4146
        %4148 = vmatmul.f32.gmra.mxu0 %v2997
        %v4149 = vpop.f32.mrf.mxu0
        %v4150 = vadd.f32 %v3097, %v4149
        %4151 = vmatmul.f32.gmra.mxu0 %v2999
        %v4152 = vpop.f32.mrf.mxu0
        %v4153 = vadd.f32 %v3102, %v4152
        %4154 = vmatmul.f32.gmra.mxu0 %v3001
        %v4155 = vpop.f32.mrf.mxu0
        %v4156 = vadd.f32 %v3107, %v4155
        %4157 = vmatmul.f32.gmra.mxu0 %v3003
        %v4158 = vpop.f32.mrf.mxu0
        %v4159 = vadd.f32 %v3112, %v4158
        %4160 = vmatmul.f32.gmra.mxu0 %v3005
        %v4161 = vpop.f32.mrf.mxu0
        %v4162 = vadd.f32 %v3117, %v4161
        %4163 = vmatmul.f32.gmra.mxu0 %v3007
        %v4164 = vpop.f32.mrf.mxu0
        %v4165 = vadd.f32 %v3122, %v4164
        %4166 = vdwg.mxu0
        %4167 = vmatpush.msra.mxu0 0.0
        %4168 = vmatpush.msra.mxu0 0.0
        %4169 = vmatpush.msra.mxu0 0.0
        %4170 = vmatpush.msra.mxu0 0.0
        %4171 = vmatpush.msra.mxu0 0.0
        %4172 = vmatpush.msra.mxu0 0.0
        %4173 = vmatpush.msra.mxu0 0.0
        %4174 = vmatpush.msra.mxu0 0.0
        %4175 = vmatpush.msra.mxu0 0.0
        %4176 = vmatpush.msra.mxu0 0.0
        %4177 = vmatpush.msra.mxu0 0.0
        %4178 = vmatpush.msra.mxu0 0.0
        %4179 = vmatpush.msra.mxu0 0.0
        %4180 = vmatpush.msra.mxu0 %v3200
        %4181 = vmatpush.msra.mxu0 %v2960
        %4182 = vmatpush.msra.mxu0 %v2952
        %4183 = vmatmul.f32.gmra.mxu0 %v3125
        %v4184 = vpop.f32.mrf.mxu0
        %v4185 = vadd.f32 %v4111, %v4184
        %4186 = vmatmul.f32.gmra.mxu0 %v3128
        %v4187 = vpop.f32.mrf.mxu0
        %v4188 = vadd.f32 %v4114, %v4187
        %4189 = vmatmul.f32.gmra.mxu0 %v3131
        %v4190 = vpop.f32.mrf.mxu0
        %v4191 = vadd.f32 %v4117, %v4190
        %4192 = vmatmul.f32.gmra.mxu0 %v3134
        %v4193 = vpop.f32.mrf.mxu0
        %v4194 = vadd.f32 %v4120, %v4193
        %4195 = vmatmul.f32.gmra.mxu0 %v3137
        %v4196 = vpop.f32.mrf.mxu0
        %v4197 = vadd.f32 %v4123, %v4196
        %4198 = vmatmul.f32.gmra.mxu0 %v3140
        %v4199 = vpop.f32.mrf.mxu0
        %v4200 = vadd.f32 %v4126, %v4199
        %4201 = vmatmul.f32.gmra.mxu0 %v3143
        %v4202 = vpop.f32.mrf.mxu0
        %v4203 = vadd.f32 %v4129, %v4202
        %4204 = vmatmul.f32.gmra.mxu0 %v3146
        %v4205 = vpop.f32.mrf.mxu0
        %v4206 = vadd.f32 %v4132, %v4205
        %4207 = vmatmul.f32.gmra.mxu0 %v3149
        %v4208 = vpop.f32.mrf.mxu0
        %v4209 = vadd.f32 %v4135, %v4208
        %4210 = vmatmul.f32.gmra.mxu0 %v3152
        %v4211 = vpop.f32.mrf.mxu0
        %v4212 = vadd.f32 %v4138, %v4211
        %4213 = vmatmul.f32.gmra.mxu0 %v3155
        %v4214 = vpop.f32.mrf.mxu0
        %v4215 = vadd.f32 %v4141, %v4214
        %4216 = vmatmul.f32.gmra.mxu0 %v3158
        %v4217 = vpop.f32.mrf.mxu0
        %v4218 = vadd.f32 %v4144, %v4217
        %4219 = vmatmul.f32.gmra.mxu0 %v3161
        %v4220 = vpop.f32.mrf.mxu0
        %v4221 = vadd.f32 %v4147, %v4220
        %4222 = vmatmul.f32.gmra.mxu0 %v3164
        %v4223 = vpop.f32.mrf.mxu0
        %v4224 = vadd.f32 %v4150, %v4223
        %4225 = vmatmul.f32.gmra.mxu0 %v3167
        %v4226 = vpop.f32.mrf.mxu0
        %v4227 = vadd.f32 %v4153, %v4226
        %4228 = vmatmul.f32.gmra.mxu0 %v3170
        %v4229 = vpop.f32.mrf.mxu0
        %v4230 = vadd.f32 %v4156, %v4229
        %4231 = vmatmul.f32.gmra.mxu0 %v3173
        %v4232 = vpop.f32.mrf.mxu0
        %v4233 = vadd.f32 %v4159, %v4232
        %4234 = vmatmul.f32.gmra.mxu0 %v3176
        %v4235 = vpop.f32.mrf.mxu0
        %v4236 = vadd.f32 %v4162, %v4235
        %4237 = vmatmul.f32.gmra.mxu0 %v3179
        %v4238 = vpop.f32.mrf.mxu0
        %v4239 = vadd.f32 %v4165, %v4238
        %4240 = vdwg.mxu0
        %4241 = vmatpush.msra.mxu0 %v2945
        %4242 = vmatpush.msra.mxu0 %v2937
        %4243 = vmatpush.msra.mxu0 %v2929
        %4244 = vmatpush.msra.mxu0 %v2921
        %4245 = vmatpush.msra.mxu0 %v2913
        %4246 = vmatpush.msra.mxu0 %v2905
        %4247 = vmatpush.msra.mxu0 %v2897
        %4248 = vmatpush.msra.mxu0 %v2889
        %4249 = vmatpush.msra.mxu0 %v2881
        %4250 = vmatpush.msra.mxu0 %v2873
        %4251 = vmatpush.msra.mxu0 %v2865
        %4252 = vmatpush.msra.mxu0 %v2857
        %4253 = vmatpush.msra.mxu0 %v2849
        %4254 = vmatpush.msra.mxu0 %v2841
        %4255 = vmatpush.msra.mxu0 %v2833
        %4256 = vmatpush.msra.mxu0 %v2825
        %4257 = vmatmul.f32.gmra.mxu0 %v2971
        %v4258 = vpop.f32.mrf.mxu0
        %v4259 = vadd.f32 %v3032, %v4258
        %4260 = vmatmul.f32.gmra.mxu0 %v2973
        %v4261 = vpop.f32.mrf.mxu0
        %v4262 = vadd.f32 %v3037, %v4261
        %4263 = vmatmul.f32.gmra.mxu0 %v2975
        %v4264 = vpop.f32.mrf.mxu0
        %v4265 = vadd.f32 %v3042, %v4264
        %4266 = vmatmul.f32.gmra.mxu0 %v2977
        %v4267 = vpop.f32.mrf.mxu0
        %v4268 = vadd.f32 %v3047, %v4267
        %4269 = vmatmul.f32.gmra.mxu0 %v2979
        %v4270 = vpop.f32.mrf.mxu0
        %v4271 = vadd.f32 %v3052, %v4270
        %4272 = vmatmul.f32.gmra.mxu0 %v2981
        %v4273 = vpop.f32.mrf.mxu0
        %v4274 = vadd.f32 %v3057, %v4273
        %4275 = vmatmul.f32.gmra.mxu0 %v2983
        %v4276 = vpop.f32.mrf.mxu0
        %v4277 = vadd.f32 %v3062, %v4276
        %4278 = vmatmul.f32.gmra.mxu0 %v2985
        %v4279 = vpop.f32.mrf.mxu0
        %v4280 = vadd.f32 %v3067, %v4279
        %4281 = vmatmul.f32.gmra.mxu0 %v2987
        %v4282 = vpop.f32.mrf.mxu0
        %v4283 = vadd.f32 %v3072, %v4282
        %4284 = vmatmul.f32.gmra.mxu0 %v2989
        %v4285 = vpop.f32.mrf.mxu0
        %v4286 = vadd.f32 %v3077, %v4285
        %4287 = vmatmul.f32.gmra.mxu0 %v2991
        %v4288 = vpop.f32.mrf.mxu0
        %v4289 = vadd.f32 %v3082, %v4288
        %4290 = vmatmul.f32.gmra.mxu0 %v2993
        %v4291 = vpop.f32.mrf.mxu0
        %v4292 = vadd.f32 %v3087, %v4291
        %4293 = vmatmul.f32.gmra.mxu0 %v2995
        %v4294 = vpop.f32.mrf.mxu0
        %v4295 = vadd.f32 %v3092, %v4294
        %4296 = vmatmul.f32.gmra.mxu0 %v2997
        %v4297 = vpop.f32.mrf.mxu0
        %v4298 = vadd.f32 %v3097, %v4297
        %4299 = vmatmul.f32.gmra.mxu0 %v2999
        %v4300 = vpop.f32.mrf.mxu0
        %v4301 = vadd.f32 %v3102, %v4300
        %4302 = vmatmul.f32.gmra.mxu0 %v3001
        %v4303 = vpop.f32.mrf.mxu0
        %v4304 = vadd.f32 %v3107, %v4303
        %4305 = vmatmul.f32.gmra.mxu0 %v3003
        %v4306 = vpop.f32.mrf.mxu0
        %v4307 = vadd.f32 %v3112, %v4306
        %4308 = vmatmul.f32.gmra.mxu0 %v3005
        %v4309 = vpop.f32.mrf.mxu0
        %v4310 = vadd.f32 %v3117, %v4309
        %4311 = vmatmul.f32.gmra.mxu0 %v3007
        %v4312 = vpop.f32.mrf.mxu0
        %v4313 = vadd.f32 %v3122, %v4312
        %4314 = vdwg.mxu0
        %4315 = vmatpush.msra.mxu0 0.0
        %4316 = vmatpush.msra.mxu0 0.0
        %4317 = vmatpush.msra.mxu0 0.0
        %4318 = vmatpush.msra.mxu0 0.0
        %4319 = vmatpush.msra.mxu0 0.0
        %4320 = vmatpush.msra.mxu0 0.0
        %4321 = vmatpush.msra.mxu0 0.0
        %4322 = vmatpush.msra.mxu0 0.0
        %4323 = vmatpush.msra.mxu0 0.0
        %4324 = vmatpush.msra.mxu0 0.0
        %4325 = vmatpush.msra.mxu0 0.0
        %4326 = vmatpush.msra.mxu0 0.0
        %4327 = vmatpush.msra.mxu0 0.0
        %4328 = vmatpush.msra.mxu0 %v3203
        %4329 = vmatpush.msra.mxu0 %v2961
        %4330 = vmatpush.msra.mxu0 %v2953
        %4331 = vmatmul.f32.gmra.mxu0 %v3125
        %v4332 = vpop.f32.mrf.mxu0
        %v4333 = vadd.f32 %v4259, %v4332
        %4334 = vmatmul.f32.gmra.mxu0 %v3128
        %v4335 = vpop.f32.mrf.mxu0
        %v4336 = vadd.f32 %v4262, %v4335
        %4337 = vmatmul.f32.gmra.mxu0 %v3131
        %v4338 = vpop.f32.mrf.mxu0
        %v4339 = vadd.f32 %v4265, %v4338
        %4340 = vmatmul.f32.gmra.mxu0 %v3134
        %v4341 = vpop.f32.mrf.mxu0
        %v4342 = vadd.f32 %v4268, %v4341
        %4343 = vmatmul.f32.gmra.mxu0 %v3137
        %v4344 = vpop.f32.mrf.mxu0
        %v4345 = vadd.f32 %v4271, %v4344
        %4346 = vmatmul.f32.gmra.mxu0 %v3140
        %v4347 = vpop.f32.mrf.mxu0
        %v4348 = vadd.f32 %v4274, %v4347
        %4349 = vmatmul.f32.gmra.mxu0 %v3143
        %v4350 = vpop.f32.mrf.mxu0
        %v4351 = vadd.f32 %v4277, %v4350
        %4352 = vmatmul.f32.gmra.mxu0 %v3146
        %v4353 = vpop.f32.mrf.mxu0
        %v4354 = vadd.f32 %v4280, %v4353
        %4355 = vmatmul.f32.gmra.mxu0 %v3149
        %v4356 = vpop.f32.mrf.mxu0
        %v4357 = vadd.f32 %v4283, %v4356
        %4358 = vmatmul.f32.gmra.mxu0 %v3152
        %v4359 = vpop.f32.mrf.mxu0
        %v4360 = vadd.f32 %v4286, %v4359
        %4361 = vmatmul.f32.gmra.mxu0 %v3155
        %v4362 = vpop.f32.mrf.mxu0
        %v4363 = vadd.f32 %v4289, %v4362
        %4364 = vmatmul.f32.gmra.mxu0 %v3158
        %v4365 = vpop.f32.mrf.mxu0
        %v4366 = vadd.f32 %v4292, %v4365
        %4367 = vmatmul.f32.gmra.mxu0 %v3161
        %v4368 = vpop.f32.mrf.mxu0
        %v4369 = vadd.f32 %v4295, %v4368
        %4370 = vmatmul.f32.gmra.mxu0 %v3164
        %v4371 = vpop.f32.mrf.mxu0
        %v4372 = vadd.f32 %v4298, %v4371
        %4373 = vmatmul.f32.gmra.mxu0 %v3167
        %v4374 = vpop.f32.mrf.mxu0
        %v4375 = vadd.f32 %v4301, %v4374
        %4376 = vmatmul.f32.gmra.mxu0 %v3170
        %v4377 = vpop.f32.mrf.mxu0
        %v4378 = vadd.f32 %v4304, %v4377
        %4379 = vmatmul.f32.gmra.mxu0 %v3173
        %v4380 = vpop.f32.mrf.mxu0
        %v4381 = vadd.f32 %v4307, %v4380
        %4382 = vmatmul.f32.gmra.mxu0 %v3176
        %v4383 = vpop.f32.mrf.mxu0
        %v4384 = vadd.f32 %v4310, %v4383
        %4385 = vmatmul.f32.gmra.mxu0 %v3179
        %v4386 = vpop.f32.mrf.mxu0
        %v4387 = vadd.f32 %v4313, %v4386
        %4388 = vdwg.mxu0
        %v4389 = vtanh.pop %v3297
        %v4390 = vtanh.pop %v3445
        %v4391 = vtanh.pop %v3593
        %v4392 = vtanh.pop %v3741
        %v4393 = vtanh.pop %v3889
        %v4394 = vtanh.pop %v4037
        %v4395 = vtanh.pop %v4185
        %v4396 = vtanh.pop %v4333
        %v4397 = vtanh.pop %v3300
        %v4398 = vtanh.pop %v3448
        %v4399 = vtanh.pop %v3596
        %v4400 = vtanh.pop %v3744
        %v4401 = vtanh.pop %v3892
        %v4402 = vtanh.pop %v4040
        %v4403 = vtanh.pop %v4188
        %v4404 = vtanh.pop %v4336
        %v4405 = vtanh.pop %v3303
        %v4406 = vtanh.pop %v3451
        %v4407 = vtanh.pop %v3599
        %v4408 = vtanh.pop %v3747
        %v4409 = vtanh.pop %v3895
        %v4410 = vtanh.pop %v4043
        %v4411 = vtanh.pop %v4191
        %v4412 = vtanh.pop %v4339
        %v4413 = vtanh.pop %v3306
        %v4414 = vtanh.pop %v3454
        %v4415 = vtanh.pop %v3602
        %v4416 = vtanh.pop %v3750
        %v4417 = vtanh.pop %v3898
        %v4418 = vtanh.pop %v4046
        %v4419 = vtanh.pop %v4194
        %v4420 = vtanh.pop %v4342
        %v4421 = vtanh.pop %v3309
        %v4422 = vtanh.pop %v3457
        %v4423 = vtanh.pop %v3605
        %v4424 = vtanh.pop %v3753
        %v4425 = vtanh.pop %v3901
        %v4426 = vtanh.pop %v4049
        %v4427 = vtanh.pop %v4197
        %v4428 = vtanh.pop %v4345
        %v4429 = vtanh.pop %v3312
        %v4430 = vtanh.pop %v3460
        %v4431 = vtanh.pop %v3608
        %v4432 = vtanh.pop %v3756
        %v4433 = vtanh.pop %v3904
        %v4434 = vtanh.pop %v4052
        %v4435 = vtanh.pop %v4200
        %v4436 = vtanh.pop %v4348
        %v4437 = vtanh.pop %v3315
        %v4438 = vtanh.pop %v3463
        %v4439 = vtanh.pop %v3611
        %v4440 = vtanh.pop %v3759
        %v4441 = vtanh.pop %v3907
        %v4442 = vtanh.pop %v4055
        %v4443 = vtanh.pop %v4203
        %v4444 = vtanh.pop %v4351
        %v4445 = vtanh.pop %v3318
        %v4446 = vtanh.pop %v3466
        %v4447 = vtanh.pop %v3614
        %v4448 = vtanh.pop %v3762
        %v4449 = vtanh.pop %v3910
        %v4450 = vtanh.pop %v4058
        %v4451 = vtanh.pop %v4206
        %v4452 = vtanh.pop %v4354
        %v4453 = vtanh.pop %v3321
        %v4454 = vtanh.pop %v3469
        %v4455 = vtanh.pop %v3617
        %v4456 = vtanh.pop %v3765
        %v4457 = vtanh.pop %v3913
        %v4458 = vtanh.pop %v4061
        %v4459 = vtanh.pop %v4209
        %v4460 = vtanh.pop %v4357
        %v4461 = vtanh.pop %v3324
        %v4462 = vtanh.pop %v3472
        %v4463 = vtanh.pop %v3620
        %v4464 = vtanh.pop %v3768
        %v4465 = vtanh.pop %v3916
        %v4466 = vtanh.pop %v4064
        %v4467 = vtanh.pop %v4212
        %v4468 = vtanh.pop %v4360
        %v4469 = vtanh.pop %v3327
        %v4470 = vtanh.pop %v3475
        %v4471 = vtanh.pop %v3623
        %v4472 = vtanh.pop %v3771
        %v4473 = vtanh.pop %v3919
        %v4474 = vtanh.pop %v4067
        %v4475 = vtanh.pop %v4215
        %v4476 = vtanh.pop %v4363
        %v4477 = vtanh.pop %v3330
        %v4478 = vtanh.pop %v3478
        %v4479 = vtanh.pop %v3626
        %v4480 = vtanh.pop %v3774
        %v4481 = vtanh.pop %v3922
        %v4482 = vtanh.pop %v4070
        %v4483 = vtanh.pop %v4218
        %v4484 = vtanh.pop %v4366
        %v4485 = vtanh.pop %v3333
        %v4486 = vtanh.pop %v3481
        %v4487 = vtanh.pop %v3629
        %v4488 = vtanh.pop %v3777
        %v4489 = vtanh.pop %v3925
        %v4490 = vtanh.pop %v4073
        %v4491 = vtanh.pop %v4221
        %v4492 = vtanh.pop %v4369
        %v4493 = vtanh.pop %v3336
        %v4494 = vtanh.pop %v3484
        %v4495 = vtanh.pop %v3632
        %v4496 = vtanh.pop %v3780
        %v4497 = vtanh.pop %v3928
        %v4498 = vtanh.pop %v4076
        %v4499 = vtanh.pop %v4224
        %v4500 = vtanh.pop %v4372
        %v4501 = vtanh.pop %v3339
        %v4502 = vtanh.pop %v3487
        %v4503 = vtanh.pop %v3635
        %v4504 = vtanh.pop %v3783
        %v4505 = vtanh.pop %v3931
        %v4506 = vtanh.pop %v4079
        %v4507 = vtanh.pop %v4227
        %v4508 = vtanh.pop %v4375
        %v4509 = vtanh.pop %v3342
        %v4510 = vtanh.pop %v3490
        %v4511 = vtanh.pop %v3638
        %v4512 = vtanh.pop %v3786
        %v4513 = vtanh.pop %v3934
        %v4514 = vtanh.pop %v4082
        %v4515 = vtanh.pop %v4230
        %v4516 = vtanh.pop %v4378
        %v4517 = vtanh.pop %v3345
        %v4518 = vtanh.pop %v3493
        %v4519 = vtanh.pop %v3641
        %v4520 = vtanh.pop %v3789
        %v4521 = vtanh.pop %v3937
        %v4522 = vtanh.pop %v4085
        %v4523 = vtanh.pop %v4233
        %v4524 = vtanh.pop %v4381
        %v4525 = vtanh.pop %v3348
        %v4526 = vtanh.pop %v3496
        %v4527 = vtanh.pop %v3644
        %v4528 = vtanh.pop %v3792
        %v4529 = vtanh.pop %v3940
        %v4530 = vtanh.pop %v4088
        %v4531 = vtanh.pop %v4236
        %v4532 = vtanh.pop %v4384
        %v4533 = vtanh.pop %v3351
        %v4534 = vtanh.pop %v3499
        %v4535 = vtanh.pop %v3647
        %v4536 = vtanh.pop %v3795
        %v4537 = vtanh.pop %v3943
        %v4538 = vtanh.pop %v4091
        %v4539 = vtanh.pop %v4239
        %v4540 = vtanh.pop %v4387
        %s4541 = scalar_lea.vmem [#allocation3], 608
        %v4542 = vld [vmem:[%s4541] sm:$0xff]
        %v4543 = vld [vmem:[%s4541 + $0x8] sm:$0xff]
        %v4544 = vld [vmem:[%s4541 + $0x10] sm:$0xff]
        %v4545 = vld [vmem:[%s4541 + $0x18] sm:$0xff]
        %v4546 = vld [vmem:[%s4541 + $0x20] sm:$0xff]
        %v4547 = vld [vmem:[%s4541 + $0x28] sm:$0xff]
        %v4548 = vld [vmem:[%s4541 + $0x30] sm:$0xff]
        %v4549 = vld [vmem:[%s4541 + $0x38] sm:$0xff]
        %v4550 = vld [vmem:[%s4541 + $0x40] sm:$0xff]
        %v4551 = vld [vmem:[%s4541 + $0x48] sm:$0xff]
        %v4552 = vld [vmem:[%s4541 + $0x50] sm:$0xff]
        %v4553 = vld [vmem:[%s4541 + $0x58] sm:$0xff]
        %v4554 = vld [vmem:[%s4541 + $0x60] sm:$0xff]
        %v4555 = vld [vmem:[%s4541 + $0x68] sm:$0xff]
        %v4556 = vld [vmem:[%s4541 + $0x70] sm:$0xff]
        %v4557 = vld [vmem:[%s4541 + $0x78] sm:$0xff]
        %v4558 = vld [vmem:[%s4541 + $0x80] sm:$0xff]
        %v4559 = vld [vmem:[%s4541 + $0x88] sm:$0xff]
        %v4560 = vld [vmem:[%s4541 + $0x90] sm:$0xff]
        %v4561 = vld [vmem:[%s4541 + $0x98] sm:$0xff]
        %v4562 = vld [vmem:[%s4541 + $0xa0] sm:$0xff]
        %v4563 = vld [vmem:[%s4541 + $0xa8] sm:$0xff]
        %v4564 = vld [vmem:[%s4541 + $0xb0] sm:$0xff]
        %v4565 = vld [vmem:[%s4541 + $0xb8] sm:$0xff]
        %v4566 = vld [vmem:[%s4541 + $0xc0] sm:$0xff]
        %v4567 = vld [vmem:[%s4541 + $0xc8] sm:$0xff]
        %v4568 = vld [vmem:[%s4541 + $0xd0] sm:$0xff]
        %v4569 = vld [vmem:[%s4541 + $0xd8] sm:$0xff]
        %v4570 = vld [vmem:[%s4541 + $0xe0] sm:$0xff]
        %v4571 = vld [vmem:[%s4541 + $0xe8] sm:$0xff]
        %v4572 = vld [vmem:[%s4541 + $0xf0] sm:$0xff]
        %v4573 = vld [vmem:[%s4541 + $0xf8] sm:$0xff]
        %v4574 = vld [vmem:[%s4541 + $0x100] sm:$0xff]
        %v4575 = vld [vmem:[%s4541 + $0x108] sm:$0xff]
        %v4576 = vld [vmem:[%s4541 + $0x110] sm:$0xff]
        %v4577 = vld [vmem:[%s4541 + $0x118] sm:$0xff]
        %v4578 = vld [vmem:[%s4541 + $0x120] sm:$0x3f]
        %v4579 = vld [vmem:[%s4541 + $0x128] sm:$0x3f]
        %s4580 = scalar_lea.vmem %s4, 304
        %v4581 = vld [vmem:[%s4580] sm:$0xff]
        %v4582 = vld [vmem:[%s4580 + $0x8] sm:$0xff]
        %v4583 = vld [vmem:[%s4580 + $0x10] sm:$0xff]
        %v4584 = vld [vmem:[%s4580 + $0x18] sm:$0xff]
        %v4585 = vld [vmem:[%s4580 + $0x20] sm:$0xff]
        %v4586 = vld [vmem:[%s4580 + $0x28] sm:$0xff]
        %v4587 = vld [vmem:[%s4580 + $0x30] sm:$0xff]
        %v4588 = vld [vmem:[%s4580 + $0x38] sm:$0xff]
        %v4589 = vld [vmem:[%s4580 + $0x40] sm:$0xff]
        %v4590 = vld [vmem:[%s4580 + $0x48] sm:$0xff]
        %v4591 = vld [vmem:[%s4580 + $0x50] sm:$0xff]
        %v4592 = vld [vmem:[%s4580 + $0x58] sm:$0xff]
        %v4593 = vld [vmem:[%s4580 + $0x60] sm:$0xff]
        %v4594 = vld [vmem:[%s4580 + $0x68] sm:$0xff]
        %v4595 = vld [vmem:[%s4580 + $0x70] sm:$0xff]
        %v4596 = vld [vmem:[%s4580 + $0x78] sm:$0xff]
        %v4597 = vld [vmem:[%s4580 + $0x80] sm:$0xff]
        %v4598 = vld [vmem:[%s4580 + $0x88] sm:$0xff]
        %v4599 = vld [vmem:[%s4580 + $0x90] sm:$0x3f]
        %4601 = vset.pattern.permute.xlu0 0
        %4602 = vperm.xlu0 %4601, %v4581
        %v4603 = vpop.permute.xlu0 %4602
        %4606 = vset.pattern.permute.xlu0 0
        %4607 = vperm.xlu0 %4606, %v4582
        %v4608 = vpop.permute.xlu0 %4607
        %4611 = vset.pattern.permute.xlu0 0
        %4612 = vperm.xlu0 %4611, %v4583
        %v4613 = vpop.permute.xlu0 %4612
        %4616 = vset.pattern.permute.xlu0 0
        %4617 = vperm.xlu0 %4616, %v4584
        %v4618 = vpop.permute.xlu0 %4617
        %4621 = vset.pattern.permute.xlu0 0
        %4622 = vperm.xlu0 %4621, %v4585
        %v4623 = vpop.permute.xlu0 %4622
        %4626 = vset.pattern.permute.xlu0 0
        %4627 = vperm.xlu0 %4626, %v4586
        %v4628 = vpop.permute.xlu0 %4627
        %4631 = vset.pattern.permute.xlu0 0
        %4632 = vperm.xlu0 %4631, %v4587
        %v4633 = vpop.permute.xlu0 %4632
        %4636 = vset.pattern.permute.xlu0 0
        %4637 = vperm.xlu0 %4636, %v4588
        %v4638 = vpop.permute.xlu0 %4637
        %4641 = vset.pattern.permute.xlu0 0
        %4642 = vperm.xlu0 %4641, %v4589
        %v4643 = vpop.permute.xlu0 %4642
        %4646 = vset.pattern.permute.xlu0 0
        %4647 = vperm.xlu0 %4646, %v4590
        %v4648 = vpop.permute.xlu0 %4647
        %4651 = vset.pattern.permute.xlu0 0
        %4652 = vperm.xlu0 %4651, %v4591
        %v4653 = vpop.permute.xlu0 %4652
        %4656 = vset.pattern.permute.xlu0 0
        %4657 = vperm.xlu0 %4656, %v4592
        %v4658 = vpop.permute.xlu0 %4657
        %4661 = vset.pattern.permute.xlu0 0
        %4662 = vperm.xlu0 %4661, %v4593
        %v4663 = vpop.permute.xlu0 %4662
        %4666 = vset.pattern.permute.xlu0 0
        %4667 = vperm.xlu0 %4666, %v4594
        %v4668 = vpop.permute.xlu0 %4667
        %4671 = vset.pattern.permute.xlu0 0
        %4672 = vperm.xlu0 %4671, %v4595
        %v4673 = vpop.permute.xlu0 %4672
        %4676 = vset.pattern.permute.xlu0 0
        %4677 = vperm.xlu0 %4676, %v4596
        %v4678 = vpop.permute.xlu0 %4677
        %4681 = vset.pattern.permute.xlu0 0
        %4682 = vperm.xlu0 %4681, %v4597
        %v4683 = vpop.permute.xlu0 %4682
        %4686 = vset.pattern.permute.xlu0 0
        %4687 = vperm.xlu0 %4686, %v4598
        %v4688 = vpop.permute.xlu0 %4687
        %4691 = vset.pattern.permute.xlu0 0
        %4692 = vperm.xlu0 %4691, %v4599
        %v4693 = vpop.permute.xlu0 %4692
        %v4696 = vsel %vm1551, %v4543, 0
        %v4699 = vsel %vm1551, %v4545, 0
        %v4702 = vsel %vm1551, %v4547, 0
        %v4705 = vsel %vm1551, %v4549, 0
        %v4708 = vsel %vm1551, %v4551, 0
        %v4711 = vsel %vm1551, %v4553, 0
        %v4714 = vsel %vm1551, %v4555, 0
        %v4717 = vsel %vm1551, %v4557, 0
        %v4720 = vsel %vm1551, %v4559, 0
        %v4723 = vsel %vm1551, %v4561, 0
        %v4726 = vsel %vm1551, %v4563, 0
        %v4729 = vsel %vm1551, %v4565, 0
        %v4732 = vsel %vm1551, %v4567, 0
        %v4735 = vsel %vm1551, %v4569, 0
        %v4738 = vsel %vm1551, %v4571, 0
        %v4741 = vsel %vm1551, %v4573, 0
        %v4744 = vsel %vm1551, %v4575, 0
        %v4747 = vsel %vm1551, %v4577, 0
        %v4750 = vsel %vm1551, %v4579, 0
        %v4753 = vsel %vm1609, %v4533, 0
        %v4756 = vsel %vm1609, %v4534, 0
        %v4759 = vsel %vm1609, %v4535, 0
        %v4762 = vsel %vm1609, %v4536, 0
        %v4765 = vsel %vm1609, %v4537, 0
        %v4768 = vsel %vm1609, %v4538, 0
        %v4771 = vsel %vm1609, %v4539, 0
        %v4774 = vsel %vm1609, %v4540, 0
        %4776 = vmatpush.msra.mxu0 %v4509
        %4777 = vmatpush.msra.mxu0 %v4501
        %4778 = vmatpush.msra.mxu0 %v4493
        %4779 = vmatpush.msra.mxu0 %v4485
        %4780 = vmatpush.msra.mxu0 %v4477
        %4781 = vmatpush.msra.mxu0 %v4469
        %4782 = vmatpush.msra.mxu0 %v4461
        %4783 = vmatpush.msra.mxu0 %v4453
        %4784 = vmatpush.msra.mxu0 %v4445
        %4785 = vmatpush.msra.mxu0 %v4437
        %4786 = vmatpush.msra.mxu0 %v4429
        %4787 = vmatpush.msra.mxu0 %v4421
        %4788 = vmatpush.msra.mxu0 %v4413
        %4789 = vmatpush.msra.mxu0 %v4405
        %4790 = vmatpush.msra.mxu0 %v4397
        %4791 = vmatpush.msra.mxu0 %v4389
        %4792 = vmatmul.f32.gmra.mxu0 %v4542
        %v4793 = vpop.f32.mrf.mxu0
        %v4794 = vadd.f32 %v4603, %v4793
        %4795 = vmatmul.f32.gmra.mxu0 %v4544
        %v4796 = vpop.f32.mrf.mxu0
        %v4797 = vadd.f32 %v4608, %v4796
        %4798 = vmatmul.f32.gmra.mxu0 %v4546
        %v4799 = vpop.f32.mrf.mxu0
        %v4800 = vadd.f32 %v4613, %v4799
        %4801 = vmatmul.f32.gmra.mxu0 %v4548
        %v4802 = vpop.f32.mrf.mxu0
        %v4803 = vadd.f32 %v4618, %v4802
        %4804 = vmatmul.f32.gmra.mxu0 %v4550
        %v4805 = vpop.f32.mrf.mxu0
        %v4806 = vadd.f32 %v4623, %v4805
        %4807 = vmatmul.f32.gmra.mxu0 %v4552
        %v4808 = vpop.f32.mrf.mxu0
        %v4809 = vadd.f32 %v4628, %v4808
        %4810 = vmatmul.f32.gmra.mxu0 %v4554
        %v4811 = vpop.f32.mrf.mxu0
        %v4812 = vadd.f32 %v4633, %v4811
        %4813 = vmatmul.f32.gmra.mxu0 %v4556
        %v4814 = vpop.f32.mrf.mxu0
        %v4815 = vadd.f32 %v4638, %v4814
        %4816 = vmatmul.f32.gmra.mxu0 %v4558
        %v4817 = vpop.f32.mrf.mxu0
        %v4818 = vadd.f32 %v4643, %v4817
        %4819 = vmatmul.f32.gmra.mxu0 %v4560
        %v4820 = vpop.f32.mrf.mxu0
        %v4821 = vadd.f32 %v4648, %v4820
        %4822 = vmatmul.f32.gmra.mxu0 %v4562
        %v4823 = vpop.f32.mrf.mxu0
        %v4824 = vadd.f32 %v4653, %v4823
        %4825 = vmatmul.f32.gmra.mxu0 %v4564
        %v4826 = vpop.f32.mrf.mxu0
        %v4827 = vadd.f32 %v4658, %v4826
        %4828 = vmatmul.f32.gmra.mxu0 %v4566
        %v4829 = vpop.f32.mrf.mxu0
        %v4830 = vadd.f32 %v4663, %v4829
        %4831 = vmatmul.f32.gmra.mxu0 %v4568
        %v4832 = vpop.f32.mrf.mxu0
        %v4833 = vadd.f32 %v4668, %v4832
        %4834 = vmatmul.f32.gmra.mxu0 %v4570
        %v4835 = vpop.f32.mrf.mxu0
        %v4836 = vadd.f32 %v4673, %v4835
        %4837 = vmatmul.f32.gmra.mxu0 %v4572
        %v4838 = vpop.f32.mrf.mxu0
        %v4839 = vadd.f32 %v4678, %v4838
        %4840 = vmatmul.f32.gmra.mxu0 %v4574
        %v4841 = vpop.f32.mrf.mxu0
        %v4842 = vadd.f32 %v4683, %v4841
        %4843 = vmatmul.f32.gmra.mxu0 %v4576
        %v4844 = vpop.f32.mrf.mxu0
        %v4845 = vadd.f32 %v4688, %v4844
        %4846 = vmatmul.f32.gmra.mxu0 %v4578
        %v4847 = vpop.f32.mrf.mxu0
        %v4848 = vadd.f32 %v4693, %v4847
        %4849 = vdwg.mxu0
        %4850 = vmatpush.msra.mxu0 0.0
        %4851 = vmatpush.msra.mxu0 0.0
        %4852 = vmatpush.msra.mxu0 0.0
        %4853 = vmatpush.msra.mxu0 0.0
        %4854 = vmatpush.msra.mxu0 0.0
        %4855 = vmatpush.msra.mxu0 0.0
        %4856 = vmatpush.msra.mxu0 0.0
        %4857 = vmatpush.msra.mxu0 0.0
        %4858 = vmatpush.msra.mxu0 0.0
        %4859 = vmatpush.msra.mxu0 0.0
        %4860 = vmatpush.msra.mxu0 0.0
        %4861 = vmatpush.msra.mxu0 0.0
        %4862 = vmatpush.msra.mxu0 0.0
        %4863 = vmatpush.msra.mxu0 %v4753
        %4864 = vmatpush.msra.mxu0 %v4525
        %4865 = vmatpush.msra.mxu0 %v4517
        %4866 = vmatmul.f32.gmra.mxu0 %v4696
        %v4867 = vpop.f32.mrf.mxu0
        %v4868 = vadd.f32 %v4794, %v4867
        %4869 = vmatmul.f32.gmra.mxu0 %v4699
        %v4870 = vpop.f32.mrf.mxu0
        %v4871 = vadd.f32 %v4797, %v4870
        %4872 = vmatmul.f32.gmra.mxu0 %v4702
        %v4873 = vpop.f32.mrf.mxu0
        %v4874 = vadd.f32 %v4800, %v4873
        %4875 = vmatmul.f32.gmra.mxu0 %v4705
        %v4876 = vpop.f32.mrf.mxu0
        %v4877 = vadd.f32 %v4803, %v4876
        %4878 = vmatmul.f32.gmra.mxu0 %v4708
        %v4879 = vpop.f32.mrf.mxu0
        %v4880 = vadd.f32 %v4806, %v4879
        %4881 = vmatmul.f32.gmra.mxu0 %v4711
        %v4882 = vpop.f32.mrf.mxu0
        %v4883 = vadd.f32 %v4809, %v4882
        %4884 = vmatmul.f32.gmra.mxu0 %v4714
        %v4885 = vpop.f32.mrf.mxu0
        %v4886 = vadd.f32 %v4812, %v4885
        %4887 = vmatmul.f32.gmra.mxu0 %v4717
        %v4888 = vpop.f32.mrf.mxu0
        %v4889 = vadd.f32 %v4815, %v4888
        %4890 = vmatmul.f32.gmra.mxu0 %v4720
        %v4891 = vpop.f32.mrf.mxu0
        %v4892 = vadd.f32 %v4818, %v4891
        %4893 = vmatmul.f32.gmra.mxu0 %v4723
        %v4894 = vpop.f32.mrf.mxu0
        %v4895 = vadd.f32 %v4821, %v4894
        %4896 = vmatmul.f32.gmra.mxu0 %v4726
        %v4897 = vpop.f32.mrf.mxu0
        %v4898 = vadd.f32 %v4824, %v4897
        %4899 = vmatmul.f32.gmra.mxu0 %v4729
        %v4900 = vpop.f32.mrf.mxu0
        %v4901 = vadd.f32 %v4827, %v4900
        %4902 = vmatmul.f32.gmra.mxu0 %v4732
        %v4903 = vpop.f32.mrf.mxu0
        %v4904 = vadd.f32 %v4830, %v4903
        %4905 = vmatmul.f32.gmra.mxu0 %v4735
        %v4906 = vpop.f32.mrf.mxu0
        %v4907 = vadd.f32 %v4833, %v4906
        %4908 = vmatmul.f32.gmra.mxu0 %v4738
        %v4909 = vpop.f32.mrf.mxu0
        %v4910 = vadd.f32 %v4836, %v4909
        %4911 = vmatmul.f32.gmra.mxu0 %v4741
        %v4912 = vpop.f32.mrf.mxu0
        %v4913 = vadd.f32 %v4839, %v4912
        %4914 = vmatmul.f32.gmra.mxu0 %v4744
        %v4915 = vpop.f32.mrf.mxu0
        %v4916 = vadd.f32 %v4842, %v4915
        %4917 = vmatmul.f32.gmra.mxu0 %v4747
        %v4918 = vpop.f32.mrf.mxu0
        %v4919 = vadd.f32 %v4845, %v4918
        %4920 = vmatmul.f32.gmra.mxu0 %v4750
        %v4921 = vpop.f32.mrf.mxu0
        %v4922 = vadd.f32 %v4848, %v4921
        %4923 = vdwg.mxu0
        %4924 = vmatpush.msra.mxu0 %v4510
        %4925 = vmatpush.msra.mxu0 %v4502
        %4926 = vmatpush.msra.mxu0 %v4494
        %4927 = vmatpush.msra.mxu0 %v4486
        %4928 = vmatpush.msra.mxu0 %v4478
        %4929 = vmatpush.msra.mxu0 %v4470
        %4930 = vmatpush.msra.mxu0 %v4462
        %4931 = vmatpush.msra.mxu0 %v4454
        %4932 = vmatpush.msra.mxu0 %v4446
        %4933 = vmatpush.msra.mxu0 %v4438
        %4934 = vmatpush.msra.mxu0 %v4430
        %4935 = vmatpush.msra.mxu0 %v4422
        %4936 = vmatpush.msra.mxu0 %v4414
        %4937 = vmatpush.msra.mxu0 %v4406
        %4938 = vmatpush.msra.mxu0 %v4398
        %4939 = vmatpush.msra.mxu0 %v4390
        %4940 = vmatmul.f32.gmra.mxu0 %v4542
        %v4941 = vpop.f32.mrf.mxu0
        %v4942 = vadd.f32 %v4603, %v4941
        %4943 = vmatmul.f32.gmra.mxu0 %v4544
        %v4944 = vpop.f32.mrf.mxu0
        %v4945 = vadd.f32 %v4608, %v4944
        %4946 = vmatmul.f32.gmra.mxu0 %v4546
        %v4947 = vpop.f32.mrf.mxu0
        %v4948 = vadd.f32 %v4613, %v4947
        %4949 = vmatmul.f32.gmra.mxu0 %v4548
        %v4950 = vpop.f32.mrf.mxu0
        %v4951 = vadd.f32 %v4618, %v4950
        %4952 = vmatmul.f32.gmra.mxu0 %v4550
        %v4953 = vpop.f32.mrf.mxu0
        %v4954 = vadd.f32 %v4623, %v4953
        %4955 = vmatmul.f32.gmra.mxu0 %v4552
        %v4956 = vpop.f32.mrf.mxu0
        %v4957 = vadd.f32 %v4628, %v4956
        %4958 = vmatmul.f32.gmra.mxu0 %v4554
        %v4959 = vpop.f32.mrf.mxu0
        %v4960 = vadd.f32 %v4633, %v4959
        %4961 = vmatmul.f32.gmra.mxu0 %v4556
        %v4962 = vpop.f32.mrf.mxu0
        %v4963 = vadd.f32 %v4638, %v4962
        %4964 = vmatmul.f32.gmra.mxu0 %v4558
        %v4965 = vpop.f32.mrf.mxu0
        %v4966 = vadd.f32 %v4643, %v4965
        %4967 = vmatmul.f32.gmra.mxu0 %v4560
        %v4968 = vpop.f32.mrf.mxu0
        %v4969 = vadd.f32 %v4648, %v4968
        %4970 = vmatmul.f32.gmra.mxu0 %v4562
        %v4971 = vpop.f32.mrf.mxu0
        %v4972 = vadd.f32 %v4653, %v4971
        %4973 = vmatmul.f32.gmra.mxu0 %v4564
        %v4974 = vpop.f32.mrf.mxu0
        %v4975 = vadd.f32 %v4658, %v4974
        %4976 = vmatmul.f32.gmra.mxu0 %v4566
        %v4977 = vpop.f32.mrf.mxu0
        %v4978 = vadd.f32 %v4663, %v4977
        %4979 = vmatmul.f32.gmra.mxu0 %v4568
        %v4980 = vpop.f32.mrf.mxu0
        %v4981 = vadd.f32 %v4668, %v4980
        %4982 = vmatmul.f32.gmra.mxu0 %v4570
        %v4983 = vpop.f32.mrf.mxu0
        %v4984 = vadd.f32 %v4673, %v4983
        %4985 = vmatmul.f32.gmra.mxu0 %v4572
        %v4986 = vpop.f32.mrf.mxu0
        %v4987 = vadd.f32 %v4678, %v4986
        %4988 = vmatmul.f32.gmra.mxu0 %v4574
        %v4989 = vpop.f32.mrf.mxu0
        %v4990 = vadd.f32 %v4683, %v4989
        %4991 = vmatmul.f32.gmra.mxu0 %v4576
        %v4992 = vpop.f32.mrf.mxu0
        %v4993 = vadd.f32 %v4688, %v4992
        %4994 = vmatmul.f32.gmra.mxu0 %v4578
        %v4995 = vpop.f32.mrf.mxu0
        %v4996 = vadd.f32 %v4693, %v4995
        %4997 = vdwg.mxu0
        %4998 = vmatpush.msra.mxu0 0.0
        %4999 = vmatpush.msra.mxu0 0.0
        %5000 = vmatpush.msra.mxu0 0.0
        %5001 = vmatpush.msra.mxu0 0.0
        %5002 = vmatpush.msra.mxu0 0.0
        %5003 = vmatpush.msra.mxu0 0.0
        %5004 = vmatpush.msra.mxu0 0.0
        %5005 = vmatpush.msra.mxu0 0.0
        %5006 = vmatpush.msra.mxu0 0.0
        %5007 = vmatpush.msra.mxu0 0.0
        %5008 = vmatpush.msra.mxu0 0.0
        %5009 = vmatpush.msra.mxu0 0.0
        %5010 = vmatpush.msra.mxu0 0.0
        %5011 = vmatpush.msra.mxu0 %v4756
        %5012 = vmatpush.msra.mxu0 %v4526
        %5013 = vmatpush.msra.mxu0 %v4518
        %5014 = vmatmul.f32.gmra.mxu0 %v4696
        %v5015 = vpop.f32.mrf.mxu0
        %v5016 = vadd.f32 %v4942, %v5015
        %5017 = vmatmul.f32.gmra.mxu0 %v4699
        %v5018 = vpop.f32.mrf.mxu0
        %v5019 = vadd.f32 %v4945, %v5018
        %5020 = vmatmul.f32.gmra.mxu0 %v4702
        %v5021 = vpop.f32.mrf.mxu0
        %v5022 = vadd.f32 %v4948, %v5021
        %5023 = vmatmul.f32.gmra.mxu0 %v4705
        %v5024 = vpop.f32.mrf.mxu0
        %v5025 = vadd.f32 %v4951, %v5024
        %5026 = vmatmul.f32.gmra.mxu0 %v4708
        %v5027 = vpop.f32.mrf.mxu0
        %v5028 = vadd.f32 %v4954, %v5027
        %5029 = vmatmul.f32.gmra.mxu0 %v4711
        %v5030 = vpop.f32.mrf.mxu0
        %v5031 = vadd.f32 %v4957, %v5030
        %5032 = vmatmul.f32.gmra.mxu0 %v4714
        %v5033 = vpop.f32.mrf.mxu0
        %v5034 = vadd.f32 %v4960, %v5033
        %5035 = vmatmul.f32.gmra.mxu0 %v4717
        %v5036 = vpop.f32.mrf.mxu0
        %v5037 = vadd.f32 %v4963, %v5036
        %5038 = vmatmul.f32.gmra.mxu0 %v4720
        %v5039 = vpop.f32.mrf.mxu0
        %v5040 = vadd.f32 %v4966, %v5039
        %5041 = vmatmul.f32.gmra.mxu0 %v4723
        %v5042 = vpop.f32.mrf.mxu0
        %v5043 = vadd.f32 %v4969, %v5042
        %5044 = vmatmul.f32.gmra.mxu0 %v4726
        %v5045 = vpop.f32.mrf.mxu0
        %v5046 = vadd.f32 %v4972, %v5045
        %5047 = vmatmul.f32.gmra.mxu0 %v4729
        %v5048 = vpop.f32.mrf.mxu0
        %v5049 = vadd.f32 %v4975, %v5048
        %5050 = vmatmul.f32.gmra.mxu0 %v4732
        %v5051 = vpop.f32.mrf.mxu0
        %v5052 = vadd.f32 %v4978, %v5051
        %5053 = vmatmul.f32.gmra.mxu0 %v4735
        %v5054 = vpop.f32.mrf.mxu0
        %v5055 = vadd.f32 %v4981, %v5054
        %5056 = vmatmul.f32.gmra.mxu0 %v4738
        %v5057 = vpop.f32.mrf.mxu0
        %v5058 = vadd.f32 %v4984, %v5057
        %5059 = vmatmul.f32.gmra.mxu0 %v4741
        %v5060 = vpop.f32.mrf.mxu0
        %v5061 = vadd.f32 %v4987, %v5060
        %5062 = vmatmul.f32.gmra.mxu0 %v4744
        %v5063 = vpop.f32.mrf.mxu0
        %v5064 = vadd.f32 %v4990, %v5063
        %5065 = vmatmul.f32.gmra.mxu0 %v4747
        %v5066 = vpop.f32.mrf.mxu0
        %v5067 = vadd.f32 %v4993, %v5066
        %5068 = vmatmul.f32.gmra.mxu0 %v4750
        %v5069 = vpop.f32.mrf.mxu0
        %v5070 = vadd.f32 %v4996, %v5069
        %5071 = vdwg.mxu0
        %5072 = vmatpush.msra.mxu0 %v4511
        %5073 = vmatpush.msra.mxu0 %v4503
        %5074 = vmatpush.msra.mxu0 %v4495
        %5075 = vmatpush.msra.mxu0 %v4487
        %5076 = vmatpush.msra.mxu0 %v4479
        %5077 = vmatpush.msra.mxu0 %v4471
        %5078 = vmatpush.msra.mxu0 %v4463
        %5079 = vmatpush.msra.mxu0 %v4455
        %5080 = vmatpush.msra.mxu0 %v4447
        %5081 = vmatpush.msra.mxu0 %v4439
        %5082 = vmatpush.msra.mxu0 %v4431
        %5083 = vmatpush.msra.mxu0 %v4423
        %5084 = vmatpush.msra.mxu0 %v4415
        %5085 = vmatpush.msra.mxu0 %v4407
        %5086 = vmatpush.msra.mxu0 %v4399
        %5087 = vmatpush.msra.mxu0 %v4391
        %5088 = vmatmul.f32.gmra.mxu0 %v4542
        %v5089 = vpop.f32.mrf.mxu0
        %v5090 = vadd.f32 %v4603, %v5089
        %5091 = vmatmul.f32.gmra.mxu0 %v4544
        %v5092 = vpop.f32.mrf.mxu0
        %v5093 = vadd.f32 %v4608, %v5092
        %5094 = vmatmul.f32.gmra.mxu0 %v4546
        %v5095 = vpop.f32.mrf.mxu0
        %v5096 = vadd.f32 %v4613, %v5095
        %5097 = vmatmul.f32.gmra.mxu0 %v4548
        %v5098 = vpop.f32.mrf.mxu0
        %v5099 = vadd.f32 %v4618, %v5098
        %5100 = vmatmul.f32.gmra.mxu0 %v4550
        %v5101 = vpop.f32.mrf.mxu0
        %v5102 = vadd.f32 %v4623, %v5101
        %5103 = vmatmul.f32.gmra.mxu0 %v4552
        %v5104 = vpop.f32.mrf.mxu0
        %v5105 = vadd.f32 %v4628, %v5104
        %5106 = vmatmul.f32.gmra.mxu0 %v4554
        %v5107 = vpop.f32.mrf.mxu0
        %v5108 = vadd.f32 %v4633, %v5107
        %5109 = vmatmul.f32.gmra.mxu0 %v4556
        %v5110 = vpop.f32.mrf.mxu0
        %v5111 = vadd.f32 %v4638, %v5110
        %5112 = vmatmul.f32.gmra.mxu0 %v4558
        %v5113 = vpop.f32.mrf.mxu0
        %v5114 = vadd.f32 %v4643, %v5113
        %5115 = vmatmul.f32.gmra.mxu0 %v4560
        %v5116 = vpop.f32.mrf.mxu0
        %v5117 = vadd.f32 %v4648, %v5116
        %5118 = vmatmul.f32.gmra.mxu0 %v4562
        %v5119 = vpop.f32.mrf.mxu0
        %v5120 = vadd.f32 %v4653, %v5119
        %5121 = vmatmul.f32.gmra.mxu0 %v4564
        %v5122 = vpop.f32.mrf.mxu0
        %v5123 = vadd.f32 %v4658, %v5122
        %5124 = vmatmul.f32.gmra.mxu0 %v4566
        %v5125 = vpop.f32.mrf.mxu0
        %v5126 = vadd.f32 %v4663, %v5125
        %5127 = vmatmul.f32.gmra.mxu0 %v4568
        %v5128 = vpop.f32.mrf.mxu0
        %v5129 = vadd.f32 %v4668, %v5128
        %5130 = vmatmul.f32.gmra.mxu0 %v4570
        %v5131 = vpop.f32.mrf.mxu0
        %v5132 = vadd.f32 %v4673, %v5131
        %5133 = vmatmul.f32.gmra.mxu0 %v4572
        %v5134 = vpop.f32.mrf.mxu0
        %v5135 = vadd.f32 %v4678, %v5134
        %5136 = vmatmul.f32.gmra.mxu0 %v4574
        %v5137 = vpop.f32.mrf.mxu0
        %v5138 = vadd.f32 %v4683, %v5137
        %5139 = vmatmul.f32.gmra.mxu0 %v4576
        %v5140 = vpop.f32.mrf.mxu0
        %v5141 = vadd.f32 %v4688, %v5140
        %5142 = vmatmul.f32.gmra.mxu0 %v4578
        %v5143 = vpop.f32.mrf.mxu0
        %v5144 = vadd.f32 %v4693, %v5143
        %5145 = vdwg.mxu0
        %5146 = vmatpush.msra.mxu0 0.0
        %5147 = vmatpush.msra.mxu0 0.0
        %5148 = vmatpush.msra.mxu0 0.0
        %5149 = vmatpush.msra.mxu0 0.0
        %5150 = vmatpush.msra.mxu0 0.0
        %5151 = vmatpush.msra.mxu0 0.0
        %5152 = vmatpush.msra.mxu0 0.0
        %5153 = vmatpush.msra.mxu0 0.0
        %5154 = vmatpush.msra.mxu0 0.0
        %5155 = vmatpush.msra.mxu0 0.0
        %5156 = vmatpush.msra.mxu0 0.0
        %5157 = vmatpush.msra.mxu0 0.0
        %5158 = vmatpush.msra.mxu0 0.0
        %5159 = vmatpush.msra.mxu0 %v4759
        %5160 = vmatpush.msra.mxu0 %v4527
        %5161 = vmatpush.msra.mxu0 %v4519
        %5162 = vmatmul.f32.gmra.mxu0 %v4696
        %v5163 = vpop.f32.mrf.mxu0
        %v5164 = vadd.f32 %v5090, %v5163
        %5165 = vmatmul.f32.gmra.mxu0 %v4699
        %v5166 = vpop.f32.mrf.mxu0
        %v5167 = vadd.f32 %v5093, %v5166
        %5168 = vmatmul.f32.gmra.mxu0 %v4702
        %v5169 = vpop.f32.mrf.mxu0
        %v5170 = vadd.f32 %v5096, %v5169
        %5171 = vmatmul.f32.gmra.mxu0 %v4705
        %v5172 = vpop.f32.mrf.mxu0
        %v5173 = vadd.f32 %v5099, %v5172
        %5174 = vmatmul.f32.gmra.mxu0 %v4708
        %v5175 = vpop.f32.mrf.mxu0
        %v5176 = vadd.f32 %v5102, %v5175
        %5177 = vmatmul.f32.gmra.mxu0 %v4711
        %v5178 = vpop.f32.mrf.mxu0
        %v5179 = vadd.f32 %v5105, %v5178
        %5180 = vmatmul.f32.gmra.mxu0 %v4714
        %v5181 = vpop.f32.mrf.mxu0
        %v5182 = vadd.f32 %v5108, %v5181
        %5183 = vmatmul.f32.gmra.mxu0 %v4717
        %v5184 = vpop.f32.mrf.mxu0
        %v5185 = vadd.f32 %v5111, %v5184
        %5186 = vmatmul.f32.gmra.mxu0 %v4720
        %v5187 = vpop.f32.mrf.mxu0
        %v5188 = vadd.f32 %v5114, %v5187
        %5189 = vmatmul.f32.gmra.mxu0 %v4723
        %v5190 = vpop.f32.mrf.mxu0
        %v5191 = vadd.f32 %v5117, %v5190
        %5192 = vmatmul.f32.gmra.mxu0 %v4726
        %v5193 = vpop.f32.mrf.mxu0
        %v5194 = vadd.f32 %v5120, %v5193
        %5195 = vmatmul.f32.gmra.mxu0 %v4729
        %v5196 = vpop.f32.mrf.mxu0
        %v5197 = vadd.f32 %v5123, %v5196
        %5198 = vmatmul.f32.gmra.mxu0 %v4732
        %v5199 = vpop.f32.mrf.mxu0
        %v5200 = vadd.f32 %v5126, %v5199
        %5201 = vmatmul.f32.gmra.mxu0 %v4735
        %v5202 = vpop.f32.mrf.mxu0
        %v5203 = vadd.f32 %v5129, %v5202
        %5204 = vmatmul.f32.gmra.mxu0 %v4738
        %v5205 = vpop.f32.mrf.mxu0
        %v5206 = vadd.f32 %v5132, %v5205
        %5207 = vmatmul.f32.gmra.mxu0 %v4741
        %v5208 = vpop.f32.mrf.mxu0
        %v5209 = vadd.f32 %v5135, %v5208
        %5210 = vmatmul.f32.gmra.mxu0 %v4744
        %v5211 = vpop.f32.mrf.mxu0
        %v5212 = vadd.f32 %v5138, %v5211
        %5213 = vmatmul.f32.gmra.mxu0 %v4747
        %v5214 = vpop.f32.mrf.mxu0
        %v5215 = vadd.f32 %v5141, %v5214
        %5216 = vmatmul.f32.gmra.mxu0 %v4750
        %v5217 = vpop.f32.mrf.mxu0
        %v5218 = vadd.f32 %v5144, %v5217
        %5219 = vdwg.mxu0
        %5220 = vmatpush.msra.mxu0 %v4512
        %5221 = vmatpush.msra.mxu0 %v4504
        %5222 = vmatpush.msra.mxu0 %v4496
        %5223 = vmatpush.msra.mxu0 %v4488
        %5224 = vmatpush.msra.mxu0 %v4480
        %5225 = vmatpush.msra.mxu0 %v4472
        %5226 = vmatpush.msra.mxu0 %v4464
        %5227 = vmatpush.msra.mxu0 %v4456
        %5228 = vmatpush.msra.mxu0 %v4448
        %5229 = vmatpush.msra.mxu0 %v4440
        %5230 = vmatpush.msra.mxu0 %v4432
        %5231 = vmatpush.msra.mxu0 %v4424
        %5232 = vmatpush.msra.mxu0 %v4416
        %5233 = vmatpush.msra.mxu0 %v4408
        %5234 = vmatpush.msra.mxu0 %v4400
        %5235 = vmatpush.msra.mxu0 %v4392
        %5236 = vmatmul.f32.gmra.mxu0 %v4542
        %v5237 = vpop.f32.mrf.mxu0
        %v5238 = vadd.f32 %v4603, %v5237
        %5239 = vmatmul.f32.gmra.mxu0 %v4544
        %v5240 = vpop.f32.mrf.mxu0
        %v5241 = vadd.f32 %v4608, %v5240
        %5242 = vmatmul.f32.gmra.mxu0 %v4546
        %v5243 = vpop.f32.mrf.mxu0
        %v5244 = vadd.f32 %v4613, %v5243
        %5245 = vmatmul.f32.gmra.mxu0 %v4548
        %v5246 = vpop.f32.mrf.mxu0
        %v5247 = vadd.f32 %v4618, %v5246
        %5248 = vmatmul.f32.gmra.mxu0 %v4550
        %v5249 = vpop.f32.mrf.mxu0
        %v5250 = vadd.f32 %v4623, %v5249
        %5251 = vmatmul.f32.gmra.mxu0 %v4552
        %v5252 = vpop.f32.mrf.mxu0
        %v5253 = vadd.f32 %v4628, %v5252
        %5254 = vmatmul.f32.gmra.mxu0 %v4554
        %v5255 = vpop.f32.mrf.mxu0
        %v5256 = vadd.f32 %v4633, %v5255
        %5257 = vmatmul.f32.gmra.mxu0 %v4556
        %v5258 = vpop.f32.mrf.mxu0
        %v5259 = vadd.f32 %v4638, %v5258
        %5260 = vmatmul.f32.gmra.mxu0 %v4558
        %v5261 = vpop.f32.mrf.mxu0
        %v5262 = vadd.f32 %v4643, %v5261
        %5263 = vmatmul.f32.gmra.mxu0 %v4560
        %v5264 = vpop.f32.mrf.mxu0
        %v5265 = vadd.f32 %v4648, %v5264
        %5266 = vmatmul.f32.gmra.mxu0 %v4562
        %v5267 = vpop.f32.mrf.mxu0
        %v5268 = vadd.f32 %v4653, %v5267
        %5269 = vmatmul.f32.gmra.mxu0 %v4564
        %v5270 = vpop.f32.mrf.mxu0
        %v5271 = vadd.f32 %v4658, %v5270
        %5272 = vmatmul.f32.gmra.mxu0 %v4566
        %v5273 = vpop.f32.mrf.mxu0
        %v5274 = vadd.f32 %v4663, %v5273
        %5275 = vmatmul.f32.gmra.mxu0 %v4568
        %v5276 = vpop.f32.mrf.mxu0
        %v5277 = vadd.f32 %v4668, %v5276
        %5278 = vmatmul.f32.gmra.mxu0 %v4570
        %v5279 = vpop.f32.mrf.mxu0
        %v5280 = vadd.f32 %v4673, %v5279
        %5281 = vmatmul.f32.gmra.mxu0 %v4572
        %v5282 = vpop.f32.mrf.mxu0
        %v5283 = vadd.f32 %v4678, %v5282
        %5284 = vmatmul.f32.gmra.mxu0 %v4574
        %v5285 = vpop.f32.mrf.mxu0
        %v5286 = vadd.f32 %v4683, %v5285
        %5287 = vmatmul.f32.gmra.mxu0 %v4576
        %v5288 = vpop.f32.mrf.mxu0
        %v5289 = vadd.f32 %v4688, %v5288
        %5290 = vmatmul.f32.gmra.mxu0 %v4578
        %v5291 = vpop.f32.mrf.mxu0
        %v5292 = vadd.f32 %v4693, %v5291
        %5293 = vdwg.mxu0
        %5294 = vmatpush.msra.mxu0 0.0
        %5295 = vmatpush.msra.mxu0 0.0
        %5296 = vmatpush.msra.mxu0 0.0
        %5297 = vmatpush.msra.mxu0 0.0
        %5298 = vmatpush.msra.mxu0 0.0
        %5299 = vmatpush.msra.mxu0 0.0
        %5300 = vmatpush.msra.mxu0 0.0
        %5301 = vmatpush.msra.mxu0 0.0
        %5302 = vmatpush.msra.mxu0 0.0
        %5303 = vmatpush.msra.mxu0 0.0
        %5304 = vmatpush.msra.mxu0 0.0
        %5305 = vmatpush.msra.mxu0 0.0
        %5306 = vmatpush.msra.mxu0 0.0
        %5307 = vmatpush.msra.mxu0 %v4762
        %5308 = vmatpush.msra.mxu0 %v4528
        %5309 = vmatpush.msra.mxu0 %v4520
        %5310 = vmatmul.f32.gmra.mxu0 %v4696
        %v5311 = vpop.f32.mrf.mxu0
        %v5312 = vadd.f32 %v5238, %v5311
        %5313 = vmatmul.f32.gmra.mxu0 %v4699
        %v5314 = vpop.f32.mrf.mxu0
        %v5315 = vadd.f32 %v5241, %v5314
        %5316 = vmatmul.f32.gmra.mxu0 %v4702
        %v5317 = vpop.f32.mrf.mxu0
        %v5318 = vadd.f32 %v5244, %v5317
        %5319 = vmatmul.f32.gmra.mxu0 %v4705
        %v5320 = vpop.f32.mrf.mxu0
        %v5321 = vadd.f32 %v5247, %v5320
        %5322 = vmatmul.f32.gmra.mxu0 %v4708
        %v5323 = vpop.f32.mrf.mxu0
        %v5324 = vadd.f32 %v5250, %v5323
        %5325 = vmatmul.f32.gmra.mxu0 %v4711
        %v5326 = vpop.f32.mrf.mxu0
        %v5327 = vadd.f32 %v5253, %v5326
        %5328 = vmatmul.f32.gmra.mxu0 %v4714
        %v5329 = vpop.f32.mrf.mxu0
        %v5330 = vadd.f32 %v5256, %v5329
        %5331 = vmatmul.f32.gmra.mxu0 %v4717
        %v5332 = vpop.f32.mrf.mxu0
        %v5333 = vadd.f32 %v5259, %v5332
        %5334 = vmatmul.f32.gmra.mxu0 %v4720
        %v5335 = vpop.f32.mrf.mxu0
        %v5336 = vadd.f32 %v5262, %v5335
        %5337 = vmatmul.f32.gmra.mxu0 %v4723
        %v5338 = vpop.f32.mrf.mxu0
        %v5339 = vadd.f32 %v5265, %v5338
        %5340 = vmatmul.f32.gmra.mxu0 %v4726
        %v5341 = vpop.f32.mrf.mxu0
        %v5342 = vadd.f32 %v5268, %v5341
        %5343 = vmatmul.f32.gmra.mxu0 %v4729
        %v5344 = vpop.f32.mrf.mxu0
        %v5345 = vadd.f32 %v5271, %v5344
        %5346 = vmatmul.f32.gmra.mxu0 %v4732
        %v5347 = vpop.f32.mrf.mxu0
        %v5348 = vadd.f32 %v5274, %v5347
        %5349 = vmatmul.f32.gmra.mxu0 %v4735
        %v5350 = vpop.f32.mrf.mxu0
        %v5351 = vadd.f32 %v5277, %v5350
        %5352 = vmatmul.f32.gmra.mxu0 %v4738
        %v5353 = vpop.f32.mrf.mxu0
        %v5354 = vadd.f32 %v5280, %v5353
        %5355 = vmatmul.f32.gmra.mxu0 %v4741
        %v5356 = vpop.f32.mrf.mxu0
        %v5357 = vadd.f32 %v5283, %v5356
        %5358 = vmatmul.f32.gmra.mxu0 %v4744
        %v5359 = vpop.f32.mrf.mxu0
        %v5360 = vadd.f32 %v5286, %v5359
        %5361 = vmatmul.f32.gmra.mxu0 %v4747
        %v5362 = vpop.f32.mrf.mxu0
        %v5363 = vadd.f32 %v5289, %v5362
        %5364 = vmatmul.f32.gmra.mxu0 %v4750
        %v5365 = vpop.f32.mrf.mxu0
        %v5366 = vadd.f32 %v5292, %v5365
        %5367 = vdwg.mxu0
        %5368 = vmatpush.msra.mxu0 %v4513
        %5369 = vmatpush.msra.mxu0 %v4505
        %5370 = vmatpush.msra.mxu0 %v4497
        %5371 = vmatpush.msra.mxu0 %v4489
        %5372 = vmatpush.msra.mxu0 %v4481
        %5373 = vmatpush.msra.mxu0 %v4473
        %5374 = vmatpush.msra.mxu0 %v4465
        %5375 = vmatpush.msra.mxu0 %v4457
        %5376 = vmatpush.msra.mxu0 %v4449
        %5377 = vmatpush.msra.mxu0 %v4441
        %5378 = vmatpush.msra.mxu0 %v4433
        %5379 = vmatpush.msra.mxu0 %v4425
        %5380 = vmatpush.msra.mxu0 %v4417
        %5381 = vmatpush.msra.mxu0 %v4409
        %5382 = vmatpush.msra.mxu0 %v4401
        %5383 = vmatpush.msra.mxu0 %v4393
        %5384 = vmatmul.f32.gmra.mxu0 %v4542
        %v5385 = vpop.f32.mrf.mxu0
        %v5386 = vadd.f32 %v4603, %v5385
        %5387 = vmatmul.f32.gmra.mxu0 %v4544
        %v5388 = vpop.f32.mrf.mxu0
        %v5389 = vadd.f32 %v4608, %v5388
        %5390 = vmatmul.f32.gmra.mxu0 %v4546
        %v5391 = vpop.f32.mrf.mxu0
        %v5392 = vadd.f32 %v4613, %v5391
        %5393 = vmatmul.f32.gmra.mxu0 %v4548
        %v5394 = vpop.f32.mrf.mxu0
        %v5395 = vadd.f32 %v4618, %v5394
        %5396 = vmatmul.f32.gmra.mxu0 %v4550
        %v5397 = vpop.f32.mrf.mxu0
        %v5398 = vadd.f32 %v4623, %v5397
        %5399 = vmatmul.f32.gmra.mxu0 %v4552
        %v5400 = vpop.f32.mrf.mxu0
        %v5401 = vadd.f32 %v4628, %v5400
        %5402 = vmatmul.f32.gmra.mxu0 %v4554
        %v5403 = vpop.f32.mrf.mxu0
        %v5404 = vadd.f32 %v4633, %v5403
        %5405 = vmatmul.f32.gmra.mxu0 %v4556
        %v5406 = vpop.f32.mrf.mxu0
        %v5407 = vadd.f32 %v4638, %v5406
        %5408 = vmatmul.f32.gmra.mxu0 %v4558
        %v5409 = vpop.f32.mrf.mxu0
        %v5410 = vadd.f32 %v4643, %v5409
        %5411 = vmatmul.f32.gmra.mxu0 %v4560
        %v5412 = vpop.f32.mrf.mxu0
        %v5413 = vadd.f32 %v4648, %v5412
        %5414 = vmatmul.f32.gmra.mxu0 %v4562
        %v5415 = vpop.f32.mrf.mxu0
        %v5416 = vadd.f32 %v4653, %v5415
        %5417 = vmatmul.f32.gmra.mxu0 %v4564
        %v5418 = vpop.f32.mrf.mxu0
        %v5419 = vadd.f32 %v4658, %v5418
        %5420 = vmatmul.f32.gmra.mxu0 %v4566
        %v5421 = vpop.f32.mrf.mxu0
        %v5422 = vadd.f32 %v4663, %v5421
        %5423 = vmatmul.f32.gmra.mxu0 %v4568
        %v5424 = vpop.f32.mrf.mxu0
        %v5425 = vadd.f32 %v4668, %v5424
        %5426 = vmatmul.f32.gmra.mxu0 %v4570
        %v5427 = vpop.f32.mrf.mxu0
        %v5428 = vadd.f32 %v4673, %v5427
        %5429 = vmatmul.f32.gmra.mxu0 %v4572
        %v5430 = vpop.f32.mrf.mxu0
        %v5431 = vadd.f32 %v4678, %v5430
        %5432 = vmatmul.f32.gmra.mxu0 %v4574
        %v5433 = vpop.f32.mrf.mxu0
        %v5434 = vadd.f32 %v4683, %v5433
        %5435 = vmatmul.f32.gmra.mxu0 %v4576
        %v5436 = vpop.f32.mrf.mxu0
        %v5437 = vadd.f32 %v4688, %v5436
        %5438 = vmatmul.f32.gmra.mxu0 %v4578
        %v5439 = vpop.f32.mrf.mxu0
        %v5440 = vadd.f32 %v4693, %v5439
        %5441 = vdwg.mxu0
        %5442 = vmatpush.msra.mxu0 0.0
        %5443 = vmatpush.msra.mxu0 0.0
        %5444 = vmatpush.msra.mxu0 0.0
        %5445 = vmatpush.msra.mxu0 0.0
        %5446 = vmatpush.msra.mxu0 0.0
        %5447 = vmatpush.msra.mxu0 0.0
        %5448 = vmatpush.msra.mxu0 0.0
        %5449 = vmatpush.msra.mxu0 0.0
        %5450 = vmatpush.msra.mxu0 0.0
        %5451 = vmatpush.msra.mxu0 0.0
        %5452 = vmatpush.msra.mxu0 0.0
        %5453 = vmatpush.msra.mxu0 0.0
        %5454 = vmatpush.msra.mxu0 0.0
        %5455 = vmatpush.msra.mxu0 %v4765
        %5456 = vmatpush.msra.mxu0 %v4529
        %5457 = vmatpush.msra.mxu0 %v4521
        %5458 = vmatmul.f32.gmra.mxu0 %v4696
        %v5459 = vpop.f32.mrf.mxu0
        %v5460 = vadd.f32 %v5386, %v5459
        %5461 = vmatmul.f32.gmra.mxu0 %v4699
        %v5462 = vpop.f32.mrf.mxu0
        %v5463 = vadd.f32 %v5389, %v5462
        %5464 = vmatmul.f32.gmra.mxu0 %v4702
        %v5465 = vpop.f32.mrf.mxu0
        %v5466 = vadd.f32 %v5392, %v5465
        %5467 = vmatmul.f32.gmra.mxu0 %v4705
        %v5468 = vpop.f32.mrf.mxu0
        %v5469 = vadd.f32 %v5395, %v5468
        %5470 = vmatmul.f32.gmra.mxu0 %v4708
        %v5471 = vpop.f32.mrf.mxu0
        %v5472 = vadd.f32 %v5398, %v5471
        %5473 = vmatmul.f32.gmra.mxu0 %v4711
        %v5474 = vpop.f32.mrf.mxu0
        %v5475 = vadd.f32 %v5401, %v5474
        %5476 = vmatmul.f32.gmra.mxu0 %v4714
        %v5477 = vpop.f32.mrf.mxu0
        %v5478 = vadd.f32 %v5404, %v5477
        %5479 = vmatmul.f32.gmra.mxu0 %v4717
        %v5480 = vpop.f32.mrf.mxu0
        %v5481 = vadd.f32 %v5407, %v5480
        %5482 = vmatmul.f32.gmra.mxu0 %v4720
        %v5483 = vpop.f32.mrf.mxu0
        %v5484 = vadd.f32 %v5410, %v5483
        %5485 = vmatmul.f32.gmra.mxu0 %v4723
        %v5486 = vpop.f32.mrf.mxu0
        %v5487 = vadd.f32 %v5413, %v5486
        %5488 = vmatmul.f32.gmra.mxu0 %v4726
        %v5489 = vpop.f32.mrf.mxu0
        %v5490 = vadd.f32 %v5416, %v5489
        %5491 = vmatmul.f32.gmra.mxu0 %v4729
        %v5492 = vpop.f32.mrf.mxu0
        %v5493 = vadd.f32 %v5419, %v5492
        %5494 = vmatmul.f32.gmra.mxu0 %v4732
        %v5495 = vpop.f32.mrf.mxu0
        %v5496 = vadd.f32 %v5422, %v5495
        %5497 = vmatmul.f32.gmra.mxu0 %v4735
        %v5498 = vpop.f32.mrf.mxu0
        %v5499 = vadd.f32 %v5425, %v5498
        %5500 = vmatmul.f32.gmra.mxu0 %v4738
        %v5501 = vpop.f32.mrf.mxu0
        %v5502 = vadd.f32 %v5428, %v5501
        %5503 = vmatmul.f32.gmra.mxu0 %v4741
        %v5504 = vpop.f32.mrf.mxu0
        %v5505 = vadd.f32 %v5431, %v5504
        %5506 = vmatmul.f32.gmra.mxu0 %v4744
        %v5507 = vpop.f32.mrf.mxu0
        %v5508 = vadd.f32 %v5434, %v5507
        %5509 = vmatmul.f32.gmra.mxu0 %v4747
        %v5510 = vpop.f32.mrf.mxu0
        %v5511 = vadd.f32 %v5437, %v5510
        %5512 = vmatmul.f32.gmra.mxu0 %v4750
        %v5513 = vpop.f32.mrf.mxu0
        %v5514 = vadd.f32 %v5440, %v5513
        %5515 = vdwg.mxu0
        %5516 = vmatpush.msra.mxu0 %v4514
        %5517 = vmatpush.msra.mxu0 %v4506
        %5518 = vmatpush.msra.mxu0 %v4498
        %5519 = vmatpush.msra.mxu0 %v4490
        %5520 = vmatpush.msra.mxu0 %v4482
        %5521 = vmatpush.msra.mxu0 %v4474
        %5522 = vmatpush.msra.mxu0 %v4466
        %5523 = vmatpush.msra.mxu0 %v4458
        %5524 = vmatpush.msra.mxu0 %v4450
        %5525 = vmatpush.msra.mxu0 %v4442
        %5526 = vmatpush.msra.mxu0 %v4434
        %5527 = vmatpush.msra.mxu0 %v4426
        %5528 = vmatpush.msra.mxu0 %v4418
        %5529 = vmatpush.msra.mxu0 %v4410
        %5530 = vmatpush.msra.mxu0 %v4402
        %5531 = vmatpush.msra.mxu0 %v4394
        %5532 = vmatmul.f32.gmra.mxu0 %v4542
        %v5533 = vpop.f32.mrf.mxu0
        %v5534 = vadd.f32 %v4603, %v5533
        %5535 = vmatmul.f32.gmra.mxu0 %v4544
        %v5536 = vpop.f32.mrf.mxu0
        %v5537 = vadd.f32 %v4608, %v5536
        %5538 = vmatmul.f32.gmra.mxu0 %v4546
        %v5539 = vpop.f32.mrf.mxu0
        %v5540 = vadd.f32 %v4613, %v5539
        %5541 = vmatmul.f32.gmra.mxu0 %v4548
        %v5542 = vpop.f32.mrf.mxu0
        %v5543 = vadd.f32 %v4618, %v5542
        %5544 = vmatmul.f32.gmra.mxu0 %v4550
        %v5545 = vpop.f32.mrf.mxu0
        %v5546 = vadd.f32 %v4623, %v5545
        %5547 = vmatmul.f32.gmra.mxu0 %v4552
        %v5548 = vpop.f32.mrf.mxu0
        %v5549 = vadd.f32 %v4628, %v5548
        %5550 = vmatmul.f32.gmra.mxu0 %v4554
        %v5551 = vpop.f32.mrf.mxu0
        %v5552 = vadd.f32 %v4633, %v5551
        %5553 = vmatmul.f32.gmra.mxu0 %v4556
        %v5554 = vpop.f32.mrf.mxu0
        %v5555 = vadd.f32 %v4638, %v5554
        %5556 = vmatmul.f32.gmra.mxu0 %v4558
        %v5557 = vpop.f32.mrf.mxu0
        %v5558 = vadd.f32 %v4643, %v5557
        %5559 = vmatmul.f32.gmra.mxu0 %v4560
        %v5560 = vpop.f32.mrf.mxu0
        %v5561 = vadd.f32 %v4648, %v5560
        %5562 = vmatmul.f32.gmra.mxu0 %v4562
        %v5563 = vpop.f32.mrf.mxu0
        %v5564 = vadd.f32 %v4653, %v5563
        %5565 = vmatmul.f32.gmra.mxu0 %v4564
        %v5566 = vpop.f32.mrf.mxu0
        %v5567 = vadd.f32 %v4658, %v5566
        %5568 = vmatmul.f32.gmra.mxu0 %v4566
        %v5569 = vpop.f32.mrf.mxu0
        %v5570 = vadd.f32 %v4663, %v5569
        %5571 = vmatmul.f32.gmra.mxu0 %v4568
        %v5572 = vpop.f32.mrf.mxu0
        %v5573 = vadd.f32 %v4668, %v5572
        %5574 = vmatmul.f32.gmra.mxu0 %v4570
        %v5575 = vpop.f32.mrf.mxu0
        %v5576 = vadd.f32 %v4673, %v5575
        %5577 = vmatmul.f32.gmra.mxu0 %v4572
        %v5578 = vpop.f32.mrf.mxu0
        %v5579 = vadd.f32 %v4678, %v5578
        %5580 = vmatmul.f32.gmra.mxu0 %v4574
        %v5581 = vpop.f32.mrf.mxu0
        %v5582 = vadd.f32 %v4683, %v5581
        %5583 = vmatmul.f32.gmra.mxu0 %v4576
        %v5584 = vpop.f32.mrf.mxu0
        %v5585 = vadd.f32 %v4688, %v5584
        %5586 = vmatmul.f32.gmra.mxu0 %v4578
        %v5587 = vpop.f32.mrf.mxu0
        %v5588 = vadd.f32 %v4693, %v5587
        %5589 = vdwg.mxu0
        %5590 = vmatpush.msra.mxu0 0.0
        %5591 = vmatpush.msra.mxu0 0.0
        %5592 = vmatpush.msra.mxu0 0.0
        %5593 = vmatpush.msra.mxu0 0.0
        %5594 = vmatpush.msra.mxu0 0.0
        %5595 = vmatpush.msra.mxu0 0.0
        %5596 = vmatpush.msra.mxu0 0.0
        %5597 = vmatpush.msra.mxu0 0.0
        %5598 = vmatpush.msra.mxu0 0.0
        %5599 = vmatpush.msra.mxu0 0.0
        %5600 = vmatpush.msra.mxu0 0.0
        %5601 = vmatpush.msra.mxu0 0.0
        %5602 = vmatpush.msra.mxu0 0.0
        %5603 = vmatpush.msra.mxu0 %v4768
        %5604 = vmatpush.msra.mxu0 %v4530
        %5605 = vmatpush.msra.mxu0 %v4522
        %5606 = vmatmul.f32.gmra.mxu0 %v4696
        %v5607 = vpop.f32.mrf.mxu0
        %v5608 = vadd.f32 %v5534, %v5607
        %5609 = vmatmul.f32.gmra.mxu0 %v4699
        %v5610 = vpop.f32.mrf.mxu0
        %v5611 = vadd.f32 %v5537, %v5610
        %5612 = vmatmul.f32.gmra.mxu0 %v4702
        %v5613 = vpop.f32.mrf.mxu0
        %v5614 = vadd.f32 %v5540, %v5613
        %5615 = vmatmul.f32.gmra.mxu0 %v4705
        %v5616 = vpop.f32.mrf.mxu0
        %v5617 = vadd.f32 %v5543, %v5616
        %5618 = vmatmul.f32.gmra.mxu0 %v4708
        %v5619 = vpop.f32.mrf.mxu0
        %v5620 = vadd.f32 %v5546, %v5619
        %5621 = vmatmul.f32.gmra.mxu0 %v4711
        %v5622 = vpop.f32.mrf.mxu0
        %v5623 = vadd.f32 %v5549, %v5622
        %5624 = vmatmul.f32.gmra.mxu0 %v4714
        %v5625 = vpop.f32.mrf.mxu0
        %v5626 = vadd.f32 %v5552, %v5625
        %5627 = vmatmul.f32.gmra.mxu0 %v4717
        %v5628 = vpop.f32.mrf.mxu0
        %v5629 = vadd.f32 %v5555, %v5628
        %5630 = vmatmul.f32.gmra.mxu0 %v4720
        %v5631 = vpop.f32.mrf.mxu0
        %v5632 = vadd.f32 %v5558, %v5631
        %5633 = vmatmul.f32.gmra.mxu0 %v4723
        %v5634 = vpop.f32.mrf.mxu0
        %v5635 = vadd.f32 %v5561, %v5634
        %5636 = vmatmul.f32.gmra.mxu0 %v4726
        %v5637 = vpop.f32.mrf.mxu0
        %v5638 = vadd.f32 %v5564, %v5637
        %5639 = vmatmul.f32.gmra.mxu0 %v4729
        %v5640 = vpop.f32.mrf.mxu0
        %v5641 = vadd.f32 %v5567, %v5640
        %5642 = vmatmul.f32.gmra.mxu0 %v4732
        %v5643 = vpop.f32.mrf.mxu0
        %v5644 = vadd.f32 %v5570, %v5643
        %5645 = vmatmul.f32.gmra.mxu0 %v4735
        %v5646 = vpop.f32.mrf.mxu0
        %v5647 = vadd.f32 %v5573, %v5646
        %5648 = vmatmul.f32.gmra.mxu0 %v4738
        %v5649 = vpop.f32.mrf.mxu0
        %v5650 = vadd.f32 %v5576, %v5649
        %5651 = vmatmul.f32.gmra.mxu0 %v4741
        %v5652 = vpop.f32.mrf.mxu0
        %v5653 = vadd.f32 %v5579, %v5652
        %5654 = vmatmul.f32.gmra.mxu0 %v4744
        %v5655 = vpop.f32.mrf.mxu0
        %v5656 = vadd.f32 %v5582, %v5655
        %5657 = vmatmul.f32.gmra.mxu0 %v4747
        %v5658 = vpop.f32.mrf.mxu0
        %v5659 = vadd.f32 %v5585, %v5658
        %5660 = vmatmul.f32.gmra.mxu0 %v4750
        %v5661 = vpop.f32.mrf.mxu0
        %v5662 = vadd.f32 %v5588, %v5661
        %5663 = vdwg.mxu0
        %5664 = vmatpush.msra.mxu0 %v4515
        %5665 = vmatpush.msra.mxu0 %v4507
        %5666 = vmatpush.msra.mxu0 %v4499
        %5667 = vmatpush.msra.mxu0 %v4491
        %5668 = vmatpush.msra.mxu0 %v4483
        %5669 = vmatpush.msra.mxu0 %v4475
        %5670 = vmatpush.msra.mxu0 %v4467
        %5671 = vmatpush.msra.mxu0 %v4459
        %5672 = vmatpush.msra.mxu0 %v4451
        %5673 = vmatpush.msra.mxu0 %v4443
        %5674 = vmatpush.msra.mxu0 %v4435
        %5675 = vmatpush.msra.mxu0 %v4427
        %5676 = vmatpush.msra.mxu0 %v4419
        %5677 = vmatpush.msra.mxu0 %v4411
        %5678 = vmatpush.msra.mxu0 %v4403
        %5679 = vmatpush.msra.mxu0 %v4395
        %5680 = vmatmul.f32.gmra.mxu0 %v4542
        %v5681 = vpop.f32.mrf.mxu0
        %v5682 = vadd.f32 %v4603, %v5681
        %5683 = vmatmul.f32.gmra.mxu0 %v4544
        %v5684 = vpop.f32.mrf.mxu0
        %v5685 = vadd.f32 %v4608, %v5684
        %5686 = vmatmul.f32.gmra.mxu0 %v4546
        %v5687 = vpop.f32.mrf.mxu0
        %v5688 = vadd.f32 %v4613, %v5687
        %5689 = vmatmul.f32.gmra.mxu0 %v4548
        %v5690 = vpop.f32.mrf.mxu0
        %v5691 = vadd.f32 %v4618, %v5690
        %5692 = vmatmul.f32.gmra.mxu0 %v4550
        %v5693 = vpop.f32.mrf.mxu0
        %v5694 = vadd.f32 %v4623, %v5693
        %5695 = vmatmul.f32.gmra.mxu0 %v4552
        %v5696 = vpop.f32.mrf.mxu0
        %v5697 = vadd.f32 %v4628, %v5696
        %5698 = vmatmul.f32.gmra.mxu0 %v4554
        %v5699 = vpop.f32.mrf.mxu0
        %v5700 = vadd.f32 %v4633, %v5699
        %5701 = vmatmul.f32.gmra.mxu0 %v4556
        %v5702 = vpop.f32.mrf.mxu0
        %v5703 = vadd.f32 %v4638, %v5702
        %5704 = vmatmul.f32.gmra.mxu0 %v4558
        %v5705 = vpop.f32.mrf.mxu0
        %v5706 = vadd.f32 %v4643, %v5705
        %5707 = vmatmul.f32.gmra.mxu0 %v4560
        %v5708 = vpop.f32.mrf.mxu0
        %v5709 = vadd.f32 %v4648, %v5708
        %5710 = vmatmul.f32.gmra.mxu0 %v4562
        %v5711 = vpop.f32.mrf.mxu0
        %v5712 = vadd.f32 %v4653, %v5711
        %5713 = vmatmul.f32.gmra.mxu0 %v4564
        %v5714 = vpop.f32.mrf.mxu0
        %v5715 = vadd.f32 %v4658, %v5714
        %5716 = vmatmul.f32.gmra.mxu0 %v4566
        %v5717 = vpop.f32.mrf.mxu0
        %v5718 = vadd.f32 %v4663, %v5717
        %5719 = vmatmul.f32.gmra.mxu0 %v4568
        %v5720 = vpop.f32.mrf.mxu0
        %v5721 = vadd.f32 %v4668, %v5720
        %5722 = vmatmul.f32.gmra.mxu0 %v4570
        %v5723 = vpop.f32.mrf.mxu0
        %v5724 = vadd.f32 %v4673, %v5723
        %5725 = vmatmul.f32.gmra.mxu0 %v4572
        %v5726 = vpop.f32.mrf.mxu0
        %v5727 = vadd.f32 %v4678, %v5726
        %5728 = vmatmul.f32.gmra.mxu0 %v4574
        %v5729 = vpop.f32.mrf.mxu0
        %v5730 = vadd.f32 %v4683, %v5729
        %5731 = vmatmul.f32.gmra.mxu0 %v4576
        %v5732 = vpop.f32.mrf.mxu0
        %v5733 = vadd.f32 %v4688, %v5732
        %5734 = vmatmul.f32.gmra.mxu0 %v4578
        %v5735 = vpop.f32.mrf.mxu0
        %v5736 = vadd.f32 %v4693, %v5735
        %5737 = vdwg.mxu0
        %5738 = vmatpush.msra.mxu0 0.0
        %5739 = vmatpush.msra.mxu0 0.0
        %5740 = vmatpush.msra.mxu0 0.0
        %5741 = vmatpush.msra.mxu0 0.0
        %5742 = vmatpush.msra.mxu0 0.0
        %5743 = vmatpush.msra.mxu0 0.0
        %5744 = vmatpush.msra.mxu0 0.0
        %5745 = vmatpush.msra.mxu0 0.0
        %5746 = vmatpush.msra.mxu0 0.0
        %5747 = vmatpush.msra.mxu0 0.0
        %5748 = vmatpush.msra.mxu0 0.0
        %5749 = vmatpush.msra.mxu0 0.0
        %5750 = vmatpush.msra.mxu0 0.0
        %5751 = vmatpush.msra.mxu0 %v4771
        %5752 = vmatpush.msra.mxu0 %v4531
        %5753 = vmatpush.msra.mxu0 %v4523
        %5754 = vmatmul.f32.gmra.mxu0 %v4696
        %v5755 = vpop.f32.mrf.mxu0
        %v5756 = vadd.f32 %v5682, %v5755
        %5757 = vmatmul.f32.gmra.mxu0 %v4699
        %v5758 = vpop.f32.mrf.mxu0
        %v5759 = vadd.f32 %v5685, %v5758
        %5760 = vmatmul.f32.gmra.mxu0 %v4702
        %v5761 = vpop.f32.mrf.mxu0
        %v5762 = vadd.f32 %v5688, %v5761
        %5763 = vmatmul.f32.gmra.mxu0 %v4705
        %v5764 = vpop.f32.mrf.mxu0
        %v5765 = vadd.f32 %v5691, %v5764
        %5766 = vmatmul.f32.gmra.mxu0 %v4708
        %v5767 = vpop.f32.mrf.mxu0
        %v5768 = vadd.f32 %v5694, %v5767
        %5769 = vmatmul.f32.gmra.mxu0 %v4711
        %v5770 = vpop.f32.mrf.mxu0
        %v5771 = vadd.f32 %v5697, %v5770
        %5772 = vmatmul.f32.gmra.mxu0 %v4714
        %v5773 = vpop.f32.mrf.mxu0
        %v5774 = vadd.f32 %v5700, %v5773
        %5775 = vmatmul.f32.gmra.mxu0 %v4717
        %v5776 = vpop.f32.mrf.mxu0
        %v5777 = vadd.f32 %v5703, %v5776
        %5778 = vmatmul.f32.gmra.mxu0 %v4720
        %v5779 = vpop.f32.mrf.mxu0
        %v5780 = vadd.f32 %v5706, %v5779
        %5781 = vmatmul.f32.gmra.mxu0 %v4723
        %v5782 = vpop.f32.mrf.mxu0
        %v5783 = vadd.f32 %v5709, %v5782
        %5784 = vmatmul.f32.gmra.mxu0 %v4726
        %v5785 = vpop.f32.mrf.mxu0
        %v5786 = vadd.f32 %v5712, %v5785
        %5787 = vmatmul.f32.gmra.mxu0 %v4729
        %v5788 = vpop.f32.mrf.mxu0
        %v5789 = vadd.f32 %v5715, %v5788
        %5790 = vmatmul.f32.gmra.mxu0 %v4732
        %v5791 = vpop.f32.mrf.mxu0
        %v5792 = vadd.f32 %v5718, %v5791
        %5793 = vmatmul.f32.gmra.mxu0 %v4735
        %v5794 = vpop.f32.mrf.mxu0
        %v5795 = vadd.f32 %v5721, %v5794
        %5796 = vmatmul.f32.gmra.mxu0 %v4738
        %v5797 = vpop.f32.mrf.mxu0
        %v5798 = vadd.f32 %v5724, %v5797
        %5799 = vmatmul.f32.gmra.mxu0 %v4741
        %v5800 = vpop.f32.mrf.mxu0
        %v5801 = vadd.f32 %v5727, %v5800
        %5802 = vmatmul.f32.gmra.mxu0 %v4744
        %v5803 = vpop.f32.mrf.mxu0
        %v5804 = vadd.f32 %v5730, %v5803
        %5805 = vmatmul.f32.gmra.mxu0 %v4747
        %v5806 = vpop.f32.mrf.mxu0
        %v5807 = vadd.f32 %v5733, %v5806
        %5808 = vmatmul.f32.gmra.mxu0 %v4750
        %v5809 = vpop.f32.mrf.mxu0
        %v5810 = vadd.f32 %v5736, %v5809
        %5811 = vdwg.mxu0
        %5812 = vmatpush.msra.mxu0 %v4516
        %5813 = vmatpush.msra.mxu0 %v4508
        %5814 = vmatpush.msra.mxu0 %v4500
        %5815 = vmatpush.msra.mxu0 %v4492
        %5816 = vmatpush.msra.mxu0 %v4484
        %5817 = vmatpush.msra.mxu0 %v4476
        %5818 = vmatpush.msra.mxu0 %v4468
        %5819 = vmatpush.msra.mxu0 %v4460
        %5820 = vmatpush.msra.mxu0 %v4452
        %5821 = vmatpush.msra.mxu0 %v4444
        %5822 = vmatpush.msra.mxu0 %v4436
        %5823 = vmatpush.msra.mxu0 %v4428
        %5824 = vmatpush.msra.mxu0 %v4420
        %5825 = vmatpush.msra.mxu0 %v4412
        %5826 = vmatpush.msra.mxu0 %v4404
        %5827 = vmatpush.msra.mxu0 %v4396
        %5828 = vmatmul.f32.gmra.mxu0 %v4542
        %v5829 = vpop.f32.mrf.mxu0
        %v5830 = vadd.f32 %v4603, %v5829
        %5831 = vmatmul.f32.gmra.mxu0 %v4544
        %v5832 = vpop.f32.mrf.mxu0
        %v5833 = vadd.f32 %v4608, %v5832
        %5834 = vmatmul.f32.gmra.mxu0 %v4546
        %v5835 = vpop.f32.mrf.mxu0
        %v5836 = vadd.f32 %v4613, %v5835
        %5837 = vmatmul.f32.gmra.mxu0 %v4548
        %v5838 = vpop.f32.mrf.mxu0
        %v5839 = vadd.f32 %v4618, %v5838
        %5840 = vmatmul.f32.gmra.mxu0 %v4550
        %v5841 = vpop.f32.mrf.mxu0
        %v5842 = vadd.f32 %v4623, %v5841
        %5843 = vmatmul.f32.gmra.mxu0 %v4552
        %v5844 = vpop.f32.mrf.mxu0
        %v5845 = vadd.f32 %v4628, %v5844
        %5846 = vmatmul.f32.gmra.mxu0 %v4554
        %v5847 = vpop.f32.mrf.mxu0
        %v5848 = vadd.f32 %v4633, %v5847
        %5849 = vmatmul.f32.gmra.mxu0 %v4556
        %v5850 = vpop.f32.mrf.mxu0
        %v5851 = vadd.f32 %v4638, %v5850
        %5852 = vmatmul.f32.gmra.mxu0 %v4558
        %v5853 = vpop.f32.mrf.mxu0
        %v5854 = vadd.f32 %v4643, %v5853
        %5855 = vmatmul.f32.gmra.mxu0 %v4560
        %v5856 = vpop.f32.mrf.mxu0
        %v5857 = vadd.f32 %v4648, %v5856
        %5858 = vmatmul.f32.gmra.mxu0 %v4562
        %v5859 = vpop.f32.mrf.mxu0
        %v5860 = vadd.f32 %v4653, %v5859
        %5861 = vmatmul.f32.gmra.mxu0 %v4564
        %v5862 = vpop.f32.mrf.mxu0
        %v5863 = vadd.f32 %v4658, %v5862
        %5864 = vmatmul.f32.gmra.mxu0 %v4566
        %v5865 = vpop.f32.mrf.mxu0
        %v5866 = vadd.f32 %v4663, %v5865
        %5867 = vmatmul.f32.gmra.mxu0 %v4568
        %v5868 = vpop.f32.mrf.mxu0
        %v5869 = vadd.f32 %v4668, %v5868
        %5870 = vmatmul.f32.gmra.mxu0 %v4570
        %v5871 = vpop.f32.mrf.mxu0
        %v5872 = vadd.f32 %v4673, %v5871
        %5873 = vmatmul.f32.gmra.mxu0 %v4572
        %v5874 = vpop.f32.mrf.mxu0
        %v5875 = vadd.f32 %v4678, %v5874
        %5876 = vmatmul.f32.gmra.mxu0 %v4574
        %v5877 = vpop.f32.mrf.mxu0
        %v5878 = vadd.f32 %v4683, %v5877
        %5879 = vmatmul.f32.gmra.mxu0 %v4576
        %v5880 = vpop.f32.mrf.mxu0
        %v5881 = vadd.f32 %v4688, %v5880
        %5882 = vmatmul.f32.gmra.mxu0 %v4578
        %v5883 = vpop.f32.mrf.mxu0
        %v5884 = vadd.f32 %v4693, %v5883
        %5885 = vdwg.mxu0
        %5886 = vmatpush.msra.mxu0 0.0
        %5887 = vmatpush.msra.mxu0 0.0
        %5888 = vmatpush.msra.mxu0 0.0
        %5889 = vmatpush.msra.mxu0 0.0
        %5890 = vmatpush.msra.mxu0 0.0
        %5891 = vmatpush.msra.mxu0 0.0
        %5892 = vmatpush.msra.mxu0 0.0
        %5893 = vmatpush.msra.mxu0 0.0
        %5894 = vmatpush.msra.mxu0 0.0
        %5895 = vmatpush.msra.mxu0 0.0
        %5896 = vmatpush.msra.mxu0 0.0
        %5897 = vmatpush.msra.mxu0 0.0
        %5898 = vmatpush.msra.mxu0 0.0
        %5899 = vmatpush.msra.mxu0 %v4774
        %5900 = vmatpush.msra.mxu0 %v4532
        %5901 = vmatpush.msra.mxu0 %v4524
        %5902 = vmatmul.f32.gmra.mxu0 %v4696
        %v5903 = vpop.f32.mrf.mxu0
        %v5904 = vadd.f32 %v5830, %v5903
        %5905 = vmatmul.f32.gmra.mxu0 %v4699
        %v5906 = vpop.f32.mrf.mxu0
        %v5907 = vadd.f32 %v5833, %v5906
        %5908 = vmatmul.f32.gmra.mxu0 %v4702
        %v5909 = vpop.f32.mrf.mxu0
        %v5910 = vadd.f32 %v5836, %v5909
        %5911 = vmatmul.f32.gmra.mxu0 %v4705
        %v5912 = vpop.f32.mrf.mxu0
        %v5913 = vadd.f32 %v5839, %v5912
        %5914 = vmatmul.f32.gmra.mxu0 %v4708
        %v5915 = vpop.f32.mrf.mxu0
        %v5916 = vadd.f32 %v5842, %v5915
        %5917 = vmatmul.f32.gmra.mxu0 %v4711
        %v5918 = vpop.f32.mrf.mxu0
        %v5919 = vadd.f32 %v5845, %v5918
        %5920 = vmatmul.f32.gmra.mxu0 %v4714
        %v5921 = vpop.f32.mrf.mxu0
        %v5922 = vadd.f32 %v5848, %v5921
        %5923 = vmatmul.f32.gmra.mxu0 %v4717
        %v5924 = vpop.f32.mrf.mxu0
        %v5925 = vadd.f32 %v5851, %v5924
        %5926 = vmatmul.f32.gmra.mxu0 %v4720
        %v5927 = vpop.f32.mrf.mxu0
        %v5928 = vadd.f32 %v5854, %v5927
        %5929 = vmatmul.f32.gmra.mxu0 %v4723
        %v5930 = vpop.f32.mrf.mxu0
        %v5931 = vadd.f32 %v5857, %v5930
        %5932 = vmatmul.f32.gmra.mxu0 %v4726
        %v5933 = vpop.f32.mrf.mxu0
        %v5934 = vadd.f32 %v5860, %v5933
        %5935 = vmatmul.f32.gmra.mxu0 %v4729
        %v5936 = vpop.f32.mrf.mxu0
        %v5937 = vadd.f32 %v5863, %v5936
        %5938 = vmatmul.f32.gmra.mxu0 %v4732
        %v5939 = vpop.f32.mrf.mxu0
        %v5940 = vadd.f32 %v5866, %v5939
        %5941 = vmatmul.f32.gmra.mxu0 %v4735
        %v5942 = vpop.f32.mrf.mxu0
        %v5943 = vadd.f32 %v5869, %v5942
        %5944 = vmatmul.f32.gmra.mxu0 %v4738
        %v5945 = vpop.f32.mrf.mxu0
        %v5946 = vadd.f32 %v5872, %v5945
        %5947 = vmatmul.f32.gmra.mxu0 %v4741
        %v5948 = vpop.f32.mrf.mxu0
        %v5949 = vadd.f32 %v5875, %v5948
        %5950 = vmatmul.f32.gmra.mxu0 %v4744
        %v5951 = vpop.f32.mrf.mxu0
        %v5952 = vadd.f32 %v5878, %v5951
        %5953 = vmatmul.f32.gmra.mxu0 %v4747
        %v5954 = vpop.f32.mrf.mxu0
        %v5955 = vadd.f32 %v5881, %v5954
        %5956 = vmatmul.f32.gmra.mxu0 %v4750
        %v5957 = vpop.f32.mrf.mxu0
        %v5958 = vadd.f32 %v5884, %v5957
        %5959 = vdwg.mxu0
        %v5960 = vtanh.pop %v4868
        %v5961 = vtanh.pop %v5016
        %v5962 = vtanh.pop %v5164
        %v5963 = vtanh.pop %v5312
        %v5964 = vtanh.pop %v5460
        %v5965 = vtanh.pop %v5608
        %v5966 = vtanh.pop %v5756
        %v5967 = vtanh.pop %v5904
        %v5968 = vtanh.pop %v4871
        %v5969 = vtanh.pop %v5019
        %v5970 = vtanh.pop %v5167
        %v5971 = vtanh.pop %v5315
        %v5972 = vtanh.pop %v5463
        %v5973 = vtanh.pop %v5611
        %v5974 = vtanh.pop %v5759
        %v5975 = vtanh.pop %v5907
        %v5976 = vtanh.pop %v4874
        %v5977 = vtanh.pop %v5022
        %v5978 = vtanh.pop %v5170
        %v5979 = vtanh.pop %v5318
        %v5980 = vtanh.pop %v5466
        %v5981 = vtanh.pop %v5614
        %v5982 = vtanh.pop %v5762
        %v5983 = vtanh.pop %v5910
        %v5984 = vtanh.pop %v4877
        %v5985 = vtanh.pop %v5025
        %v5986 = vtanh.pop %v5173
        %v5987 = vtanh.pop %v5321
        %v5988 = vtanh.pop %v5469
        %v5989 = vtanh.pop %v5617
        %v5990 = vtanh.pop %v5765
        %v5991 = vtanh.pop %v5913
        %v5992 = vtanh.pop %v4880
        %v5993 = vtanh.pop %v5028
        %v5994 = vtanh.pop %v5176
        %v5995 = vtanh.pop %v5324
        %v5996 = vtanh.pop %v5472
        %v5997 = vtanh.pop %v5620
        %v5998 = vtanh.pop %v5768
        %v5999 = vtanh.pop %v5916
        %v6000 = vtanh.pop %v4883
        %v6001 = vtanh.pop %v5031
        %v6002 = vtanh.pop %v5179
        %v6003 = vtanh.pop %v5327
        %v6004 = vtanh.pop %v5475
        %v6005 = vtanh.pop %v5623
        %v6006 = vtanh.pop %v5771
        %v6007 = vtanh.pop %v5919
        %v6008 = vtanh.pop %v4886
        %v6009 = vtanh.pop %v5034
        %v6010 = vtanh.pop %v5182
        %v6011 = vtanh.pop %v5330
        %v6012 = vtanh.pop %v5478
        %v6013 = vtanh.pop %v5626
        %v6014 = vtanh.pop %v5774
        %v6015 = vtanh.pop %v5922
        %v6016 = vtanh.pop %v4889
        %v6017 = vtanh.pop %v5037
        %v6018 = vtanh.pop %v5185
        %v6019 = vtanh.pop %v5333
        %v6020 = vtanh.pop %v5481
        %v6021 = vtanh.pop %v5629
        %v6022 = vtanh.pop %v5777
        %v6023 = vtanh.pop %v5925
        %v6024 = vtanh.pop %v4892
        %v6025 = vtanh.pop %v5040
        %v6026 = vtanh.pop %v5188
        %v6027 = vtanh.pop %v5336
        %v6028 = vtanh.pop %v5484
        %v6029 = vtanh.pop %v5632
        %v6030 = vtanh.pop %v5780
        %v6031 = vtanh.pop %v5928
        %v6032 = vtanh.pop %v4895
        %v6033 = vtanh.pop %v5043
        %v6034 = vtanh.pop %v5191
        %v6035 = vtanh.pop %v5339
        %v6036 = vtanh.pop %v5487
        %v6037 = vtanh.pop %v5635
        %v6038 = vtanh.pop %v5783
        %v6039 = vtanh.pop %v5931
        %v6040 = vtanh.pop %v4898
        %v6041 = vtanh.pop %v5046
        %v6042 = vtanh.pop %v5194
        %v6043 = vtanh.pop %v5342
        %v6044 = vtanh.pop %v5490
        %v6045 = vtanh.pop %v5638
        %v6046 = vtanh.pop %v5786
        %v6047 = vtanh.pop %v5934
        %v6048 = vtanh.pop %v4901
        %v6049 = vtanh.pop %v5049
        %v6050 = vtanh.pop %v5197
        %v6051 = vtanh.pop %v5345
        %v6052 = vtanh.pop %v5493
        %v6053 = vtanh.pop %v5641
        %v6054 = vtanh.pop %v5789
        %v6055 = vtanh.pop %v5937
        %v6056 = vtanh.pop %v4904
        %v6057 = vtanh.pop %v5052
        %v6058 = vtanh.pop %v5200
        %v6059 = vtanh.pop %v5348
        %v6060 = vtanh.pop %v5496
        %v6061 = vtanh.pop %v5644
        %v6062 = vtanh.pop %v5792
        %v6063 = vtanh.pop %v5940
        %v6064 = vtanh.pop %v4907
        %v6065 = vtanh.pop %v5055
        %v6066 = vtanh.pop %v5203
        %v6067 = vtanh.pop %v5351
        %v6068 = vtanh.pop %v5499
        %v6069 = vtanh.pop %v5647
        %v6070 = vtanh.pop %v5795
        %v6071 = vtanh.pop %v5943
        %v6072 = vtanh.pop %v4910
        %v6073 = vtanh.pop %v5058
        %v6074 = vtanh.pop %v5206
        %v6075 = vtanh.pop %v5354
        %v6076 = vtanh.pop %v5502
        %v6077 = vtanh.pop %v5650
        %v6078 = vtanh.pop %v5798
        %v6079 = vtanh.pop %v5946
        %v6080 = vtanh.pop %v4913
        %v6081 = vtanh.pop %v5061
        %v6082 = vtanh.pop %v5209
        %v6083 = vtanh.pop %v5357
        %v6084 = vtanh.pop %v5505
        %v6085 = vtanh.pop %v5653
        %v6086 = vtanh.pop %v5801
        %v6087 = vtanh.pop %v5949
        %v6088 = vtanh.pop %v4916
        %v6089 = vtanh.pop %v5064
        %v6090 = vtanh.pop %v5212
        %v6091 = vtanh.pop %v5360
        %v6092 = vtanh.pop %v5508
        %v6093 = vtanh.pop %v5656
        %v6094 = vtanh.pop %v5804
        %v6095 = vtanh.pop %v5952
        %v6096 = vtanh.pop %v4919
        %v6097 = vtanh.pop %v5067
        %v6098 = vtanh.pop %v5215
        %v6099 = vtanh.pop %v5363
        %v6100 = vtanh.pop %v5511
        %v6101 = vtanh.pop %v5659
        %v6102 = vtanh.pop %v5807
        %v6103 = vtanh.pop %v5955
        %v6104 = vtanh.pop %v4922
        %v6105 = vtanh.pop %v5070
        %v6106 = vtanh.pop %v5218
        %v6107 = vtanh.pop %v5366
        %v6108 = vtanh.pop %v5514
        %v6109 = vtanh.pop %v5662
        %v6110 = vtanh.pop %v5810
        %v6111 = vtanh.pop %v5958
        %v6112 = vld [vmem:[%s5] sm:$0x3]
        %s6113 = sld [smem:[#allocation2]]
        %v6114 = vstv %s6113
        %v6116 = vperm.slane %v6112, 0
        %v6117 = vperm.slane %v6112, 1
        %v6119 = vsel %vm1551, %v6117, 0
        %v6122 = vsel %vm1609, %v6104, 0
        %v6125 = vsel %vm1609, %v6105, 0
        %v6128 = vsel %vm1609, %v6106, 0
        %v6131 = vsel %vm1609, %v6107, 0
        %v6134 = vsel %vm1609, %v6108, 0
        %v6137 = vsel %vm1609, %v6109, 0
        %v6140 = vsel %vm1609, %v6110, 0
        %v6143 = vsel %vm1609, %v6111, 0
        %6145 = vmatpush.msra.mxu0 %v6080
        %6146 = vmatpush.msra.mxu0 %v6072
        %6147 = vmatpush.msra.mxu0 %v6064
        %6148 = vmatpush.msra.mxu0 %v6056
        %6149 = vmatpush.msra.mxu0 %v6048
        %6150 = vmatpush.msra.mxu0 %v6040
        %6151 = vmatpush.msra.mxu0 %v6032
        %6152 = vmatpush.msra.mxu0 %v6024
        %6153 = vmatpush.msra.mxu0 %v6016
        %6154 = vmatpush.msra.mxu0 %v6008
        %6155 = vmatpush.msra.mxu0 %v6000
        %6156 = vmatpush.msra.mxu0 %v5992
        %6157 = vmatpush.msra.mxu0 %v5984
        %6158 = vmatpush.msra.mxu0 %v5976
        %6159 = vmatpush.msra.mxu0 %v5968
        %6160 = vmatpush.msra.mxu0 %v5960
        %6161 = vmatmul.f32.gmra.mxu0 %v6116
        %v6162 = vpop.f32.mrf.mxu0
        %v6163 = vadd.f32 %v6114, %v6162
        %6164 = vdwg.mxu0
        %6165 = vmatpush.msra.mxu0 0.0
        %6166 = vmatpush.msra.mxu0 0.0
        %6167 = vmatpush.msra.mxu0 0.0
        %6168 = vmatpush.msra.mxu0 0.0
        %6169 = vmatpush.msra.mxu0 0.0
        %6170 = vmatpush.msra.mxu0 0.0
        %6171 = vmatpush.msra.mxu0 0.0
        %6172 = vmatpush.msra.mxu0 0.0
        %6173 = vmatpush.msra.mxu0 0.0
        %6174 = vmatpush.msra.mxu0 0.0
        %6175 = vmatpush.msra.mxu0 0.0
        %6176 = vmatpush.msra.mxu0 0.0
        %6177 = vmatpush.msra.mxu0 0.0
        %6178 = vmatpush.msra.mxu0 %v6122
        %6179 = vmatpush.msra.mxu0 %v6096
        %6180 = vmatpush.msra.mxu0 %v6088
        %6181 = vmatmul.f32.gmra.mxu0 %v6119
        %v6182 = vpop.f32.mrf.mxu0
        %v6183 = vadd.f32 %v6163, %v6182
        %6184 = vdwg.mxu0
        %6185 = vmatpush.msra.mxu0 %v6081
        %6186 = vmatpush.msra.mxu0 %v6073
        %6187 = vmatpush.msra.mxu0 %v6065
        %6188 = vmatpush.msra.mxu0 %v6057
        %6189 = vmatpush.msra.mxu0 %v6049
        %6190 = vmatpush.msra.mxu0 %v6041
        %6191 = vmatpush.msra.mxu0 %v6033
        %6192 = vmatpush.msra.mxu0 %v6025
        %6193 = vmatpush.msra.mxu0 %v6017
        %6194 = vmatpush.msra.mxu0 %v6009
        %6195 = vmatpush.msra.mxu0 %v6001
        %6196 = vmatpush.msra.mxu0 %v5993
        %6197 = vmatpush.msra.mxu0 %v5985
        %6198 = vmatpush.msra.mxu0 %v5977
        %6199 = vmatpush.msra.mxu0 %v5969
        %6200 = vmatpush.msra.mxu0 %v5961
        %6201 = vmatmul.f32.gmra.mxu0 %v6116
        %v6202 = vpop.f32.mrf.mxu0
        %v6203 = vadd.f32 %v6114, %v6202
        %6204 = vdwg.mxu0
        %6205 = vmatpush.msra.mxu0 0.0
        %6206 = vmatpush.msra.mxu0 0.0
        %6207 = vmatpush.msra.mxu0 0.0
        %6208 = vmatpush.msra.mxu0 0.0
        %6209 = vmatpush.msra.mxu0 0.0
        %6210 = vmatpush.msra.mxu0 0.0
        %6211 = vmatpush.msra.mxu0 0.0
        %6212 = vmatpush.msra.mxu0 0.0
        %6213 = vmatpush.msra.mxu0 0.0
        %6214 = vmatpush.msra.mxu0 0.0
        %6215 = vmatpush.msra.mxu0 0.0
        %6216 = vmatpush.msra.mxu0 0.0
        %6217 = vmatpush.msra.mxu0 0.0
        %6218 = vmatpush.msra.mxu0 %v6125
        %6219 = vmatpush.msra.mxu0 %v6097
        %6220 = vmatpush.msra.mxu0 %v6089
        %6221 = vmatmul.f32.gmra.mxu0 %v6119
        %v6222 = vpop.f32.mrf.mxu0
        %v6223 = vadd.f32 %v6203, %v6222
        %6224 = vdwg.mxu0
        %6225 = vmatpush.msra.mxu0 %v6082
        %6226 = vmatpush.msra.mxu0 %v6074
        %6227 = vmatpush.msra.mxu0 %v6066
        %6228 = vmatpush.msra.mxu0 %v6058
        %6229 = vmatpush.msra.mxu0 %v6050
        %6230 = vmatpush.msra.mxu0 %v6042
        %6231 = vmatpush.msra.mxu0 %v6034
        %6232 = vmatpush.msra.mxu0 %v6026
        %6233 = vmatpush.msra.mxu0 %v6018
        %6234 = vmatpush.msra.mxu0 %v6010
        %6235 = vmatpush.msra.mxu0 %v6002
        %6236 = vmatpush.msra.mxu0 %v5994
        %6237 = vmatpush.msra.mxu0 %v5986
        %6238 = vmatpush.msra.mxu0 %v5978
        %6239 = vmatpush.msra.mxu0 %v5970
        %6240 = vmatpush.msra.mxu0 %v5962
        %6241 = vmatmul.f32.gmra.mxu0 %v6116
        %v6242 = vpop.f32.mrf.mxu0
        %v6243 = vadd.f32 %v6114, %v6242
        %6244 = vdwg.mxu0
        %6245 = vmatpush.msra.mxu0 0.0
        %6246 = vmatpush.msra.mxu0 0.0
        %6247 = vmatpush.msra.mxu0 0.0
        %6248 = vmatpush.msra.mxu0 0.0
        %6249 = vmatpush.msra.mxu0 0.0
        %6250 = vmatpush.msra.mxu0 0.0
        %6251 = vmatpush.msra.mxu0 0.0
        %6252 = vmatpush.msra.mxu0 0.0
        %6253 = vmatpush.msra.mxu0 0.0
        %6254 = vmatpush.msra.mxu0 0.0
        %6255 = vmatpush.msra.mxu0 0.0
        %6256 = vmatpush.msra.mxu0 0.0
        %6257 = vmatpush.msra.mxu0 0.0
        %6258 = vmatpush.msra.mxu0 %v6128
        %6259 = vmatpush.msra.mxu0 %v6098
        %6260 = vmatpush.msra.mxu0 %v6090
        %6261 = vmatmul.f32.gmra.mxu0 %v6119
        %v6262 = vpop.f32.mrf.mxu0
        %v6263 = vadd.f32 %v6243, %v6262
        %6264 = vdwg.mxu0
        %6265 = vmatpush.msra.mxu0 %v6083
        %6266 = vmatpush.msra.mxu0 %v6075
        %6267 = vmatpush.msra.mxu0 %v6067
        %6268 = vmatpush.msra.mxu0 %v6059
        %6269 = vmatpush.msra.mxu0 %v6051
        %6270 = vmatpush.msra.mxu0 %v6043
        %6271 = vmatpush.msra.mxu0 %v6035
        %6272 = vmatpush.msra.mxu0 %v6027
        %6273 = vmatpush.msra.mxu0 %v6019
        %6274 = vmatpush.msra.mxu0 %v6011
        %6275 = vmatpush.msra.mxu0 %v6003
        %6276 = vmatpush.msra.mxu0 %v5995
        %6277 = vmatpush.msra.mxu0 %v5987
        %6278 = vmatpush.msra.mxu0 %v5979
        %6279 = vmatpush.msra.mxu0 %v5971
        %6280 = vmatpush.msra.mxu0 %v5963
        %6281 = vmatmul.f32.gmra.mxu0 %v6116
        %v6282 = vpop.f32.mrf.mxu0
        %v6283 = vadd.f32 %v6114, %v6282
        %6284 = vdwg.mxu0
        %6285 = vmatpush.msra.mxu0 0.0
        %6286 = vmatpush.msra.mxu0 0.0
        %6287 = vmatpush.msra.mxu0 0.0
        %6288 = vmatpush.msra.mxu0 0.0
        %6289 = vmatpush.msra.mxu0 0.0
        %6290 = vmatpush.msra.mxu0 0.0
        %6291 = vmatpush.msra.mxu0 0.0
        %6292 = vmatpush.msra.mxu0 0.0
        %6293 = vmatpush.msra.mxu0 0.0
        %6294 = vmatpush.msra.mxu0 0.0
        %6295 = vmatpush.msra.mxu0 0.0
        %6296 = vmatpush.msra.mxu0 0.0
        %6297 = vmatpush.msra.mxu0 0.0
        %6298 = vmatpush.msra.mxu0 %v6131
        %6299 = vmatpush.msra.mxu0 %v6099
        %6300 = vmatpush.msra.mxu0 %v6091
        %6301 = vmatmul.f32.gmra.mxu0 %v6119
        %v6302 = vpop.f32.mrf.mxu0
        %v6303 = vadd.f32 %v6283, %v6302
        %6304 = vdwg.mxu0
        %6305 = vmatpush.msra.mxu0 %v6084
        %6306 = vmatpush.msra.mxu0 %v6076
        %6307 = vmatpush.msra.mxu0 %v6068
        %6308 = vmatpush.msra.mxu0 %v6060
        %6309 = vmatpush.msra.mxu0 %v6052
        %6310 = vmatpush.msra.mxu0 %v6044
        %6311 = vmatpush.msra.mxu0 %v6036
        %6312 = vmatpush.msra.mxu0 %v6028
        %6313 = vmatpush.msra.mxu0 %v6020
        %6314 = vmatpush.msra.mxu0 %v6012
        %6315 = vmatpush.msra.mxu0 %v6004
        %6316 = vmatpush.msra.mxu0 %v5996
        %6317 = vmatpush.msra.mxu0 %v5988
        %6318 = vmatpush.msra.mxu0 %v5980
        %6319 = vmatpush.msra.mxu0 %v5972
        %6320 = vmatpush.msra.mxu0 %v5964
        %6321 = vmatmul.f32.gmra.mxu0 %v6116
        %v6322 = vpop.f32.mrf.mxu0
        %v6323 = vadd.f32 %v6114, %v6322
        %6324 = vdwg.mxu0
        %6325 = vmatpush.msra.mxu0 0.0
        %6326 = vmatpush.msra.mxu0 0.0
        %6327 = vmatpush.msra.mxu0 0.0
        %6328 = vmatpush.msra.mxu0 0.0
        %6329 = vmatpush.msra.mxu0 0.0
        %6330 = vmatpush.msra.mxu0 0.0
        %6331 = vmatpush.msra.mxu0 0.0
        %6332 = vmatpush.msra.mxu0 0.0
        %6333 = vmatpush.msra.mxu0 0.0
        %6334 = vmatpush.msra.mxu0 0.0
        %6335 = vmatpush.msra.mxu0 0.0
        %6336 = vmatpush.msra.mxu0 0.0
        %6337 = vmatpush.msra.mxu0 0.0
        %6338 = vmatpush.msra.mxu0 %v6134
        %6339 = vmatpush.msra.mxu0 %v6100
        %6340 = vmatpush.msra.mxu0 %v6092
        %6341 = vmatmul.f32.gmra.mxu0 %v6119
        %v6342 = vpop.f32.mrf.mxu0
        %v6343 = vadd.f32 %v6323, %v6342
        %6344 = vdwg.mxu0
        %6345 = vmatpush.msra.mxu0 %v6085
        %6346 = vmatpush.msra.mxu0 %v6077
        %6347 = vmatpush.msra.mxu0 %v6069
        %6348 = vmatpush.msra.mxu0 %v6061
        %6349 = vmatpush.msra.mxu0 %v6053
        %6350 = vmatpush.msra.mxu0 %v6045
        %6351 = vmatpush.msra.mxu0 %v6037
        %6352 = vmatpush.msra.mxu0 %v6029
        %6353 = vmatpush.msra.mxu0 %v6021
        %6354 = vmatpush.msra.mxu0 %v6013
        %6355 = vmatpush.msra.mxu0 %v6005
        %6356 = vmatpush.msra.mxu0 %v5997
        %6357 = vmatpush.msra.mxu0 %v5989
        %6358 = vmatpush.msra.mxu0 %v5981
        %6359 = vmatpush.msra.mxu0 %v5973
        %6360 = vmatpush.msra.mxu0 %v5965
        %6361 = vmatmul.f32.gmra.mxu0 %v6116
        %v6362 = vpop.f32.mrf.mxu0
        %v6363 = vadd.f32 %v6114, %v6362
        %6364 = vdwg.mxu0
        %6365 = vmatpush.msra.mxu0 0.0
        %6366 = vmatpush.msra.mxu0 0.0
        %6367 = vmatpush.msra.mxu0 0.0
        %6368 = vmatpush.msra.mxu0 0.0
        %6369 = vmatpush.msra.mxu0 0.0
        %6370 = vmatpush.msra.mxu0 0.0
        %6371 = vmatpush.msra.mxu0 0.0
        %6372 = vmatpush.msra.mxu0 0.0
        %6373 = vmatpush.msra.mxu0 0.0
        %6374 = vmatpush.msra.mxu0 0.0
        %6375 = vmatpush.msra.mxu0 0.0
        %6376 = vmatpush.msra.mxu0 0.0
        %6377 = vmatpush.msra.mxu0 0.0
        %6378 = vmatpush.msra.mxu0 %v6137
        %6379 = vmatpush.msra.mxu0 %v6101
        %6380 = vmatpush.msra.mxu0 %v6093
        %6381 = vmatmul.f32.gmra.mxu0 %v6119
        %v6382 = vpop.f32.mrf.mxu0
        %v6383 = vadd.f32 %v6363, %v6382
        %6384 = vdwg.mxu0
        %6385 = vmatpush.msra.mxu0 %v6086
        %6386 = vmatpush.msra.mxu0 %v6078
        %6387 = vmatpush.msra.mxu0 %v6070
        %6388 = vmatpush.msra.mxu0 %v6062
        %6389 = vmatpush.msra.mxu0 %v6054
        %6390 = vmatpush.msra.mxu0 %v6046
        %6391 = vmatpush.msra.mxu0 %v6038
        %6392 = vmatpush.msra.mxu0 %v6030
        %6393 = vmatpush.msra.mxu0 %v6022
        %6394 = vmatpush.msra.mxu0 %v6014
        %6395 = vmatpush.msra.mxu0 %v6006
        %6396 = vmatpush.msra.mxu0 %v5998
        %6397 = vmatpush.msra.mxu0 %v5990
        %6398 = vmatpush.msra.mxu0 %v5982
        %6399 = vmatpush.msra.mxu0 %v5974
        %6400 = vmatpush.msra.mxu0 %v5966
        %6401 = vmatmul.f32.gmra.mxu0 %v6116
        %v6402 = vpop.f32.mrf.mxu0
        %v6403 = vadd.f32 %v6114, %v6402
        %6404 = vdwg.mxu0
        %6405 = vmatpush.msra.mxu0 0.0
        %6406 = vmatpush.msra.mxu0 0.0
        %6407 = vmatpush.msra.mxu0 0.0
        %6408 = vmatpush.msra.mxu0 0.0
        %6409 = vmatpush.msra.mxu0 0.0
        %6410 = vmatpush.msra.mxu0 0.0
        %6411 = vmatpush.msra.mxu0 0.0
        %6412 = vmatpush.msra.mxu0 0.0
        %6413 = vmatpush.msra.mxu0 0.0
        %6414 = vmatpush.msra.mxu0 0.0
        %6415 = vmatpush.msra.mxu0 0.0
        %6416 = vmatpush.msra.mxu0 0.0
        %6417 = vmatpush.msra.mxu0 0.0
        %6418 = vmatpush.msra.mxu0 %v6140
        %6419 = vmatpush.msra.mxu0 %v6102
        %6420 = vmatpush.msra.mxu0 %v6094
        %6421 = vmatmul.f32.gmra.mxu0 %v6119
        %v6422 = vpop.f32.mrf.mxu0
        %v6423 = vadd.f32 %v6403, %v6422
        %6424 = vdwg.mxu0
        %6425 = vmatpush.msra.mxu0 %v6087
        %6426 = vmatpush.msra.mxu0 %v6079
        %6427 = vmatpush.msra.mxu0 %v6071
        %6428 = vmatpush.msra.mxu0 %v6063
        %6429 = vmatpush.msra.mxu0 %v6055
        %6430 = vmatpush.msra.mxu0 %v6047
        %6431 = vmatpush.msra.mxu0 %v6039
        %6432 = vmatpush.msra.mxu0 %v6031
        %6433 = vmatpush.msra.mxu0 %v6023
        %6434 = vmatpush.msra.mxu0 %v6015
        %6435 = vmatpush.msra.mxu0 %v6007
        %6436 = vmatpush.msra.mxu0 %v5999
        %6437 = vmatpush.msra.mxu0 %v5991
        %6438 = vmatpush.msra.mxu0 %v5983
        %6439 = vmatpush.msra.mxu0 %v5975
        %6440 = vmatpush.msra.mxu0 %v5967
        %6441 = vmatmul.f32.gmra.mxu0 %v6116
        %v6442 = vpop.f32.mrf.mxu0
        %v6443 = vadd.f32 %v6114, %v6442
        %6444 = vdwg.mxu0
        %6445 = vmatpush.msra.mxu0 0.0
        %6446 = vmatpush.msra.mxu0 0.0
        %6447 = vmatpush.msra.mxu0 0.0
        %6448 = vmatpush.msra.mxu0 0.0
        %6449 = vmatpush.msra.mxu0 0.0
        %6450 = vmatpush.msra.mxu0 0.0
        %6451 = vmatpush.msra.mxu0 0.0
        %6452 = vmatpush.msra.mxu0 0.0
        %6453 = vmatpush.msra.mxu0 0.0
        %6454 = vmatpush.msra.mxu0 0.0
        %6455 = vmatpush.msra.mxu0 0.0
        %6456 = vmatpush.msra.mxu0 0.0
        %6457 = vmatpush.msra.mxu0 0.0
        %6458 = vmatpush.msra.mxu0 %v6143
        %6459 = vmatpush.msra.mxu0 %v6103
        %6460 = vmatpush.msra.mxu0 %v6095
        %6461 = vmatmul.f32.gmra.mxu0 %v6119
        %v6462 = vpop.f32.mrf.mxu0
        %v6463 = vadd.f32 %v6443, %v6462
        %6464 = vdwg.mxu0
        %v6473 = vrot.slane %v6223, 7
        %v6474 = vrot.slane %v6263, 6
        %v6475 = vrot.slane %v6303, 5
        %v6476 = vrot.slane %v6343, 4
        %v6477 = vrot.slane %v6383, 3
        %v6478 = vrot.slane %v6423, 2
        %v6479 = vrot.slane %v6463, 1
        %vm6480 = vcmask 1040384
        %v6481 = vsel %vm6480, %v6183, %v6473
        %vm6482 = vcmask 1042434
        %v6483 = vsel %vm6482, %v6474, %v6475
        %vm6484 = vcmask 1041408
        %v6485 = vsel %vm6484, %v6481, %v6483
        %vm6486 = vcmask 1044484
        %v6487 = vsel %vm6486, %v6476, %v6477
        %vm6488 = vcmask 1046534
        %v6489 = vsel %vm6488, %v6478, %v6479
        %vm6490 = vcmask 1045508
        %v6491 = vsel %vm6490, %v6487, %v6489
        %vm6492 = vcmask 1043456
        %v6493 = vsel %vm6492, %v6485, %v6491
        %6495 = vst [vmem:[%s290] sm:$0xff] %v6493
        %s6496 = sand.u32 %s183, 1
        %s6497 = scalar_lea.sflag [#allocation5], %s6496
        %s6498 = sand.u32 %s183, 1
        %s6499 = smul.addr %s6498, 8
        %s6500 = scalar_lea.vmem [#allocation6], %s6499
        // Predicated region
        $region53: #{tpu_custom_call.1} parent=47 // pred_check
          %p6501 = pneg %p193
        $region54: #{tpu_custom_call.1} parent=47 // pred_check_branch
          %6503 = sbr.rel (%p6501) target = $region56
        $region55: #{tpu_custom_call.1} parent=47 // pred_region
          %s6504 = smul.u32 8, %s23
          %6506 = vsyncadd %s6497, 0
          %s6507 = scalar_lea.hbm %s7, %s6504
          %s6509 = sshll.u32 %s6500, 4
          %s6510 = int_to_ptr.vmem [resolvable:$true] %s6509
          %s6511 = sshll.u32 %s6507, 4
          %s6512 = int_to_ptr.hbm [resolvable:$true] %s6511
          %6514 = dma.vmem_to_hbm [thread:$0]  %s6510, 128, %s6512, %s6497
        $region56: #{tpu_custom_call.1} parent=47 // pred_fallthru
          _
      $region48: #{tpu_custom_call.1} parent=5 // pred_fallthru
        _
      %p6515 = scmp.le.s32.totalorder 2, %s18
      // Predicated region
      $region57: #{tpu_custom_call.1} parent=5 // pred_check
        %p6516 = pneg %p6515
      $region58: #{tpu_custom_call.1} parent=5 // pred_check_branch
        %6518 = sbr.rel (%p6516) target = $region60
      $region59: #{tpu_custom_call.1} parent=5 // pred_region
        %s6519 = ssub.s32 %s18, 2
        // Predicated region
        $region61: #{tpu_custom_call.1} parent=59 // pred_check
          %p6520 = pneg %p199
        $region62: #{tpu_custom_call.1} parent=59 // pred_check_branch
          %6522 = sbr.rel (%p6520) target = $region64
        $region63: #{tpu_custom_call.1} parent=59 // pred_region
          %s6523 = sand.u32 %s184, 1
          %s6524 = scalar_lea.sflag [#allocation5], %s6523
          %s6525 = sand.u32 %s184, 1
          %s6526 = smul.addr %s6525, 8
          %s6527 = scalar_lea.vmem [#allocation6], %s6526
          %6529 = dma.done %s6524, 128
        $region64: #{tpu_custom_call.1} parent=59 // pred_fallthru
          _
      $region60: #{tpu_custom_call.1} parent=5 // pred_fallthru
        _
    $region6: #{tpu_custom_call.1} parent=1 // loop_footer
      %s22 = sadd.s32 1, %s18
    $region7: #{tpu_custom_call.1} parent=1 // loop_footer_branch
      %17 = sbr.rel target = $region3
    $region8: #{tpu_custom_call.1} parent=1 // loop_exit
      _
    %6530 = vsyncpa [#allocation4], 1
    %s6531 = scalar_lea.sflag [#allocation4], 1
    %6532 = vsyncpa %s6531, 1
    %6533 = vsyncpa [#allocation5], 1
    %s6534 = scalar_lea.sflag [#allocation5], 1
    %6535 = vsyncpa %s6534, 1

</llo_original>
